<compile_context>
chip_gen: v5e
topology: v5e:2x2
jax: 0.10.0
libtpu: 0.0.40
codegen_flags: <defaults>
</compile_context>

<pallas_src>
import jax
import jax.numpy as jnp
from jax.experimental import pallas as pl
from jax.experimental.pallas import tpu as pltpu

IN_FEATURES = 28 * 28   # 784
K_PAD = 896             # next multiple of 128 -> clean, unmasked MXU K passes
HIDDEN = 512
OUT_FEATURES = 10
OUT_PAD = 128           # lane-dense output block (masked vst avoided)
TM = 128                # batch tile: matches MXU rows on v5e, fine on v6e/v7x


def _round_up(n, m):
    return (n + m - 1) // m * m


def mlp_kernel(x_ref, w1_ref, b1_ref, w2_ref, b2_ref, w3_ref, b3_ref,
               o_ref, h1_ref, h2_ref):
    # Layer 1: (TM,896)bf16 @ (896,512)bf16 -> f32 acc; bias+ReLU in f32; stage bf16.
    h1 = jnp.dot(x_ref[...], w1_ref[...], preferred_element_type=jnp.float32)
    h1_ref[...] = jnp.maximum(h1 + b1_ref[...], 0.0).astype(jnp.bfloat16)
    # Layer 2: (TM,512) @ (512,512)
    h2 = jnp.dot(h1_ref[...], w2_ref[...], preferred_element_type=jnp.float32)
    h2_ref[...] = jnp.maximum(h2 + b2_ref[...], 0.0).astype(jnp.bfloat16)
    # Layer 3: (TM,512) @ (512,128); padded output columns are exactly zero.
    h3 = jnp.dot(h2_ref[...], w3_ref[...], preferred_element_type=jnp.float32)
    o_ref[...] = jnp.maximum(h3 + b3_ref[...], 0.0).astype(o_ref.dtype)


def neural_network_forward(x_nchw, params):
    """x_nchw: (B, 1, 28, 28) float32. Returns (B, 10) float32."""
    w1, b1, w2, b2, w3, b3 = params
    B = x_nchw.shape[0]
    B_pad = _round_up(max(B, 1), TM)

    # Flatten (row-major == nn.Flatten), cast to bf16, zero-pad batch and K.
    x_flat = x_nchw.reshape(B, IN_FEATURES).astype(jnp.bfloat16)
    x_flat = jnp.pad(x_flat, ((0, B_pad - B), (0, K_PAD - IN_FEATURES)))

    # Weights in bf16 (halves the dominant HBM traffic); biases stay f32.
    # Zero-pad W1 rows (matches the x K-padding) and W3/b3 columns (lane-dense output).
    w1p = jnp.pad(w1.astype(jnp.bfloat16), ((0, K_PAD - IN_FEATURES), (0, 0)))
    w2p = w2.astype(jnp.bfloat16)
    w3p = jnp.pad(w3.astype(jnp.bfloat16), ((0, 0), (0, OUT_PAD - OUT_FEATURES)))
    b1p = b1.astype(jnp.float32)
    b2p = b2.astype(jnp.float32)
    b3p = jnp.pad(b3.astype(jnp.float32), ((0, 0), (0, OUT_PAD - OUT_FEATURES)))

    fixed = lambda i: (0, 0)  # weights/biases: same block every step -> stay VMEM-resident

    flops = 2 * B_pad * (K_PAD * HIDDEN + HIDDEN * HIDDEN + HIDDEN * OUT_PAD)
    bytes_accessed = (
        x_flat.size * 2 + w1p.size * 2 + w2p.size * 2 + w3p.size * 2
        + (b1p.size + b2p.size + b3p.size) * 4 + B_pad * OUT_PAD * 4
    )

    out = pl.pallas_call(
        mlp_kernel,
        out_shape=jax.ShapeDtypeStruct((B_pad, OUT_PAD), jnp.float32),
        grid_spec=pltpu.PrefetchScalarGridSpec(
            num_scalar_prefetch=0,
            grid=(B_pad // TM,),
            in_specs=[
                pl.BlockSpec((TM, K_PAD), lambda i: (i, 0)),    # x: one batch tile / step
                pl.BlockSpec((K_PAD, HIDDEN), fixed),           # W1
                pl.BlockSpec((1, HIDDEN), fixed),               # b1
                pl.BlockSpec((HIDDEN, HIDDEN), fixed),          # W2
                pl.BlockSpec((1, HIDDEN), fixed),               # b2
                pl.BlockSpec((HIDDEN, OUT_PAD), fixed),         # W3 (padded)
                pl.BlockSpec((1, OUT_PAD), fixed),              # b3 (padded)
            ],
            out_specs=pl.BlockSpec((TM, OUT_PAD), lambda i: (i, 0)),
            scratch_shapes=[
                pltpu.VMEM((TM, HIDDEN), jnp.bfloat16),         # h1 staging
                pltpu.VMEM((TM, HIDDEN), jnp.bfloat16),         # h2 staging
            ],
        ),
        compiler_params=pltpu.CompilerParams(
            dimension_semantics=("parallel",),
        ),
        cost_estimate=pl.CostEstimate(
            flops=flops, transcendentals=0, bytes_accessed=bytes_accessed
        ),
    )(x_flat, w1p, b1p, w2p, b2p, w3p, b3p)

    return out[:B, :OUT_FEATURES]


def init_params(key):
    """Deterministic init mimicking torch.nn.Linear default (uniform +/- 1/sqrt(fan_in)).

    Weights stored as (in_features, out_features) for the kernel's x @ W convention;
    biases kept 2D (1, out_features).
    """
    dims = [(IN_FEATURES, HIDDEN), (HIDDEN, HIDDEN), (HIDDEN, OUT_FEATURES)]
    params = []
    for i, (fan_in, fan_out) in enumerate(dims):
        kw, kb = jax.random.split(jax.random.fold_in(key, i))
        bound = 1.0 / jnp.sqrt(jnp.float32(fan_in))
        w = jax.random.uniform(kw, (fan_in, fan_out), jnp.float32, -bound, bound)
        b = jax.random.uniform(kb, (1, fan_out), jnp.float32, -bound, bound)
        params.extend([w, b])
    return tuple(params)


def reference_forward(x_nchw, params):
    """Plain-JAX reference mirroring the kernel's numerics (bf16 operands, f32 acc)."""
    w1, b1, w2, b2, w3, b3 = params
    B = x_nchw.shape[0]
    xf = x_nchw.reshape(B, IN_FEATURES).astype(jnp.bfloat16)
    h = jnp.maximum(jnp.dot(xf, w1.astype(jnp.bfloat16),
                            preferred_element_type=jnp.float32) + b1, 0.0)
    h = jnp.maximum(jnp.dot(h.astype(jnp.bfloat16), w2.astype(jnp.bfloat16),
                            preferred_element_type=jnp.float32) + b2, 0.0)
    h = jnp.maximum(jnp.dot(h.astype(jnp.bfloat16), w3.astype(jnp.bfloat16),
                            preferred_element_type=jnp.float32) + b3, 0.0)
    return h


if __name__ == "__main__":
    key = jax.random.PRNGKey(0)
    k_x, k_p = jax.random.split(key)

    B = 8
    x = jax.random.normal(k_x, (B, 1, 28, 28), jnp.float32)  # NCHW, MNIST-like
    params = init_params(k_p)

    out = neural_network_forward(x, params)
    out = jax.block_until_ready(out)

    ref = reference_forward(x, params)
    assert out.shape == (B, OUT_FEATURES)
    assert jnp.allclose(out, ref, atol=5e-3, rtol=5e-3), float(
        jnp.max(jnp.abs(out - ref))
    )

    print("KERNEL_OK")
</pallas_src>

<mosaic_0001>
module attributes {stable_mosaic.version = 11 : i64} {
  func.func @mlp_kernel(%arg0: i32, %arg1: memref<128x896xbf16, #tpu.memory_space<vmem>>, %arg2: memref<896x512xbf16, #tpu.memory_space<vmem>>, %arg3: memref<1x512xf32, #tpu.memory_space<vmem>>, %arg4: memref<512x512xbf16, #tpu.memory_space<vmem>>, %arg5: memref<1x512xf32, #tpu.memory_space<vmem>>, %arg6: memref<512x128xbf16, #tpu.memory_space<vmem>>, %arg7: memref<1x128xf32, #tpu.memory_space<vmem>>, %arg8: memref<128x128xf32, #tpu.memory_space<vmem>>, %arg9: memref<128x512xbf16, #tpu.memory_space<vmem>>, %arg10: memref<128x512xbf16, #tpu.memory_space<vmem>>) attributes {dimension_semantics = [#tpu.dimension_semantics<parallel>], iteration_bounds = array<i64: 1>, scalar_prefetch = 0 : i64, scratch_operands = 2 : i64, tpu.core_type = #tpu.core_type<tc>, window_params = [{transform_indices = @transform_0, window_bounds = array<i64: 128, 896>}, {pipeline_mode = #tpu.pipeline_mode<synchronous>, transform_indices = @transform_1, window_bounds = array<i64: 896, 512>}, {pipeline_mode = #tpu.pipeline_mode<synchronous>, transform_indices = @transform_2, window_bounds = array<i64: 1, 512>}, {pipeline_mode = #tpu.pipeline_mode<synchronous>, transform_indices = @transform_3, window_bounds = array<i64: 512, 512>}, {pipeline_mode = #tpu.pipeline_mode<synchronous>, transform_indices = @transform_4, window_bounds = array<i64: 1, 512>}, {pipeline_mode = #tpu.pipeline_mode<synchronous>, transform_indices = @transform_5, window_bounds = array<i64: 512, 128>}, {pipeline_mode = #tpu.pipeline_mode<synchronous>, transform_indices = @transform_6, window_bounds = array<i64: 1, 128>}, {transform_indices = @transform_7, window_bounds = array<i64: 128, 128>}]} {
    %c0 = arith.constant 0 : index
    %c0_0 = arith.constant 0 : index
    %0 = vector.load %arg1[%c0, %c0_0] : memref<128x896xbf16, #tpu.memory_space<vmem>>, vector<128x896xbf16>
    %c0_1 = arith.constant 0 : index
    %c0_2 = arith.constant 0 : index
    %1 = vector.load %arg2[%c0_1, %c0_2] : memref<896x512xbf16, #tpu.memory_space<vmem>>, vector<896x512xbf16>
    %cst = arith.constant dense<0.000000e+00> : vector<128x512xf32>
    %2 = tpu.matmul %0, %1, %cst {dimension_numbers = #tpu.dot_dimension_numbers<[1], [0], [0], [1], [0, 0, 1, 1], [], []>} : vector<128x896xbf16>, vector<896x512xbf16>, vector<128x512xf32> -> vector<128x512xf32>
    %c0_3 = arith.constant 0 : index
    %c0_4 = arith.constant 0 : index
    %3 = vector.load %arg3[%c0_3, %c0_4] : memref<1x512xf32, #tpu.memory_space<vmem>>, vector<1x512xf32>
    %4 = vector.broadcast %3 : vector<1x512xf32> to vector<128x512xf32>
    %5 = arith.addf %2, %4 : vector<128x512xf32>
    %cst_5 = arith.constant 0.000000e+00 : f32
    %6 = vector.broadcast %cst_5 : f32 to vector<128x512xf32>
    %7 = arith.maximumf %5, %6 : vector<128x512xf32>
    %8 = arith.truncf %7 : vector<128x512xf32> to vector<128x512xbf16>
    %c0_6 = arith.constant 0 : index
    %c0_7 = arith.constant 0 : index
    %9 = vector.load %arg9[%c0_6, %c0_7] : memref<128x512xbf16, #tpu.memory_space<vmem>>, vector<128x512xbf16>
    tpu.vector_store %arg9[%c0_6, %c0_7], %8 {strides = array<i32>} : memref<128x512xbf16, #tpu.memory_space<vmem>>, vector<128x512xbf16>,
    %c0_8 = arith.constant 0 : index
    %c0_9 = arith.constant 0 : index
    %10 = vector.load %arg9[%c0_8, %c0_9] : memref<128x512xbf16, #tpu.memory_space<vmem>>, vector<128x512xbf16>
    %c0_10 = arith.constant 0 : index
    %c0_11 = arith.constant 0 : index
    %11 = vector.load %arg4[%c0_10, %c0_11] : memref<512x512xbf16, #tpu.memory_space<vmem>>, vector<512x512xbf16>
    %cst_12 = arith.constant dense<0.000000e+00> : vector<128x512xf32>
    %12 = tpu.matmul %10, %11, %cst_12 {dimension_numbers = #tpu.dot_dimension_numbers<[1], [0], [0], [1], [0, 0, 1, 1], [], []>} : vector<128x512xbf16>, vector<512x512xbf16>, vector<128x512xf32> -> vector<128x512xf32>
    %c0_13 = arith.constant 0 : index
    %c0_14 = arith.constant 0 : index
    %13 = vector.load %arg5[%c0_13, %c0_14] : memref<1x512xf32, #tpu.memory_space<vmem>>, vector<1x512xf32>
    %14 = vector.broadcast %13 : vector<1x512xf32> to vector<128x512xf32>
    %15 = arith.addf %12, %14 : vector<128x512xf32>
    %cst_15 = arith.constant 0.000000e+00 : f32
    %16 = vector.broadcast %cst_15 : f32 to vector<128x512xf32>
    %17 = arith.maximumf %15, %16 : vector<128x512xf32>
    %18 = arith.truncf %17 : vector<128x512xf32> to vector<128x512xbf16>
    %c0_16 = arith.constant 0 : index
    %c0_17 = arith.constant 0 : index
    %19 = vector.load %arg10[%c0_16, %c0_17] : memref<128x512xbf16, #tpu.memory_space<vmem>>, vector<128x512xbf16>
    tpu.vector_store %arg10[%c0_16, %c0_17], %18 {strides = array<i32>} : memref<128x512xbf16, #tpu.memory_space<vmem>>, vector<128x512xbf16>,
    %c0_18 = arith.constant 0 : index
    %c0_19 = arith.constant 0 : index
    %20 = vector.load %arg10[%c0_18, %c0_19] : memref<128x512xbf16, #tpu.memory_space<vmem>>, vector<128x512xbf16>
    %c0_20 = arith.constant 0 : index
    %c0_21 = arith.constant 0 : index
    %21 = vector.load %arg6[%c0_20, %c0_21] : memref<512x128xbf16, #tpu.memory_space<vmem>>, vector<512x128xbf16>
    %cst_22 = arith.constant dense<0.000000e+00> : vector<128x128xf32>
    %22 = tpu.matmul %20, %21, %cst_22 {dimension_numbers = #tpu.dot_dimension_numbers<[1], [0], [0], [1], [0, 0, 1, 1], [], []>} : vector<128x512xbf16>, vector<512x128xbf16>, vector<128x128xf32> -> vector<128x128xf32>
    %c0_23 = arith.constant 0 : index
    %c0_24 = arith.constant 0 : index
    %23 = vector.load %arg7[%c0_23, %c0_24] : memref<1x128xf32, #tpu.memory_space<vmem>>, vector<1x128xf32>
    %24 = vector.broadcast %23 : vector<1x128xf32> to vector<128x128xf32>
    %25 = arith.addf %22, %24 : vector<128x128xf32>
    %cst_25 = arith.constant 0.000000e+00 : f32
    %26 = vector.broadcast %cst_25 : f32 to vector<128x128xf32>
    %27 = arith.maximumf %25, %26 : vector<128x128xf32>
    %c0_26 = arith.constant 0 : index
    %c0_27 = arith.constant 0 : index
    %28 = vector.load %arg8[%c0_26, %c0_27] : memref<128x128xf32, #tpu.memory_space<vmem>>, vector<128x128xf32>
    tpu.vector_store %arg8[%c0_26, %c0_27], %27 {strides = array<i32>} : memref<128x128xf32, #tpu.memory_space<vmem>>, vector<128x128xf32>,
    return
  }
  func.func @transform_0(%arg0: i32) -> (i32, i32) {
    %c0_i32 = arith.constant 0 : i32
    %c0_i32_0 = arith.constant 0 : i32
    return %arg0, %c0_i32 : i32, i32
  }
  func.func @transform_1(%arg0: i32) -> (i32, i32) {
    %c0_i32 = arith.constant 0 : i32
    %c0_i32_0 = arith.constant 0 : i32
    %c0_i32_1 = arith.constant 0 : i32
    return %c0_i32, %c0_i32_0 : i32, i32
  }
  func.func @transform_2(%arg0: i32) -> (i32, i32) {
    %c0_i32 = arith.constant 0 : i32
    %c0_i32_0 = arith.constant 0 : i32
    %c0_i32_1 = arith.constant 0 : i32
    return %c0_i32, %c0_i32_0 : i32, i32
  }
  func.func @transform_3(%arg0: i32) -> (i32, i32) {
    %c0_i32 = arith.constant 0 : i32
    %c0_i32_0 = arith.constant 0 : i32
    %c0_i32_1 = arith.constant 0 : i32
    return %c0_i32, %c0_i32_0 : i32, i32
  }
  func.func @transform_4(%arg0: i32) -> (i32, i32) {
    %c0_i32 = arith.constant 0 : i32
    %c0_i32_0 = arith.constant 0 : i32
    %c0_i32_1 = arith.constant 0 : i32
    return %c0_i32, %c0_i32_0 : i32, i32
  }
  func.func @transform_5(%arg0: i32) -> (i32, i32) {
    %c0_i32 = arith.constant 0 : i32
    %c0_i32_0 = arith.constant 0 : i32
    %c0_i32_1 = arith.constant 0 : i32
    return %c0_i32, %c0_i32_0 : i32, i32
  }
  func.func @transform_6(%arg0: i32) -> (i32, i32) {
    %c0_i32 = arith.constant 0 : i32
    %c0_i32_0 = arith.constant 0 : i32
    %c0_i32_1 = arith.constant 0 : i32
    return %c0_i32, %c0_i32_0 : i32, i32
  }
  func.func @transform_7(%arg0: i32) -> (i32, i32) {
    %c0_i32 = arith.constant 0 : i32
    %c0_i32_0 = arith.constant 0 : i32
    return %arg0, %c0_i32 : i32, i32
  }
}

</mosaic_0001>

<llo_original>
// kernel: tpu_custom_call.1
$region0: #{tpu_custom_call.1}
  #allocation0 [shape = 'u32[]', space=smem, size = 0x4, offset = 0x4, fixed_abs, tag = 'smem constant byte address 0x4 - core index']
  #allocation1 [shape = 'u32[72,128]{1,0:T(1,128)}', space=vmem, size = 0x9000, scoped, tag = 'internal scratch']
  #allocation2 [shape = 'bf16[128,512]{1,0:T(8,128)(2,1)}', space=vmem, size = 0x20000, scoped, tag = 'scratch operand']
  #allocation3 [shape = 'bf16[128,512]{1,0:T(8,128)(2,1)}', space=vmem, size = 0x20000, scoped, tag = 'scratch operand']
  %s0 = inlined_call_operand.hbm [shape: bf16[128,896], index: 0, kind: input, shape index: {}]
  %s1 = inlined_call_operand.hbm [shape: bf16[896,512], index: 1, kind: input, shape index: {}]
  %s2 = inlined_call_operand.hbm [shape: f32[1,512], index: 2, kind: input, shape index: {}]
  %s3 = inlined_call_operand.hbm [shape: bf16[512,512], index: 3, kind: input, shape index: {}]
  %s4 = inlined_call_operand.hbm [shape: f32[1,512], index: 4, kind: input, shape index: {}]
  %s5 = inlined_call_operand.hbm [shape: bf16[512,128], index: 5, kind: input, shape index: {}]
  %s6 = inlined_call_operand.vmem [shape: f32[1,128], index: 6, kind: input, shape index: {}]
  %s7 = inlined_call_operand.hbm [shape: f32[128,128], index: 7, kind: output, shape index: {}]
  %s8 = sld [smem:[#allocation0]]
  $region62: #{tpu_custom_call.1} parent=0
    _
  %s10 = ssub.s32 1, %s8
  %s11 = scalar_select 0, %s10, %s8
  $region1: #{tpu_custom_call.1} parent=0
    #allocation4 [shape = 'u8[229376]{0}', space=vmem, size = 0x38000, scoped, tag = 'input window, operand 0, single buffered']
    #allocation5 [shape = 's32[1]{0}', space=sflag, size = 0x4, scoped, tag = 'scoped memory for tpu_custom_call.1']
    #allocation6 [shape = 's32[1]{0}', space=sflag, size = 0x4, scoped, tag = 'scoped memory for tpu_custom_call.1']
    #allocation7 [shape = 'u8[917504]{0}', space=vmem, size = 0xe0000, scoped, tag = 'input window, operand 1, single buffered']
    #allocation8 [shape = 's32[1]{0}', space=sflag, size = 0x4, scoped, tag = 'scoped memory for tpu_custom_call.1']
    #allocation9 [shape = 'u8[2048]{0}', space=vmem, size = 0x800, scoped, tag = 'input window, operand 2, single buffered']
    #allocation10 [shape = 'u8[524288]{0}', space=vmem, size = 0x80000, scoped, tag = 'input window, operand 3, single buffered']
    #allocation11 [shape = 's32[1]{0}', space=sflag, size = 0x4, scoped, tag = 'scoped memory for tpu_custom_call.1']
    #allocation12 [shape = 'u8[2048]{0}', space=vmem, size = 0x800, scoped, tag = 'input window, operand 4, single buffered']
    #allocation13 [shape = 'u8[131072]{0}', space=vmem, size = 0x20000, scoped, tag = 'input window, operand 5, single buffered']
    #allocation14 [shape = 's32[1]{0}', space=sflag, size = 0x4, scoped, tag = 'scoped memory for tpu_custom_call.1']
    #allocation15 [shape = 'u8[65536]{0}', space=vmem, size = 0x10000, scoped, tag = 'output window, operand 0, single buffered']
    %12 = vsyncpa [#allocation5], 0
    %13 = vsyncpa [#allocation8], 0
    %14 = vsyncpa [#allocation11], 0
    %15 = vsyncpa [#allocation14], 0
    %16 = vsyncpa [#allocation6], 0
    // Predicated region
    $region2: #{tpu_custom_call.1} parent=1 // pred_check
      _
    $region3: #{tpu_custom_call.1} parent=1 // pred_check_branch
      %18 = sbr.rel (0) target = $region5
    $region4: #{tpu_custom_call.1} parent=1 // pred_region
      %20 = vsyncadd [#allocation5], 0
      %s21 = sshll.u32 %s0, 4
      %s22 = int_to_ptr.hbm [resolvable:$true] %s21
      %s23 = sshll.u32 [#allocation4], 4
      %s24 = int_to_ptr.vmem [resolvable:$true] %s23
      %29 = dma.hbm_to_vmem [thread:$0]  %s22, 7168, %s24, [#allocation5], 448, 448, 28
    $region5: #{tpu_custom_call.1} parent=1 // pred_fallthru
      _
    // Predicated region
    $region6: #{tpu_custom_call.1} parent=1 // pred_check
      _
    $region7: #{tpu_custom_call.1} parent=1 // pred_check_branch
      %31 = sbr.rel (0) target = $region9
    $region8: #{tpu_custom_call.1} parent=1 // pred_region
      %33 = vsyncadd [#allocation8], 0
      %s34 = sshll.u32 %s1, 4
      %s35 = int_to_ptr.hbm [resolvable:$true] %s34
      %s36 = sshll.u32 [#allocation7], 4
      %s37 = int_to_ptr.vmem [resolvable:$true] %s36
      %42 = dma.hbm_to_vmem [thread:$0]  %s35, 28672, %s37, [#allocation8], 256, 256, 16
    $region9: #{tpu_custom_call.1} parent=1 // pred_fallthru
      _
    // Predicated region
    $region10: #{tpu_custom_call.1} parent=1 // pred_check
      _
    $region11: #{tpu_custom_call.1} parent=1 // pred_check_branch
      %44 = sbr.rel (0) target = $region13
    $region12: #{tpu_custom_call.1} parent=1 // pred_region
      %46 = vsyncadd [#allocation8], 0
      %s48 = sshll.u32 %s2, 4
      %s49 = int_to_ptr.hbm [resolvable:$true] %s48
      %s50 = sshll.u32 [#allocation9], 4
      %s51 = int_to_ptr.vmem [resolvable:$true] %s50
      %53 = dma.hbm_to_vmem [thread:$0]  %s49, 64, %s51, [#allocation8]
    $region13: #{tpu_custom_call.1} parent=1 // pred_fallthru
      _
    // Predicated region
    $region14: #{tpu_custom_call.1} parent=1 // pred_check
      _
    $region15: #{tpu_custom_call.1} parent=1 // pred_check_branch
      %55 = sbr.rel (0) target = $region17
    $region16: #{tpu_custom_call.1} parent=1 // pred_region
      %57 = vsyncadd [#allocation11], 0
      %s58 = sshll.u32 %s3, 4
      %s59 = int_to_ptr.hbm [resolvable:$true] %s58
      %s60 = sshll.u32 [#allocation10], 4
      %s61 = int_to_ptr.vmem [resolvable:$true] %s60
      %66 = dma.hbm_to_vmem [thread:$0]  %s59, 16384, %s61, [#allocation11], 256, 256, 16
    $region17: #{tpu_custom_call.1} parent=1 // pred_fallthru
      _
    // Predicated region
    $region18: #{tpu_custom_call.1} parent=1 // pred_check
      _
    $region19: #{tpu_custom_call.1} parent=1 // pred_check_branch
      %68 = sbr.rel (0) target = $region21
    $region20: #{tpu_custom_call.1} parent=1 // pred_region
      %70 = vsyncadd [#allocation11], 0
      %s72 = sshll.u32 %s4, 4
      %s73 = int_to_ptr.hbm [resolvable:$true] %s72
      %s74 = sshll.u32 [#allocation12], 4
      %s75 = int_to_ptr.vmem [resolvable:$true] %s74
      %77 = dma.hbm_to_vmem [thread:$0]  %s73, 64, %s75, [#allocation11]
    $region21: #{tpu_custom_call.1} parent=1 // pred_fallthru
      _
    // Predicated region
    $region22: #{tpu_custom_call.1} parent=1 // pred_check
      _
    $region23: #{tpu_custom_call.1} parent=1 // pred_check_branch
      %79 = sbr.rel (0) target = $region25
    $region24: #{tpu_custom_call.1} parent=1 // pred_region
      %81 = vsyncadd [#allocation14], 0
      %s82 = sshll.u32 %s5, 4
      %s83 = int_to_ptr.hbm [resolvable:$true] %s82
      %s84 = sshll.u32 [#allocation13], 4
      %s85 = int_to_ptr.vmem [resolvable:$true] %s84
      %90 = dma.hbm_to_vmem [thread:$0]  %s83, 4096, %s85, [#allocation14], 64, 64, 4
    $region25: #{tpu_custom_call.1} parent=1 // pred_fallthru
      _
    // Predicated region
    $region26: #{tpu_custom_call.1} parent=1 // pred_check
      _
    $region27: #{tpu_custom_call.1} parent=1 // pred_check_branch
      %92 = sbr.rel (0) target = $region29
    $region28: #{tpu_custom_call.1} parent=1 // pred_region
      _
    $region29: #{tpu_custom_call.1} parent=1 // pred_fallthru
      _
    // Predicated region
    $region30: #{tpu_custom_call.1} parent=1 // pred_check
      _
    $region31: #{tpu_custom_call.1} parent=1 // pred_check_branch
      %94 = sbr.rel (0) target = $region33
    $region32: #{tpu_custom_call.1} parent=1 // pred_region
      %96 = dma.done [#allocation5], 7168
    $region33: #{tpu_custom_call.1} parent=1 // pred_fallthru
      _
    // Predicated region
    $region34: #{tpu_custom_call.1} parent=1 // pred_check
      _
    $region35: #{tpu_custom_call.1} parent=1 // pred_check_branch
      %98 = sbr.rel (0) target = $region37
    $region36: #{tpu_custom_call.1} parent=1 // pred_region
      %100 = dma.done [#allocation8], 28672
    $region37: #{tpu_custom_call.1} parent=1 // pred_fallthru
      _
    // Predicated region
    $region38: #{tpu_custom_call.1} parent=1 // pred_check
      _
    $region39: #{tpu_custom_call.1} parent=1 // pred_check_branch
      %102 = sbr.rel (0) target = $region41
    $region40: #{tpu_custom_call.1} parent=1 // pred_region
      %104 = dma.done [#allocation8], 64
    $region41: #{tpu_custom_call.1} parent=1 // pred_fallthru
      _
    // Predicated region
    $region42: #{tpu_custom_call.1} parent=1 // pred_check
      _
    $region43: #{tpu_custom_call.1} parent=1 // pred_check_branch
      %106 = sbr.rel (0) target = $region45
    $region44: #{tpu_custom_call.1} parent=1 // pred_region
      %108 = dma.done [#allocation11], 16384
    $region45: #{tpu_custom_call.1} parent=1 // pred_fallthru
      _
    // Predicated region
    $region46: #{tpu_custom_call.1} parent=1 // pred_check
      _
    $region47: #{tpu_custom_call.1} parent=1 // pred_check_branch
      %110 = sbr.rel (0) target = $region49
    $region48: #{tpu_custom_call.1} parent=1 // pred_region
      %112 = dma.done [#allocation11], 64
    $region49: #{tpu_custom_call.1} parent=1 // pred_fallthru
      _
    // Predicated region
    $region50: #{tpu_custom_call.1} parent=1 // pred_check
      _
    $region51: #{tpu_custom_call.1} parent=1 // pred_check_branch
      %114 = sbr.rel (0) target = $region53
    $region52: #{tpu_custom_call.1} parent=1 // pred_region
      %116 = dma.done [#allocation14], 4096
    $region53: #{tpu_custom_call.1} parent=1 // pred_fallthru
      _
    %v117 = vld [vmem:[#allocation4] sm:$0xff]
    %v118 = vld [vmem:[#allocation4 + $0x8] sm:$0xff]
    %v119 = vld [vmem:[#allocation4 + $0x10] sm:$0xff]
    %v120 = vld [vmem:[#allocation4 + $0x18] sm:$0xf]
    %v121 = vld [vmem:[#allocation4 + $0x1c] sm:$0xff]
    %v122 = vld [vmem:[#allocation4 + $0x24] sm:$0xff]
    %v123 = vld [vmem:[#allocation4 + $0x2c] sm:$0xff]
    %v124 = vld [vmem:[#allocation4 + $0x34] sm:$0xf]
    %v125 = vld [vmem:[#allocation4 + $0x38] sm:$0xff]
    %v126 = vld [vmem:[#allocation4 + $0x40] sm:$0xff]
    %v127 = vld [vmem:[#allocation4 + $0x48] sm:$0xff]
    %v128 = vld [vmem:[#allocation4 + $0x50] sm:$0xf]
    %v129 = vld [vmem:[#allocation4 + $0x54] sm:$0xff]
    %v130 = vld [vmem:[#allocation4 + $0x5c] sm:$0xff]
    %v131 = vld [vmem:[#allocation4 + $0x64] sm:$0xff]
    %v132 = vld [vmem:[#allocation4 + $0x6c] sm:$0xf]
    %v133 = vld [vmem:[#allocation4 + $0x70] sm:$0xff]
    %v134 = vld [vmem:[#allocation4 + $0x78] sm:$0xff]
    %v135 = vld [vmem:[#allocation4 + $0x80] sm:$0xff]
    %v136 = vld [vmem:[#allocation4 + $0x88] sm:$0xf]
    %v137 = vld [vmem:[#allocation4 + $0x8c] sm:$0xff]
    %v138 = vld [vmem:[#allocation4 + $0x94] sm:$0xff]
    %v139 = vld [vmem:[#allocation4 + $0x9c] sm:$0xff]
    %v140 = vld [vmem:[#allocation4 + $0xa4] sm:$0xf]
    %v141 = vld [vmem:[#allocation4 + $0xa8] sm:$0xff]
    %v142 = vld [vmem:[#allocation4 + $0xb0] sm:$0xff]
    %v143 = vld [vmem:[#allocation4 + $0xb8] sm:$0xff]
    %v144 = vld [vmem:[#allocation4 + $0xc0] sm:$0xf]
    %v145 = vld [vmem:[#allocation4 + $0xc4] sm:$0xff]
    %v146 = vld [vmem:[#allocation4 + $0xcc] sm:$0xff]
    %v147 = vld [vmem:[#allocation4 + $0xd4] sm:$0xff]
    %v148 = vld [vmem:[#allocation4 + $0xdc] sm:$0xf]
    %v149 = vld [vmem:[#allocation4 + $0xe0] sm:$0xff]
    %v150 = vld [vmem:[#allocation4 + $0xe8] sm:$0xff]
    %v151 = vld [vmem:[#allocation4 + $0xf0] sm:$0xff]
    %v152 = vld [vmem:[#allocation4 + $0xf8] sm:$0xf]
    %v153 = vld [vmem:[#allocation4 + $0xfc] sm:$0xff]
    %v154 = vld [vmem:[#allocation4 + $0x104] sm:$0xff]
    %v155 = vld [vmem:[#allocation4 + $0x10c] sm:$0xff]
    %v156 = vld [vmem:[#allocation4 + $0x114] sm:$0xf]
    %v157 = vld [vmem:[#allocation4 + $0x118] sm:$0xff]
    %v158 = vld [vmem:[#allocation4 + $0x120] sm:$0xff]
    %v159 = vld [vmem:[#allocation4 + $0x128] sm:$0xff]
    %v160 = vld [vmem:[#allocation4 + $0x130] sm:$0xf]
    %v161 = vld [vmem:[#allocation4 + $0x134] sm:$0xff]
    %v162 = vld [vmem:[#allocation4 + $0x13c] sm:$0xff]
    %v163 = vld [vmem:[#allocation4 + $0x144] sm:$0xff]
    %v164 = vld [vmem:[#allocation4 + $0x14c] sm:$0xf]
    %v165 = vld [vmem:[#allocation4 + $0x150] sm:$0xff]
    %v166 = vld [vmem:[#allocation4 + $0x158] sm:$0xff]
    %v167 = vld [vmem:[#allocation4 + $0x160] sm:$0xff]
    %v168 = vld [vmem:[#allocation4 + $0x168] sm:$0xf]
    %v169 = vld [vmem:[#allocation4 + $0x16c] sm:$0xff]
    %v170 = vld [vmem:[#allocation4 + $0x174] sm:$0xff]
    %v171 = vld [vmem:[#allocation4 + $0x17c] sm:$0xff]
    %v172 = vld [vmem:[#allocation4 + $0x184] sm:$0xf]
    %v173 = vld [vmem:[#allocation4 + $0x188] sm:$0xff]
    %v174 = vld [vmem:[#allocation4 + $0x190] sm:$0xff]
    %v175 = vld [vmem:[#allocation4 + $0x198] sm:$0xff]
    %v176 = vld [vmem:[#allocation4 + $0x1a0] sm:$0xf]
    %v177 = vld [vmem:[#allocation4 + $0x1a4] sm:$0xff]
    %v178 = vld [vmem:[#allocation4 + $0x1ac] sm:$0xff]
    %v179 = vld [vmem:[#allocation4 + $0x1b4] sm:$0xff]
    %v180 = vld [vmem:[#allocation4 + $0x1bc] sm:$0xf]
    %v181 = vld [vmem:[#allocation7] sm:$0xff]
    %v182 = vld [vmem:[#allocation7 + $0x8] sm:$0xff]
    %v183 = vld [vmem:[#allocation7 + $0x10] sm:$0xff]
    %v184 = vld [vmem:[#allocation7 + $0x18] sm:$0xff]
    %v185 = vld [vmem:[#allocation7 + $0x20] sm:$0xff]
    %v186 = vld [vmem:[#allocation7 + $0x28] sm:$0xff]
    %v187 = vld [vmem:[#allocation7 + $0x30] sm:$0xff]
    %v188 = vld [vmem:[#allocation7 + $0x38] sm:$0xff]
    %v189 = vld [vmem:[#allocation7 + $0x40] sm:$0xff]
    %v190 = vld [vmem:[#allocation7 + $0x48] sm:$0xff]
    %v191 = vld [vmem:[#allocation7 + $0x50] sm:$0xff]
    %v192 = vld [vmem:[#allocation7 + $0x58] sm:$0xff]
    %v193 = vld [vmem:[#allocation7 + $0x60] sm:$0xff]
    %v194 = vld [vmem:[#allocation7 + $0x68] sm:$0xff]
    %v195 = vld [vmem:[#allocation7 + $0x70] sm:$0xff]
    %v196 = vld [vmem:[#allocation7 + $0x78] sm:$0xff]
    %v197 = vld [vmem:[#allocation7 + $0x80] sm:$0xff]
    %v198 = vld [vmem:[#allocation7 + $0x88] sm:$0xff]
    %v199 = vld [vmem:[#allocation7 + $0x90] sm:$0xff]
    %v200 = vld [vmem:[#allocation7 + $0x98] sm:$0xff]
    %v201 = vld [vmem:[#allocation7 + $0xa0] sm:$0xff]
    %v202 = vld [vmem:[#allocation7 + $0xa8] sm:$0xff]
    %v203 = vld [vmem:[#allocation7 + $0xb0] sm:$0xff]
    %v204 = vld [vmem:[#allocation7 + $0xb8] sm:$0xff]
    %v205 = vld [vmem:[#allocation7 + $0xc0] sm:$0xff]
    %v206 = vld [vmem:[#allocation7 + $0xc8] sm:$0xff]
    %v207 = vld [vmem:[#allocation7 + $0xd0] sm:$0xff]
    %v208 = vld [vmem:[#allocation7 + $0xd8] sm:$0xff]
    %v209 = vld [vmem:[#allocation7 + $0xe0] sm:$0xff]
    %v210 = vld [vmem:[#allocation7 + $0xe8] sm:$0xff]
    %v211 = vld [vmem:[#allocation7 + $0xf0] sm:$0xff]
    %v212 = vld [vmem:[#allocation7 + $0xf8] sm:$0xff]
    %v213 = vld [vmem:[#allocation7 + $0x100] sm:$0xff]
    %v214 = vld [vmem:[#allocation7 + $0x108] sm:$0xff]
    %v215 = vld [vmem:[#allocation7 + $0x110] sm:$0xff]
    %v216 = vld [vmem:[#allocation7 + $0x118] sm:$0xff]
    %v217 = vld [vmem:[#allocation7 + $0x120] sm:$0xff]
    %v218 = vld [vmem:[#allocation7 + $0x128] sm:$0xff]
    %v219 = vld [vmem:[#allocation7 + $0x130] sm:$0xff]
    %v220 = vld [vmem:[#allocation7 + $0x138] sm:$0xff]
    %v221 = vld [vmem:[#allocation7 + $0x140] sm:$0xff]
    %v222 = vld [vmem:[#allocation7 + $0x148] sm:$0xff]
    %v223 = vld [vmem:[#allocation7 + $0x150] sm:$0xff]
    %v224 = vld [vmem:[#allocation7 + $0x158] sm:$0xff]
    %v225 = vld [vmem:[#allocation7 + $0x160] sm:$0xff]
    %v226 = vld [vmem:[#allocation7 + $0x168] sm:$0xff]
    %v227 = vld [vmem:[#allocation7 + $0x170] sm:$0xff]
    %v228 = vld [vmem:[#allocation7 + $0x178] sm:$0xff]
    %v229 = vld [vmem:[#allocation7 + $0x180] sm:$0xff]
    %v230 = vld [vmem:[#allocation7 + $0x188] sm:$0xff]
    %v231 = vld [vmem:[#allocation7 + $0x190] sm:$0xff]
    %v232 = vld [vmem:[#allocation7 + $0x198] sm:$0xff]
    %v233 = vld [vmem:[#allocation7 + $0x1a0] sm:$0xff]
    %v234 = vld [vmem:[#allocation7 + $0x1a8] sm:$0xff]
    %v235 = vld [vmem:[#allocation7 + $0x1b0] sm:$0xff]
    %v236 = vld [vmem:[#allocation7 + $0x1b8] sm:$0xff]
    %v237 = vld [vmem:[#allocation7 + $0x1c0] sm:$0xff]
    %v238 = vld [vmem:[#allocation7 + $0x1c8] sm:$0xff]
    %v239 = vld [vmem:[#allocation7 + $0x1d0] sm:$0xff]
    %v240 = vld [vmem:[#allocation7 + $0x1d8] sm:$0xff]
    %v241 = vld [vmem:[#allocation7 + $0x1e0] sm:$0xff]
    %v242 = vld [vmem:[#allocation7 + $0x1e8] sm:$0xff]
    %v243 = vld [vmem:[#allocation7 + $0x1f0] sm:$0xff]
    %v244 = vld [vmem:[#allocation7 + $0x1f8] sm:$0xff]
    %v245 = vld [vmem:[#allocation7 + $0x200] sm:$0xff]
    %v246 = vld [vmem:[#allocation7 + $0x208] sm:$0xff]
    %v247 = vld [vmem:[#allocation7 + $0x210] sm:$0xff]
    %v248 = vld [vmem:[#allocation7 + $0x218] sm:$0xff]
    %v249 = vld [vmem:[#allocation7 + $0x220] sm:$0xff]
    %v250 = vld [vmem:[#allocation7 + $0x228] sm:$0xff]
    %v251 = vld [vmem:[#allocation7 + $0x230] sm:$0xff]
    %v252 = vld [vmem:[#allocation7 + $0x238] sm:$0xff]
    %v253 = vld [vmem:[#allocation7 + $0x240] sm:$0xff]
    %v254 = vld [vmem:[#allocation7 + $0x248] sm:$0xff]
    %v255 = vld [vmem:[#allocation7 + $0x250] sm:$0xff]
    %v256 = vld [vmem:[#allocation7 + $0x258] sm:$0xff]
    %v257 = vld [vmem:[#allocation7 + $0x260] sm:$0xff]
    %v258 = vld [vmem:[#allocation7 + $0x268] sm:$0xff]
    %v259 = vld [vmem:[#allocation7 + $0x270] sm:$0xff]
    %v260 = vld [vmem:[#allocation7 + $0x278] sm:$0xff]
    %v261 = vld [vmem:[#allocation7 + $0x280] sm:$0xff]
    %v262 = vld [vmem:[#allocation7 + $0x288] sm:$0xff]
    %v263 = vld [vmem:[#allocation7 + $0x290] sm:$0xff]
    %v264 = vld [vmem:[#allocation7 + $0x298] sm:$0xff]
    %v265 = vld [vmem:[#allocation7 + $0x2a0] sm:$0xff]
    %v266 = vld [vmem:[#allocation7 + $0x2a8] sm:$0xff]
    %v267 = vld [vmem:[#allocation7 + $0x2b0] sm:$0xff]
    %v268 = vld [vmem:[#allocation7 + $0x2b8] sm:$0xff]
    %v269 = vld [vmem:[#allocation7 + $0x2c0] sm:$0xff]
    %v270 = vld [vmem:[#allocation7 + $0x2c8] sm:$0xff]
    %v271 = vld [vmem:[#allocation7 + $0x2d0] sm:$0xff]
    %v272 = vld [vmem:[#allocation7 + $0x2d8] sm:$0xff]
    %v273 = vld [vmem:[#allocation7 + $0x2e0] sm:$0xff]
    %v274 = vld [vmem:[#allocation7 + $0x2e8] sm:$0xff]
    %v275 = vld [vmem:[#allocation7 + $0x2f0] sm:$0xff]
    %v276 = vld [vmem:[#allocation7 + $0x2f8] sm:$0xff]
    %v277 = vld [vmem:[#allocation7 + $0x300] sm:$0xff]
    %v278 = vld [vmem:[#allocation7 + $0x308] sm:$0xff]
    %v279 = vld [vmem:[#allocation7 + $0x310] sm:$0xff]
    %v280 = vld [vmem:[#allocation7 + $0x318] sm:$0xff]
    %v281 = vld [vmem:[#allocation7 + $0x320] sm:$0xff]
    %v282 = vld [vmem:[#allocation7 + $0x328] sm:$0xff]
    %v283 = vld [vmem:[#allocation7 + $0x330] sm:$0xff]
    %v284 = vld [vmem:[#allocation7 + $0x338] sm:$0xff]
    %v285 = vld [vmem:[#allocation7 + $0x340] sm:$0xff]
    %v286 = vld [vmem:[#allocation7 + $0x348] sm:$0xff]
    %v287 = vld [vmem:[#allocation7 + $0x350] sm:$0xff]
    %v288 = vld [vmem:[#allocation7 + $0x358] sm:$0xff]
    %v289 = vld [vmem:[#allocation7 + $0x360] sm:$0xff]
    %v290 = vld [vmem:[#allocation7 + $0x368] sm:$0xff]
    %v291 = vld [vmem:[#allocation7 + $0x370] sm:$0xff]
    %v292 = vld [vmem:[#allocation7 + $0x378] sm:$0xff]
    %v293 = vld [vmem:[#allocation7 + $0x380] sm:$0xff]
    %v294 = vld [vmem:[#allocation7 + $0x388] sm:$0xff]
    %v295 = vld [vmem:[#allocation7 + $0x390] sm:$0xff]
    %v296 = vld [vmem:[#allocation7 + $0x398] sm:$0xff]
    %v297 = vld [vmem:[#allocation7 + $0x3a0] sm:$0xff]
    %v298 = vld [vmem:[#allocation7 + $0x3a8] sm:$0xff]
    %v299 = vld [vmem:[#allocation7 + $0x3b0] sm:$0xff]
    %v300 = vld [vmem:[#allocation7 + $0x3b8] sm:$0xff]
    %v301 = vld [vmem:[#allocation7 + $0x3c0] sm:$0xff]
    %v302 = vld [vmem:[#allocation7 + $0x3c8] sm:$0xff]
    %v303 = vld [vmem:[#allocation7 + $0x3d0] sm:$0xff]
    %v304 = vld [vmem:[#allocation7 + $0x3d8] sm:$0xff]
    %v305 = vld [vmem:[#allocation7 + $0x3e0] sm:$0xff]
    %v306 = vld [vmem:[#allocation7 + $0x3e8] sm:$0xff]
    %v307 = vld [vmem:[#allocation7 + $0x3f0] sm:$0xff]
    %v308 = vld [vmem:[#allocation7 + $0x3f8] sm:$0xff]
    %v309 = vld [vmem:[#allocation7 + $0x400] sm:$0xff]
    %v310 = vld [vmem:[#allocation7 + $0x408] sm:$0xff]
    %v311 = vld [vmem:[#allocation7 + $0x410] sm:$0xff]
    %v312 = vld [vmem:[#allocation7 + $0x418] sm:$0xff]
    %v313 = vld [vmem:[#allocation7 + $0x420] sm:$0xff]
    %v314 = vld [vmem:[#allocation7 + $0x428] sm:$0xff]
    %v315 = vld [vmem:[#allocation7 + $0x430] sm:$0xff]
    %v316 = vld [vmem:[#allocation7 + $0x438] sm:$0xff]
    %v317 = vld [vmem:[#allocation7 + $0x440] sm:$0xff]
    %v318 = vld [vmem:[#allocation7 + $0x448] sm:$0xff]
    %v319 = vld [vmem:[#allocation7 + $0x450] sm:$0xff]
    %v320 = vld [vmem:[#allocation7 + $0x458] sm:$0xff]
    %v321 = vld [vmem:[#allocation7 + $0x460] sm:$0xff]
    %v322 = vld [vmem:[#allocation7 + $0x468] sm:$0xff]
    %v323 = vld [vmem:[#allocation7 + $0x470] sm:$0xff]
    %v324 = vld [vmem:[#allocation7 + $0x478] sm:$0xff]
    %v325 = vld [vmem:[#allocation7 + $0x480] sm:$0xff]
    %v326 = vld [vmem:[#allocation7 + $0x488] sm:$0xff]
    %v327 = vld [vmem:[#allocation7 + $0x490] sm:$0xff]
    %v328 = vld [vmem:[#allocation7 + $0x498] sm:$0xff]
    %v329 = vld [vmem:[#allocation7 + $0x4a0] sm:$0xff]
    %v330 = vld [vmem:[#allocation7 + $0x4a8] sm:$0xff]
    %v331 = vld [vmem:[#allocation7 + $0x4b0] sm:$0xff]
    %v332 = vld [vmem:[#allocation7 + $0x4b8] sm:$0xff]
    %v333 = vld [vmem:[#allocation7 + $0x4c0] sm:$0xff]
    %v334 = vld [vmem:[#allocation7 + $0x4c8] sm:$0xff]
    %v335 = vld [vmem:[#allocation7 + $0x4d0] sm:$0xff]
    %v336 = vld [vmem:[#allocation7 + $0x4d8] sm:$0xff]
    %v337 = vld [vmem:[#allocation7 + $0x4e0] sm:$0xff]
    %v338 = vld [vmem:[#allocation7 + $0x4e8] sm:$0xff]
    %v339 = vld [vmem:[#allocation7 + $0x4f0] sm:$0xff]
    %v340 = vld [vmem:[#allocation7 + $0x4f8] sm:$0xff]
    %v341 = vld [vmem:[#allocation7 + $0x500] sm:$0xff]
    %v342 = vld [vmem:[#allocation7 + $0x508] sm:$0xff]
    %v343 = vld [vmem:[#allocation7 + $0x510] sm:$0xff]
    %v344 = vld [vmem:[#allocation7 + $0x518] sm:$0xff]
    %v345 = vld [vmem:[#allocation7 + $0x520] sm:$0xff]
    %v346 = vld [vmem:[#allocation7 + $0x528] sm:$0xff]
    %v347 = vld [vmem:[#allocation7 + $0x530] sm:$0xff]
    %v348 = vld [vmem:[#allocation7 + $0x538] sm:$0xff]
    %v349 = vld [vmem:[#allocation7 + $0x540] sm:$0xff]
    %v350 = vld [vmem:[#allocation7 + $0x548] sm:$0xff]
    %v351 = vld [vmem:[#allocation7 + $0x550] sm:$0xff]
    %v352 = vld [vmem:[#allocation7 + $0x558] sm:$0xff]
    %v353 = vld [vmem:[#allocation7 + $0x560] sm:$0xff]
    %v354 = vld [vmem:[#allocation7 + $0x568] sm:$0xff]
    %v355 = vld [vmem:[#allocation7 + $0x570] sm:$0xff]
    %v356 = vld [vmem:[#allocation7 + $0x578] sm:$0xff]
    %v357 = vld [vmem:[#allocation7 + $0x580] sm:$0xff]
    %v358 = vld [vmem:[#allocation7 + $0x588] sm:$0xff]
    %v359 = vld [vmem:[#allocation7 + $0x590] sm:$0xff]
    %v360 = vld [vmem:[#allocation7 + $0x598] sm:$0xff]
    %v361 = vld [vmem:[#allocation7 + $0x5a0] sm:$0xff]
    %v362 = vld [vmem:[#allocation7 + $0x5a8] sm:$0xff]
    %v363 = vld [vmem:[#allocation7 + $0x5b0] sm:$0xff]
    %v364 = vld [vmem:[#allocation7 + $0x5b8] sm:$0xff]
    %v365 = vld [vmem:[#allocation7 + $0x5c0] sm:$0xff]
    %v366 = vld [vmem:[#allocation7 + $0x5c8] sm:$0xff]
    %v367 = vld [vmem:[#allocation7 + $0x5d0] sm:$0xff]
    %v368 = vld [vmem:[#allocation7 + $0x5d8] sm:$0xff]
    %v369 = vld [vmem:[#allocation7 + $0x5e0] sm:$0xff]
    %v370 = vld [vmem:[#allocation7 + $0x5e8] sm:$0xff]
    %v371 = vld [vmem:[#allocation7 + $0x5f0] sm:$0xff]
    %v372 = vld [vmem:[#allocation7 + $0x5f8] sm:$0xff]
    %v373 = vld [vmem:[#allocation7 + $0x600] sm:$0xff]
    %v374 = vld [vmem:[#allocation7 + $0x608] sm:$0xff]
    %v375 = vld [vmem:[#allocation7 + $0x610] sm:$0xff]
    %v376 = vld [vmem:[#allocation7 + $0x618] sm:$0xff]
    %v377 = vld [vmem:[#allocation7 + $0x620] sm:$0xff]
    %v378 = vld [vmem:[#allocation7 + $0x628] sm:$0xff]
    %v379 = vld [vmem:[#allocation7 + $0x630] sm:$0xff]
    %v380 = vld [vmem:[#allocation7 + $0x638] sm:$0xff]
    %v381 = vld [vmem:[#allocation7 + $0x640] sm:$0xff]
    %v382 = vld [vmem:[#allocation7 + $0x648] sm:$0xff]
    %v383 = vld [vmem:[#allocation7 + $0x650] sm:$0xff]
    %v384 = vld [vmem:[#allocation7 + $0x658] sm:$0xff]
    %v385 = vld [vmem:[#allocation7 + $0x660] sm:$0xff]
    %v386 = vld [vmem:[#allocation7 + $0x668] sm:$0xff]
    %v387 = vld [vmem:[#allocation7 + $0x670] sm:$0xff]
    %v388 = vld [vmem:[#allocation7 + $0x678] sm:$0xff]
    %v389 = vld [vmem:[#allocation7 + $0x680] sm:$0xff]
    %v390 = vld [vmem:[#allocation7 + $0x688] sm:$0xff]
    %v391 = vld [vmem:[#allocation7 + $0x690] sm:$0xff]
    %v392 = vld [vmem:[#allocation7 + $0x698] sm:$0xff]
    %v393 = vld [vmem:[#allocation7 + $0x6a0] sm:$0xff]
    %v394 = vld [vmem:[#allocation7 + $0x6a8] sm:$0xff]
    %v395 = vld [vmem:[#allocation7 + $0x6b0] sm:$0xff]
    %v396 = vld [vmem:[#allocation7 + $0x6b8] sm:$0xff]
    %v397 = vld [vmem:[#allocation7 + $0x6c0] sm:$0xff]
    %v398 = vld [vmem:[#allocation7 + $0x6c8] sm:$0xff]
    %v399 = vld [vmem:[#allocation7 + $0x6d0] sm:$0xff]
    %v400 = vld [vmem:[#allocation7 + $0x6d8] sm:$0xff]
    %v401 = vld [vmem:[#allocation7 + $0x6e0] sm:$0xff]
    %v402 = vld [vmem:[#allocation7 + $0x6e8] sm:$0xff]
    %v403 = vld [vmem:[#allocation7 + $0x6f0] sm:$0xff]
    %v404 = vld [vmem:[#allocation7 + $0x6f8] sm:$0xff]
    %v405 = vld [vmem:[#allocation9] sm:$0xf]
    %v407 = vperm.slane %v405, 0
    %v408 = vperm.slane %v405, 1
    %v409 = vperm.slane %v405, 2
    %v410 = vperm.slane %v405, 3
    %v479 = vunpack.c.l.b16 %v117
    %v480 = vunpack.c.h.b16 %v117
    %v481 = vunpack.c.l.b16 %v118
    %v482 = vunpack.c.h.b16 %v118
    %v483 = vunpack.c.l.b16 %v119
    %v484 = vunpack.c.h.b16 %v119
    %v485 = vunpack.c.l.b16 %v120
    %v486 = vunpack.c.l.b16 %v121
    %v487 = vunpack.c.h.b16 %v121
    %v488 = vunpack.c.l.b16 %v122
    %v489 = vunpack.c.h.b16 %v122
    %v490 = vunpack.c.l.b16 %v123
    %v491 = vunpack.c.h.b16 %v123
    %v492 = vunpack.c.l.b16 %v124
    %v493 = vunpack.c.l.b16 %v125
    %v494 = vunpack.c.h.b16 %v125
    %v495 = vunpack.c.l.b16 %v126
    %v496 = vunpack.c.h.b16 %v126
    %v497 = vunpack.c.l.b16 %v127
    %v498 = vunpack.c.h.b16 %v127
    %v499 = vunpack.c.l.b16 %v128
    %v500 = vunpack.c.l.b16 %v129
    %v501 = vunpack.c.h.b16 %v129
    %v502 = vunpack.c.l.b16 %v130
    %v503 = vunpack.c.h.b16 %v130
    %v504 = vunpack.c.l.b16 %v131
    %v505 = vunpack.c.h.b16 %v131
    %v506 = vunpack.c.l.b16 %v132
    %v507 = vunpack.c.l.b16 %v133
    %v508 = vunpack.c.h.b16 %v133
    %v509 = vunpack.c.l.b16 %v134
    %v510 = vunpack.c.h.b16 %v134
    %v511 = vunpack.c.l.b16 %v135
    %v512 = vunpack.c.h.b16 %v135
    %v513 = vunpack.c.l.b16 %v136
    %v514 = vunpack.c.l.b16 %v137
    %v515 = vunpack.c.h.b16 %v137
    %v516 = vunpack.c.l.b16 %v138
    %v517 = vunpack.c.h.b16 %v138
    %v518 = vunpack.c.l.b16 %v139
    %v519 = vunpack.c.h.b16 %v139
    %v520 = vunpack.c.l.b16 %v140
    %v521 = vunpack.c.l.b16 %v141
    %v522 = vunpack.c.h.b16 %v141
    %v523 = vunpack.c.l.b16 %v142
    %v524 = vunpack.c.h.b16 %v142
    %v525 = vunpack.c.l.b16 %v143
    %v526 = vunpack.c.h.b16 %v143
    %v527 = vunpack.c.l.b16 %v144
    %v528 = vunpack.c.l.b16 %v145
    %v529 = vunpack.c.h.b16 %v145
    %v530 = vunpack.c.l.b16 %v146
    %v531 = vunpack.c.h.b16 %v146
    %v532 = vunpack.c.l.b16 %v147
    %v533 = vunpack.c.h.b16 %v147
    %v534 = vunpack.c.l.b16 %v148
    %v535 = vunpack.c.l.b16 %v149
    %v536 = vunpack.c.h.b16 %v149
    %v537 = vunpack.c.l.b16 %v150
    %v538 = vunpack.c.h.b16 %v150
    %v539 = vunpack.c.l.b16 %v151
    %v540 = vunpack.c.h.b16 %v151
    %v541 = vunpack.c.l.b16 %v152
    %v542 = vunpack.c.l.b16 %v153
    %v543 = vunpack.c.h.b16 %v153
    %v544 = vunpack.c.l.b16 %v154
    %v545 = vunpack.c.h.b16 %v154
    %v546 = vunpack.c.l.b16 %v155
    %v547 = vunpack.c.h.b16 %v155
    %v548 = vunpack.c.l.b16 %v156
    %v549 = vunpack.c.l.b16 %v157
    %v550 = vunpack.c.h.b16 %v157
    %v551 = vunpack.c.l.b16 %v158
    %v552 = vunpack.c.h.b16 %v158
    %v553 = vunpack.c.l.b16 %v159
    %v554 = vunpack.c.h.b16 %v159
    %v555 = vunpack.c.l.b16 %v160
    %v556 = vunpack.c.l.b16 %v161
    %v557 = vunpack.c.h.b16 %v161
    %v558 = vunpack.c.l.b16 %v162
    %v559 = vunpack.c.h.b16 %v162
    %v560 = vunpack.c.l.b16 %v163
    %v561 = vunpack.c.h.b16 %v163
    %v562 = vunpack.c.l.b16 %v164
    %v563 = vunpack.c.l.b16 %v165
    %v564 = vunpack.c.h.b16 %v165
    %v565 = vunpack.c.l.b16 %v166
    %v566 = vunpack.c.h.b16 %v166
    %v567 = vunpack.c.l.b16 %v167
    %v568 = vunpack.c.h.b16 %v167
    %v569 = vunpack.c.l.b16 %v168
    %v570 = vunpack.c.l.b16 %v169
    %v571 = vunpack.c.h.b16 %v169
    %v572 = vunpack.c.l.b16 %v170
    %v573 = vunpack.c.h.b16 %v170
    %v574 = vunpack.c.l.b16 %v171
    %v575 = vunpack.c.h.b16 %v171
    %v576 = vunpack.c.l.b16 %v172
    %v577 = vunpack.c.l.b16 %v173
    %v578 = vunpack.c.h.b16 %v173
    %v579 = vunpack.c.l.b16 %v174
    %v580 = vunpack.c.h.b16 %v174
    %v581 = vunpack.c.l.b16 %v175
    %v582 = vunpack.c.h.b16 %v175
    %v583 = vunpack.c.l.b16 %v176
    %v584 = vunpack.c.l.b16 %v177
    %v585 = vunpack.c.h.b16 %v177
    %v586 = vunpack.c.l.b16 %v178
    %v587 = vunpack.c.h.b16 %v178
    %v588 = vunpack.c.l.b16 %v179
    %v589 = vunpack.c.h.b16 %v179
    %v590 = vunpack.c.l.b16 %v180
    %v591 = vpack.c.b16 %v486, %v479
    %v592 = vpack.c.b16 %v487, %v480
    %v593 = vpack.c.b16 %v488, %v481
    %v594 = vpack.c.b16 %v489, %v482
    %v595 = vpack.c.b16 %v490, %v483
    %v596 = vpack.c.b16 %v491, %v484
    %v597 = vpack.c.b16 %v492, %v485
    %v598 = vpack.c.b16 %v500, %v493
    %v599 = vpack.c.b16 %v501, %v494
    %v600 = vpack.c.b16 %v502, %v495
    %v601 = vpack.c.b16 %v503, %v496
    %v602 = vpack.c.b16 %v504, %v497
    %v603 = vpack.c.b16 %v505, %v498
    %v604 = vpack.c.b16 %v506, %v499
    %v605 = vpack.c.b16 %v514, %v507
    %v606 = vpack.c.b16 %v515, %v508
    %v607 = vpack.c.b16 %v516, %v509
    %v608 = vpack.c.b16 %v517, %v510
    %v609 = vpack.c.b16 %v518, %v511
    %v610 = vpack.c.b16 %v519, %v512
    %v611 = vpack.c.b16 %v520, %v513
    %v612 = vpack.c.b16 %v528, %v521
    %v613 = vpack.c.b16 %v529, %v522
    %v614 = vpack.c.b16 %v530, %v523
    %v615 = vpack.c.b16 %v531, %v524
    %v616 = vpack.c.b16 %v532, %v525
    %v617 = vpack.c.b16 %v533, %v526
    %v618 = vpack.c.b16 %v534, %v527
    %v619 = vpack.c.b16 %v542, %v535
    %v620 = vpack.c.b16 %v543, %v536
    %v621 = vpack.c.b16 %v544, %v537
    %v622 = vpack.c.b16 %v545, %v538
    %v623 = vpack.c.b16 %v546, %v539
    %v624 = vpack.c.b16 %v547, %v540
    %v625 = vpack.c.b16 %v548, %v541
    %v626 = vpack.c.b16 %v556, %v549
    %v627 = vpack.c.b16 %v557, %v550
    %v628 = vpack.c.b16 %v558, %v551
    %v629 = vpack.c.b16 %v559, %v552
    %v630 = vpack.c.b16 %v560, %v553
    %v631 = vpack.c.b16 %v561, %v554
    %v632 = vpack.c.b16 %v562, %v555
    %v633 = vpack.c.b16 %v570, %v563
    %v634 = vpack.c.b16 %v571, %v564
    %v635 = vpack.c.b16 %v572, %v565
    %v636 = vpack.c.b16 %v573, %v566
    %v637 = vpack.c.b16 %v574, %v567
    %v638 = vpack.c.b16 %v575, %v568
    %v639 = vpack.c.b16 %v576, %v569
    %v640 = vpack.c.b16 %v584, %v577
    %v641 = vpack.c.b16 %v585, %v578
    %v642 = vpack.c.b16 %v586, %v579
    %v643 = vpack.c.b16 %v587, %v580
    %v644 = vpack.c.b16 %v588, %v581
    %v645 = vpack.c.b16 %v589, %v582
    %v646 = vpack.c.b16 %v590, %v583
    %v927 = vunpack.c.l.b16 %v181
    %v928 = vunpack.c.h.b16 %v181
    %v929 = vunpack.c.l.b16 %v182
    %v930 = vunpack.c.h.b16 %v182
    %v931 = vunpack.c.l.b16 %v183
    %v932 = vunpack.c.h.b16 %v183
    %v933 = vunpack.c.l.b16 %v184
    %v934 = vunpack.c.h.b16 %v184
    %v935 = vunpack.c.l.b16 %v185
    %v936 = vunpack.c.h.b16 %v185
    %v937 = vunpack.c.l.b16 %v186
    %v938 = vunpack.c.h.b16 %v186
    %v939 = vunpack.c.l.b16 %v187
    %v940 = vunpack.c.h.b16 %v187
    %v941 = vunpack.c.l.b16 %v188
    %v942 = vunpack.c.h.b16 %v188
    %v943 = vunpack.c.l.b16 %v189
    %v944 = vunpack.c.h.b16 %v189
    %v945 = vunpack.c.l.b16 %v190
    %v946 = vunpack.c.h.b16 %v190
    %v947 = vunpack.c.l.b16 %v191
    %v948 = vunpack.c.h.b16 %v191
    %v949 = vunpack.c.l.b16 %v192
    %v950 = vunpack.c.h.b16 %v192
    %v951 = vunpack.c.l.b16 %v193
    %v952 = vunpack.c.h.b16 %v193
    %v953 = vunpack.c.l.b16 %v194
    %v954 = vunpack.c.h.b16 %v194
    %v955 = vunpack.c.l.b16 %v195
    %v956 = vunpack.c.h.b16 %v195
    %v957 = vunpack.c.l.b16 %v196
    %v958 = vunpack.c.h.b16 %v196
    %v959 = vunpack.c.l.b16 %v197
    %v960 = vunpack.c.h.b16 %v197
    %v961 = vunpack.c.l.b16 %v198
    %v962 = vunpack.c.h.b16 %v198
    %v963 = vunpack.c.l.b16 %v199
    %v964 = vunpack.c.h.b16 %v199
    %v965 = vunpack.c.l.b16 %v200
    %v966 = vunpack.c.h.b16 %v200
    %v967 = vunpack.c.l.b16 %v201
    %v968 = vunpack.c.h.b16 %v201
    %v969 = vunpack.c.l.b16 %v202
    %v970 = vunpack.c.h.b16 %v202
    %v971 = vunpack.c.l.b16 %v203
    %v972 = vunpack.c.h.b16 %v203
    %v973 = vunpack.c.l.b16 %v204
    %v974 = vunpack.c.h.b16 %v204
    %v975 = vunpack.c.l.b16 %v205
    %v976 = vunpack.c.h.b16 %v205
    %v977 = vunpack.c.l.b16 %v206
    %v978 = vunpack.c.h.b16 %v206
    %v979 = vunpack.c.l.b16 %v207
    %v980 = vunpack.c.h.b16 %v207
    %v981 = vunpack.c.l.b16 %v208
    %v982 = vunpack.c.h.b16 %v208
    %v983 = vunpack.c.l.b16 %v209
    %v984 = vunpack.c.h.b16 %v209
    %v985 = vunpack.c.l.b16 %v210
    %v986 = vunpack.c.h.b16 %v210
    %v987 = vunpack.c.l.b16 %v211
    %v988 = vunpack.c.h.b16 %v211
    %v989 = vunpack.c.l.b16 %v212
    %v990 = vunpack.c.h.b16 %v212
    %v991 = vunpack.c.l.b16 %v213
    %v992 = vunpack.c.h.b16 %v213
    %v993 = vunpack.c.l.b16 %v214
    %v994 = vunpack.c.h.b16 %v214
    %v995 = vunpack.c.l.b16 %v215
    %v996 = vunpack.c.h.b16 %v215
    %v997 = vunpack.c.l.b16 %v216
    %v998 = vunpack.c.h.b16 %v216
    %v999 = vunpack.c.l.b16 %v217
    %v1000 = vunpack.c.h.b16 %v217
    %v1001 = vunpack.c.l.b16 %v218
    %v1002 = vunpack.c.h.b16 %v218
    %v1003 = vunpack.c.l.b16 %v219
    %v1004 = vunpack.c.h.b16 %v219
    %v1005 = vunpack.c.l.b16 %v220
    %v1006 = vunpack.c.h.b16 %v220
    %v1007 = vunpack.c.l.b16 %v221
    %v1008 = vunpack.c.h.b16 %v221
    %v1009 = vunpack.c.l.b16 %v222
    %v1010 = vunpack.c.h.b16 %v222
    %v1011 = vunpack.c.l.b16 %v223
    %v1012 = vunpack.c.h.b16 %v223
    %v1013 = vunpack.c.l.b16 %v224
    %v1014 = vunpack.c.h.b16 %v224
    %v1015 = vunpack.c.l.b16 %v225
    %v1016 = vunpack.c.h.b16 %v225
    %v1017 = vunpack.c.l.b16 %v226
    %v1018 = vunpack.c.h.b16 %v226
    %v1019 = vunpack.c.l.b16 %v227
    %v1020 = vunpack.c.h.b16 %v227
    %v1021 = vunpack.c.l.b16 %v228
    %v1022 = vunpack.c.h.b16 %v228
    %v1023 = vunpack.c.l.b16 %v229
    %v1024 = vunpack.c.h.b16 %v229
    %v1025 = vunpack.c.l.b16 %v230
    %v1026 = vunpack.c.h.b16 %v230
    %v1027 = vunpack.c.l.b16 %v231
    %v1028 = vunpack.c.h.b16 %v231
    %v1029 = vunpack.c.l.b16 %v232
    %v1030 = vunpack.c.h.b16 %v232
    %v1031 = vunpack.c.l.b16 %v233
    %v1032 = vunpack.c.h.b16 %v233
    %v1033 = vunpack.c.l.b16 %v234
    %v1034 = vunpack.c.h.b16 %v234
    %v1035 = vunpack.c.l.b16 %v235
    %v1036 = vunpack.c.h.b16 %v235
    %v1037 = vunpack.c.l.b16 %v236
    %v1038 = vunpack.c.h.b16 %v236
    %v1039 = vunpack.c.l.b16 %v237
    %v1040 = vunpack.c.h.b16 %v237
    %v1041 = vunpack.c.l.b16 %v238
    %v1042 = vunpack.c.h.b16 %v238
    %v1043 = vunpack.c.l.b16 %v239
    %v1044 = vunpack.c.h.b16 %v239
    %v1045 = vunpack.c.l.b16 %v240
    %v1046 = vunpack.c.h.b16 %v240
    %v1047 = vunpack.c.l.b16 %v241
    %v1048 = vunpack.c.h.b16 %v241
    %v1049 = vunpack.c.l.b16 %v242
    %v1050 = vunpack.c.h.b16 %v242
    %v1051 = vunpack.c.l.b16 %v243
    %v1052 = vunpack.c.h.b16 %v243
    %v1053 = vunpack.c.l.b16 %v244
    %v1054 = vunpack.c.h.b16 %v244
    %v1055 = vunpack.c.l.b16 %v245
    %v1056 = vunpack.c.h.b16 %v245
    %v1057 = vunpack.c.l.b16 %v246
    %v1058 = vunpack.c.h.b16 %v246
    %v1059 = vunpack.c.l.b16 %v247
    %v1060 = vunpack.c.h.b16 %v247
    %v1061 = vunpack.c.l.b16 %v248
    %v1062 = vunpack.c.h.b16 %v248
    %v1063 = vunpack.c.l.b16 %v249
    %v1064 = vunpack.c.h.b16 %v249
    %v1065 = vunpack.c.l.b16 %v250
    %v1066 = vunpack.c.h.b16 %v250
    %v1067 = vunpack.c.l.b16 %v251
    %v1068 = vunpack.c.h.b16 %v251
    %v1069 = vunpack.c.l.b16 %v252
    %v1070 = vunpack.c.h.b16 %v252
    %v1071 = vunpack.c.l.b16 %v253
    %v1072 = vunpack.c.h.b16 %v253
    %v1073 = vunpack.c.l.b16 %v254
    %v1074 = vunpack.c.h.b16 %v254
    %v1075 = vunpack.c.l.b16 %v255
    %v1076 = vunpack.c.h.b16 %v255
    %v1077 = vunpack.c.l.b16 %v256
    %v1078 = vunpack.c.h.b16 %v256
    %v1079 = vunpack.c.l.b16 %v257
    %v1080 = vunpack.c.h.b16 %v257
    %v1081 = vunpack.c.l.b16 %v258
    %v1082 = vunpack.c.h.b16 %v258
    %v1083 = vunpack.c.l.b16 %v259
    %v1084 = vunpack.c.h.b16 %v259
    %v1085 = vunpack.c.l.b16 %v260
    %v1086 = vunpack.c.h.b16 %v260
    %v1087 = vunpack.c.l.b16 %v261
    %v1088 = vunpack.c.h.b16 %v261
    %v1089 = vunpack.c.l.b16 %v262
    %v1090 = vunpack.c.h.b16 %v262
    %v1091 = vunpack.c.l.b16 %v263
    %v1092 = vunpack.c.h.b16 %v263
    %v1093 = vunpack.c.l.b16 %v264
    %v1094 = vunpack.c.h.b16 %v264
    %v1095 = vunpack.c.l.b16 %v265
    %v1096 = vunpack.c.h.b16 %v265
    %v1097 = vunpack.c.l.b16 %v266
    %v1098 = vunpack.c.h.b16 %v266
    %v1099 = vunpack.c.l.b16 %v267
    %v1100 = vunpack.c.h.b16 %v267
    %v1101 = vunpack.c.l.b16 %v268
    %v1102 = vunpack.c.h.b16 %v268
    %v1103 = vunpack.c.l.b16 %v269
    %v1104 = vunpack.c.h.b16 %v269
    %v1105 = vunpack.c.l.b16 %v270
    %v1106 = vunpack.c.h.b16 %v270
    %v1107 = vunpack.c.l.b16 %v271
    %v1108 = vunpack.c.h.b16 %v271
    %v1109 = vunpack.c.l.b16 %v272
    %v1110 = vunpack.c.h.b16 %v272
    %v1111 = vunpack.c.l.b16 %v273
    %v1112 = vunpack.c.h.b16 %v273
    %v1113 = vunpack.c.l.b16 %v274
    %v1114 = vunpack.c.h.b16 %v274
    %v1115 = vunpack.c.l.b16 %v275
    %v1116 = vunpack.c.h.b16 %v275
    %v1117 = vunpack.c.l.b16 %v276
    %v1118 = vunpack.c.h.b16 %v276
    %v1119 = vunpack.c.l.b16 %v277
    %v1120 = vunpack.c.h.b16 %v277
    %v1121 = vunpack.c.l.b16 %v278
    %v1122 = vunpack.c.h.b16 %v278
    %v1123 = vunpack.c.l.b16 %v279
    %v1124 = vunpack.c.h.b16 %v279
    %v1125 = vunpack.c.l.b16 %v280
    %v1126 = vunpack.c.h.b16 %v280
    %v1127 = vunpack.c.l.b16 %v281
    %v1128 = vunpack.c.h.b16 %v281
    %v1129 = vunpack.c.l.b16 %v282
    %v1130 = vunpack.c.h.b16 %v282
    %v1131 = vunpack.c.l.b16 %v283
    %v1132 = vunpack.c.h.b16 %v283
    %v1133 = vunpack.c.l.b16 %v284
    %v1134 = vunpack.c.h.b16 %v284
    %v1135 = vunpack.c.l.b16 %v285
    %v1136 = vunpack.c.h.b16 %v285
    %v1137 = vunpack.c.l.b16 %v286
    %v1138 = vunpack.c.h.b16 %v286
    %v1139 = vunpack.c.l.b16 %v287
    %v1140 = vunpack.c.h.b16 %v287
    %v1141 = vunpack.c.l.b16 %v288
    %v1142 = vunpack.c.h.b16 %v288
    %v1143 = vunpack.c.l.b16 %v289
    %v1144 = vunpack.c.h.b16 %v289
    %v1145 = vunpack.c.l.b16 %v290
    %v1146 = vunpack.c.h.b16 %v290
    %v1147 = vunpack.c.l.b16 %v291
    %v1148 = vunpack.c.h.b16 %v291
    %v1149 = vunpack.c.l.b16 %v292
    %v1150 = vunpack.c.h.b16 %v292
    %v1151 = vunpack.c.l.b16 %v293
    %v1152 = vunpack.c.h.b16 %v293
    %v1153 = vunpack.c.l.b16 %v294
    %v1154 = vunpack.c.h.b16 %v294
    %v1155 = vunpack.c.l.b16 %v295
    %v1156 = vunpack.c.h.b16 %v295
    %v1157 = vunpack.c.l.b16 %v296
    %v1158 = vunpack.c.h.b16 %v296
    %v1159 = vunpack.c.l.b16 %v297
    %v1160 = vunpack.c.h.b16 %v297
    %v1161 = vunpack.c.l.b16 %v298
    %v1162 = vunpack.c.h.b16 %v298
    %v1163 = vunpack.c.l.b16 %v299
    %v1164 = vunpack.c.h.b16 %v299
    %v1165 = vunpack.c.l.b16 %v300
    %v1166 = vunpack.c.h.b16 %v300
    %v1167 = vunpack.c.l.b16 %v301
    %v1168 = vunpack.c.h.b16 %v301
    %v1169 = vunpack.c.l.b16 %v302
    %v1170 = vunpack.c.h.b16 %v302
    %v1171 = vunpack.c.l.b16 %v303
    %v1172 = vunpack.c.h.b16 %v303
    %v1173 = vunpack.c.l.b16 %v304
    %v1174 = vunpack.c.h.b16 %v304
    %v1175 = vunpack.c.l.b16 %v305
    %v1176 = vunpack.c.h.b16 %v305
    %v1177 = vunpack.c.l.b16 %v306
    %v1178 = vunpack.c.h.b16 %v306
    %v1179 = vunpack.c.l.b16 %v307
    %v1180 = vunpack.c.h.b16 %v307
    %v1181 = vunpack.c.l.b16 %v308
    %v1182 = vunpack.c.h.b16 %v308
    %v1183 = vunpack.c.l.b16 %v309
    %v1184 = vunpack.c.h.b16 %v309
    %v1185 = vunpack.c.l.b16 %v310
    %v1186 = vunpack.c.h.b16 %v310
    %v1187 = vunpack.c.l.b16 %v311
    %v1188 = vunpack.c.h.b16 %v311
    %v1189 = vunpack.c.l.b16 %v312
    %v1190 = vunpack.c.h.b16 %v312
    %v1191 = vunpack.c.l.b16 %v313
    %v1192 = vunpack.c.h.b16 %v313
    %v1193 = vunpack.c.l.b16 %v314
    %v1194 = vunpack.c.h.b16 %v314
    %v1195 = vunpack.c.l.b16 %v315
    %v1196 = vunpack.c.h.b16 %v315
    %v1197 = vunpack.c.l.b16 %v316
    %v1198 = vunpack.c.h.b16 %v316
    %v1199 = vunpack.c.l.b16 %v317
    %v1200 = vunpack.c.h.b16 %v317
    %v1201 = vunpack.c.l.b16 %v318
    %v1202 = vunpack.c.h.b16 %v318
    %v1203 = vunpack.c.l.b16 %v319
    %v1204 = vunpack.c.h.b16 %v319
    %v1205 = vunpack.c.l.b16 %v320
    %v1206 = vunpack.c.h.b16 %v320
    %v1207 = vunpack.c.l.b16 %v321
    %v1208 = vunpack.c.h.b16 %v321
    %v1209 = vunpack.c.l.b16 %v322
    %v1210 = vunpack.c.h.b16 %v322
    %v1211 = vunpack.c.l.b16 %v323
    %v1212 = vunpack.c.h.b16 %v323
    %v1213 = vunpack.c.l.b16 %v324
    %v1214 = vunpack.c.h.b16 %v324
    %v1215 = vunpack.c.l.b16 %v325
    %v1216 = vunpack.c.h.b16 %v325
    %v1217 = vunpack.c.l.b16 %v326
    %v1218 = vunpack.c.h.b16 %v326
    %v1219 = vunpack.c.l.b16 %v327
    %v1220 = vunpack.c.h.b16 %v327
    %v1221 = vunpack.c.l.b16 %v328
    %v1222 = vunpack.c.h.b16 %v328
    %v1223 = vunpack.c.l.b16 %v329
    %v1224 = vunpack.c.h.b16 %v329
    %v1225 = vunpack.c.l.b16 %v330
    %v1226 = vunpack.c.h.b16 %v330
    %v1227 = vunpack.c.l.b16 %v331
    %v1228 = vunpack.c.h.b16 %v331
    %v1229 = vunpack.c.l.b16 %v332
    %v1230 = vunpack.c.h.b16 %v332
    %v1231 = vunpack.c.l.b16 %v333
    %v1232 = vunpack.c.h.b16 %v333
    %v1233 = vunpack.c.l.b16 %v334
    %v1234 = vunpack.c.h.b16 %v334
    %v1235 = vunpack.c.l.b16 %v335
    %v1236 = vunpack.c.h.b16 %v335
    %v1237 = vunpack.c.l.b16 %v336
    %v1238 = vunpack.c.h.b16 %v336
    %v1239 = vunpack.c.l.b16 %v337
    %v1240 = vunpack.c.h.b16 %v337
    %v1241 = vunpack.c.l.b16 %v338
    %v1242 = vunpack.c.h.b16 %v338
    %v1243 = vunpack.c.l.b16 %v339
    %v1244 = vunpack.c.h.b16 %v339
    %v1245 = vunpack.c.l.b16 %v340
    %v1246 = vunpack.c.h.b16 %v340
    %v1247 = vunpack.c.l.b16 %v341
    %v1248 = vunpack.c.h.b16 %v341
    %v1249 = vunpack.c.l.b16 %v342
    %v1250 = vunpack.c.h.b16 %v342
    %v1251 = vunpack.c.l.b16 %v343
    %v1252 = vunpack.c.h.b16 %v343
    %v1253 = vunpack.c.l.b16 %v344
    %v1254 = vunpack.c.h.b16 %v344
    %v1255 = vunpack.c.l.b16 %v345
    %v1256 = vunpack.c.h.b16 %v345
    %v1257 = vunpack.c.l.b16 %v346
    %v1258 = vunpack.c.h.b16 %v346
    %v1259 = vunpack.c.l.b16 %v347
    %v1260 = vunpack.c.h.b16 %v347
    %v1261 = vunpack.c.l.b16 %v348
    %v1262 = vunpack.c.h.b16 %v348
    %v1263 = vunpack.c.l.b16 %v349
    %v1264 = vunpack.c.h.b16 %v349
    %v1265 = vunpack.c.l.b16 %v350
    %v1266 = vunpack.c.h.b16 %v350
    %v1267 = vunpack.c.l.b16 %v351
    %v1268 = vunpack.c.h.b16 %v351
    %v1269 = vunpack.c.l.b16 %v352
    %v1270 = vunpack.c.h.b16 %v352
    %v1271 = vunpack.c.l.b16 %v353
    %v1272 = vunpack.c.h.b16 %v353
    %v1273 = vunpack.c.l.b16 %v354
    %v1274 = vunpack.c.h.b16 %v354
    %v1275 = vunpack.c.l.b16 %v355
    %v1276 = vunpack.c.h.b16 %v355
    %v1277 = vunpack.c.l.b16 %v356
    %v1278 = vunpack.c.h.b16 %v356
    %v1279 = vunpack.c.l.b16 %v357
    %v1280 = vunpack.c.h.b16 %v357
    %v1281 = vunpack.c.l.b16 %v358
    %v1282 = vunpack.c.h.b16 %v358
    %v1283 = vunpack.c.l.b16 %v359
    %v1284 = vunpack.c.h.b16 %v359
    %v1285 = vunpack.c.l.b16 %v360
    %v1286 = vunpack.c.h.b16 %v360
    %v1287 = vunpack.c.l.b16 %v361
    %v1288 = vunpack.c.h.b16 %v361
    %v1289 = vunpack.c.l.b16 %v362
    %v1290 = vunpack.c.h.b16 %v362
    %v1291 = vunpack.c.l.b16 %v363
    %v1292 = vunpack.c.h.b16 %v363
    %v1293 = vunpack.c.l.b16 %v364
    %v1294 = vunpack.c.h.b16 %v364
    %v1295 = vunpack.c.l.b16 %v365
    %v1296 = vunpack.c.h.b16 %v365
    %v1297 = vunpack.c.l.b16 %v366
    %v1298 = vunpack.c.h.b16 %v366
    %v1299 = vunpack.c.l.b16 %v367
    %v1300 = vunpack.c.h.b16 %v367
    %v1301 = vunpack.c.l.b16 %v368
    %v1302 = vunpack.c.h.b16 %v368
    %v1303 = vunpack.c.l.b16 %v369
    %v1304 = vunpack.c.h.b16 %v369
    %v1305 = vunpack.c.l.b16 %v370
    %v1306 = vunpack.c.h.b16 %v370
    %v1307 = vunpack.c.l.b16 %v371
    %v1308 = vunpack.c.h.b16 %v371
    %v1309 = vunpack.c.l.b16 %v372
    %v1310 = vunpack.c.h.b16 %v372
    %v1311 = vunpack.c.l.b16 %v373
    %v1312 = vunpack.c.h.b16 %v373
    %v1313 = vunpack.c.l.b16 %v374
    %v1314 = vunpack.c.h.b16 %v374
    %v1315 = vunpack.c.l.b16 %v375
    %v1316 = vunpack.c.h.b16 %v375
    %v1317 = vunpack.c.l.b16 %v376
    %v1318 = vunpack.c.h.b16 %v376
    %v1319 = vunpack.c.l.b16 %v377
    %v1320 = vunpack.c.h.b16 %v377
    %v1321 = vunpack.c.l.b16 %v378
    %v1322 = vunpack.c.h.b16 %v378
    %v1323 = vunpack.c.l.b16 %v379
    %v1324 = vunpack.c.h.b16 %v379
    %v1325 = vunpack.c.l.b16 %v380
    %v1326 = vunpack.c.h.b16 %v380
    %v1327 = vunpack.c.l.b16 %v381
    %v1328 = vunpack.c.h.b16 %v381
    %v1329 = vunpack.c.l.b16 %v382
    %v1330 = vunpack.c.h.b16 %v382
    %v1331 = vunpack.c.l.b16 %v383
    %v1332 = vunpack.c.h.b16 %v383
    %v1333 = vunpack.c.l.b16 %v384
    %v1334 = vunpack.c.h.b16 %v384
    %v1335 = vunpack.c.l.b16 %v385
    %v1336 = vunpack.c.h.b16 %v385
    %v1337 = vunpack.c.l.b16 %v386
    %v1338 = vunpack.c.h.b16 %v386
    %v1339 = vunpack.c.l.b16 %v387
    %v1340 = vunpack.c.h.b16 %v387
    %v1341 = vunpack.c.l.b16 %v388
    %v1342 = vunpack.c.h.b16 %v388
    %v1343 = vunpack.c.l.b16 %v389
    %v1344 = vunpack.c.h.b16 %v389
    %v1345 = vunpack.c.l.b16 %v390
    %v1346 = vunpack.c.h.b16 %v390
    %v1347 = vunpack.c.l.b16 %v391
    %v1348 = vunpack.c.h.b16 %v391
    %v1349 = vunpack.c.l.b16 %v392
    %v1350 = vunpack.c.h.b16 %v392
    %v1351 = vunpack.c.l.b16 %v393
    %v1352 = vunpack.c.h.b16 %v393
    %v1353 = vunpack.c.l.b16 %v394
    %v1354 = vunpack.c.h.b16 %v394
    %v1355 = vunpack.c.l.b16 %v395
    %v1356 = vunpack.c.h.b16 %v395
    %v1357 = vunpack.c.l.b16 %v396
    %v1358 = vunpack.c.h.b16 %v396
    %v1359 = vunpack.c.l.b16 %v397
    %v1360 = vunpack.c.h.b16 %v397
    %v1361 = vunpack.c.l.b16 %v398
    %v1362 = vunpack.c.h.b16 %v398
    %v1363 = vunpack.c.l.b16 %v399
    %v1364 = vunpack.c.h.b16 %v399
    %v1365 = vunpack.c.l.b16 %v400
    %v1366 = vunpack.c.h.b16 %v400
    %v1367 = vunpack.c.l.b16 %v401
    %v1368 = vunpack.c.h.b16 %v401
    %v1369 = vunpack.c.l.b16 %v402
    %v1370 = vunpack.c.h.b16 %v402
    %v1371 = vunpack.c.l.b16 %v403
    %v1372 = vunpack.c.h.b16 %v403
    %v1373 = vunpack.c.l.b16 %v404
    %v1374 = vunpack.c.h.b16 %v404
    %v1375 = vpack.c.b16 %v931, %v927
    %v1376 = vpack.c.b16 %v932, %v928
    %v1377 = vpack.c.b16 %v933, %v929
    %v1378 = vpack.c.b16 %v934, %v930
    %v1379 = vpack.c.b16 %v939, %v935
    %v1380 = vpack.c.b16 %v940, %v936
    %v1381 = vpack.c.b16 %v941, %v937
    %v1382 = vpack.c.b16 %v942, %v938
    %v1383 = vpack.c.b16 %v947, %v943
    %v1384 = vpack.c.b16 %v948, %v944
    %v1385 = vpack.c.b16 %v949, %v945
    %v1386 = vpack.c.b16 %v950, %v946
    %v1387 = vpack.c.b16 %v955, %v951
    %v1388 = vpack.c.b16 %v956, %v952
    %v1389 = vpack.c.b16 %v957, %v953
    %v1390 = vpack.c.b16 %v958, %v954
    %v1391 = vpack.c.b16 %v963, %v959
    %v1392 = vpack.c.b16 %v964, %v960
    %v1393 = vpack.c.b16 %v965, %v961
    %v1394 = vpack.c.b16 %v966, %v962
    %v1395 = vpack.c.b16 %v971, %v967
    %v1396 = vpack.c.b16 %v972, %v968
    %v1397 = vpack.c.b16 %v973, %v969
    %v1398 = vpack.c.b16 %v974, %v970
    %v1399 = vpack.c.b16 %v979, %v975
    %v1400 = vpack.c.b16 %v980, %v976
    %v1401 = vpack.c.b16 %v981, %v977
    %v1402 = vpack.c.b16 %v982, %v978
    %v1403 = vpack.c.b16 %v987, %v983
    %v1404 = vpack.c.b16 %v988, %v984
    %v1405 = vpack.c.b16 %v989, %v985
    %v1406 = vpack.c.b16 %v990, %v986
    %v1407 = vpack.c.b16 %v995, %v991
    %v1408 = vpack.c.b16 %v996, %v992
    %v1409 = vpack.c.b16 %v997, %v993
    %v1410 = vpack.c.b16 %v998, %v994
    %v1411 = vpack.c.b16 %v1003, %v999
    %v1412 = vpack.c.b16 %v1004, %v1000
    %v1413 = vpack.c.b16 %v1005, %v1001
    %v1414 = vpack.c.b16 %v1006, %v1002
    %v1415 = vpack.c.b16 %v1011, %v1007
    %v1416 = vpack.c.b16 %v1012, %v1008
    %v1417 = vpack.c.b16 %v1013, %v1009
    %v1418 = vpack.c.b16 %v1014, %v1010
    %v1419 = vpack.c.b16 %v1019, %v1015
    %v1420 = vpack.c.b16 %v1020, %v1016
    %v1421 = vpack.c.b16 %v1021, %v1017
    %v1422 = vpack.c.b16 %v1022, %v1018
    %v1423 = vpack.c.b16 %v1027, %v1023
    %v1424 = vpack.c.b16 %v1028, %v1024
    %v1425 = vpack.c.b16 %v1029, %v1025
    %v1426 = vpack.c.b16 %v1030, %v1026
    %v1427 = vpack.c.b16 %v1035, %v1031
    %v1428 = vpack.c.b16 %v1036, %v1032
    %v1429 = vpack.c.b16 %v1037, %v1033
    %v1430 = vpack.c.b16 %v1038, %v1034
    %v1431 = vpack.c.b16 %v1043, %v1039
    %v1432 = vpack.c.b16 %v1044, %v1040
    %v1433 = vpack.c.b16 %v1045, %v1041
    %v1434 = vpack.c.b16 %v1046, %v1042
    %v1435 = vpack.c.b16 %v1051, %v1047
    %v1436 = vpack.c.b16 %v1052, %v1048
    %v1437 = vpack.c.b16 %v1053, %v1049
    %v1438 = vpack.c.b16 %v1054, %v1050
    %v1439 = vpack.c.b16 %v1059, %v1055
    %v1440 = vpack.c.b16 %v1060, %v1056
    %v1441 = vpack.c.b16 %v1061, %v1057
    %v1442 = vpack.c.b16 %v1062, %v1058
    %v1443 = vpack.c.b16 %v1067, %v1063
    %v1444 = vpack.c.b16 %v1068, %v1064
    %v1445 = vpack.c.b16 %v1069, %v1065
    %v1446 = vpack.c.b16 %v1070, %v1066
    %v1447 = vpack.c.b16 %v1075, %v1071
    %v1448 = vpack.c.b16 %v1076, %v1072
    %v1449 = vpack.c.b16 %v1077, %v1073
    %v1450 = vpack.c.b16 %v1078, %v1074
    %v1451 = vpack.c.b16 %v1083, %v1079
    %v1452 = vpack.c.b16 %v1084, %v1080
    %v1453 = vpack.c.b16 %v1085, %v1081
    %v1454 = vpack.c.b16 %v1086, %v1082
    %v1455 = vpack.c.b16 %v1091, %v1087
    %v1456 = vpack.c.b16 %v1092, %v1088
    %v1457 = vpack.c.b16 %v1093, %v1089
    %v1458 = vpack.c.b16 %v1094, %v1090
    %v1459 = vpack.c.b16 %v1099, %v1095
    %v1460 = vpack.c.b16 %v1100, %v1096
    %v1461 = vpack.c.b16 %v1101, %v1097
    %v1462 = vpack.c.b16 %v1102, %v1098
    %v1463 = vpack.c.b16 %v1107, %v1103
    %v1464 = vpack.c.b16 %v1108, %v1104
    %v1465 = vpack.c.b16 %v1109, %v1105
    %v1466 = vpack.c.b16 %v1110, %v1106
    %v1467 = vpack.c.b16 %v1115, %v1111
    %v1468 = vpack.c.b16 %v1116, %v1112
    %v1469 = vpack.c.b16 %v1117, %v1113
    %v1470 = vpack.c.b16 %v1118, %v1114
    %v1471 = vpack.c.b16 %v1123, %v1119
    %v1472 = vpack.c.b16 %v1124, %v1120
    %v1473 = vpack.c.b16 %v1125, %v1121
    %v1474 = vpack.c.b16 %v1126, %v1122
    %v1475 = vpack.c.b16 %v1131, %v1127
    %v1476 = vpack.c.b16 %v1132, %v1128
    %v1477 = vpack.c.b16 %v1133, %v1129
    %v1478 = vpack.c.b16 %v1134, %v1130
    %v1479 = vpack.c.b16 %v1139, %v1135
    %v1480 = vpack.c.b16 %v1140, %v1136
    %v1481 = vpack.c.b16 %v1141, %v1137
    %v1482 = vpack.c.b16 %v1142, %v1138
    %v1483 = vpack.c.b16 %v1147, %v1143
    %v1484 = vpack.c.b16 %v1148, %v1144
    %v1485 = vpack.c.b16 %v1149, %v1145
    %v1486 = vpack.c.b16 %v1150, %v1146
    %v1487 = vpack.c.b16 %v1155, %v1151
    %v1488 = vpack.c.b16 %v1156, %v1152
    %v1489 = vpack.c.b16 %v1157, %v1153
    %v1490 = vpack.c.b16 %v1158, %v1154
    %v1491 = vpack.c.b16 %v1163, %v1159
    %v1492 = vpack.c.b16 %v1164, %v1160
    %v1493 = vpack.c.b16 %v1165, %v1161
    %v1494 = vpack.c.b16 %v1166, %v1162
    %v1495 = vpack.c.b16 %v1171, %v1167
    %v1496 = vpack.c.b16 %v1172, %v1168
    %v1497 = vpack.c.b16 %v1173, %v1169
    %v1498 = vpack.c.b16 %v1174, %v1170
    %v1499 = vpack.c.b16 %v1179, %v1175
    %v1500 = vpack.c.b16 %v1180, %v1176
    %v1501 = vpack.c.b16 %v1181, %v1177
    %v1502 = vpack.c.b16 %v1182, %v1178
    %v1503 = vpack.c.b16 %v1187, %v1183
    %v1504 = vpack.c.b16 %v1188, %v1184
    %v1505 = vpack.c.b16 %v1189, %v1185
    %v1506 = vpack.c.b16 %v1190, %v1186
    %v1507 = vpack.c.b16 %v1195, %v1191
    %v1508 = vpack.c.b16 %v1196, %v1192
    %v1509 = vpack.c.b16 %v1197, %v1193
    %v1510 = vpack.c.b16 %v1198, %v1194
    %v1511 = vpack.c.b16 %v1203, %v1199
    %v1512 = vpack.c.b16 %v1204, %v1200
    %v1513 = vpack.c.b16 %v1205, %v1201
    %v1514 = vpack.c.b16 %v1206, %v1202
    %v1515 = vpack.c.b16 %v1211, %v1207
    %v1516 = vpack.c.b16 %v1212, %v1208
    %v1517 = vpack.c.b16 %v1213, %v1209
    %v1518 = vpack.c.b16 %v1214, %v1210
    %v1519 = vpack.c.b16 %v1219, %v1215
    %v1520 = vpack.c.b16 %v1220, %v1216
    %v1521 = vpack.c.b16 %v1221, %v1217
    %v1522 = vpack.c.b16 %v1222, %v1218
    %v1523 = vpack.c.b16 %v1227, %v1223
    %v1524 = vpack.c.b16 %v1228, %v1224
    %v1525 = vpack.c.b16 %v1229, %v1225
    %v1526 = vpack.c.b16 %v1230, %v1226
    %v1527 = vpack.c.b16 %v1235, %v1231
    %v1528 = vpack.c.b16 %v1236, %v1232
    %v1529 = vpack.c.b16 %v1237, %v1233
    %v1530 = vpack.c.b16 %v1238, %v1234
    %v1531 = vpack.c.b16 %v1243, %v1239
    %v1532 = vpack.c.b16 %v1244, %v1240
    %v1533 = vpack.c.b16 %v1245, %v1241
    %v1534 = vpack.c.b16 %v1246, %v1242
    %v1535 = vpack.c.b16 %v1251, %v1247
    %v1536 = vpack.c.b16 %v1252, %v1248
    %v1537 = vpack.c.b16 %v1253, %v1249
    %v1538 = vpack.c.b16 %v1254, %v1250
    %v1539 = vpack.c.b16 %v1259, %v1255
    %v1540 = vpack.c.b16 %v1260, %v1256
    %v1541 = vpack.c.b16 %v1261, %v1257
    %v1542 = vpack.c.b16 %v1262, %v1258
    %v1543 = vpack.c.b16 %v1267, %v1263
    %v1544 = vpack.c.b16 %v1268, %v1264
    %v1545 = vpack.c.b16 %v1269, %v1265
    %v1546 = vpack.c.b16 %v1270, %v1266
    %v1547 = vpack.c.b16 %v1275, %v1271
    %v1548 = vpack.c.b16 %v1276, %v1272
    %v1549 = vpack.c.b16 %v1277, %v1273
    %v1550 = vpack.c.b16 %v1278, %v1274
    %v1551 = vpack.c.b16 %v1283, %v1279
    %v1552 = vpack.c.b16 %v1284, %v1280
    %v1553 = vpack.c.b16 %v1285, %v1281
    %v1554 = vpack.c.b16 %v1286, %v1282
    %v1555 = vpack.c.b16 %v1291, %v1287
    %v1556 = vpack.c.b16 %v1292, %v1288
    %v1557 = vpack.c.b16 %v1293, %v1289
    %v1558 = vpack.c.b16 %v1294, %v1290
    %v1559 = vpack.c.b16 %v1299, %v1295
    %v1560 = vpack.c.b16 %v1300, %v1296
    %v1561 = vpack.c.b16 %v1301, %v1297
    %v1562 = vpack.c.b16 %v1302, %v1298
    %v1563 = vpack.c.b16 %v1307, %v1303
    %v1564 = vpack.c.b16 %v1308, %v1304
    %v1565 = vpack.c.b16 %v1309, %v1305
    %v1566 = vpack.c.b16 %v1310, %v1306
    %v1567 = vpack.c.b16 %v1315, %v1311
    %v1568 = vpack.c.b16 %v1316, %v1312
    %v1569 = vpack.c.b16 %v1317, %v1313
    %v1570 = vpack.c.b16 %v1318, %v1314
    %v1571 = vpack.c.b16 %v1323, %v1319
    %v1572 = vpack.c.b16 %v1324, %v1320
    %v1573 = vpack.c.b16 %v1325, %v1321
    %v1574 = vpack.c.b16 %v1326, %v1322
    %v1575 = vpack.c.b16 %v1331, %v1327
    %v1576 = vpack.c.b16 %v1332, %v1328
    %v1577 = vpack.c.b16 %v1333, %v1329
    %v1578 = vpack.c.b16 %v1334, %v1330
    %v1579 = vpack.c.b16 %v1339, %v1335
    %v1580 = vpack.c.b16 %v1340, %v1336
    %v1581 = vpack.c.b16 %v1341, %v1337
    %v1582 = vpack.c.b16 %v1342, %v1338
    %v1583 = vpack.c.b16 %v1347, %v1343
    %v1584 = vpack.c.b16 %v1348, %v1344
    %v1585 = vpack.c.b16 %v1349, %v1345
    %v1586 = vpack.c.b16 %v1350, %v1346
    %v1587 = vpack.c.b16 %v1355, %v1351
    %v1588 = vpack.c.b16 %v1356, %v1352
    %v1589 = vpack.c.b16 %v1357, %v1353
    %v1590 = vpack.c.b16 %v1358, %v1354
    %v1591 = vpack.c.b16 %v1363, %v1359
    %v1592 = vpack.c.b16 %v1364, %v1360
    %v1593 = vpack.c.b16 %v1365, %v1361
    %v1594 = vpack.c.b16 %v1366, %v1362
    %v1595 = vpack.c.b16 %v1371, %v1367
    %v1596 = vpack.c.b16 %v1372, %v1368
    %v1597 = vpack.c.b16 %v1373, %v1369
    %v1598 = vpack.c.b16 %v1374, %v1370
    %1823 = vmatpush.bf16.msra.mxu0 %v1403
    %1824 = vmatpush.bf16.msra.mxu0 %v1399
    %1825 = vmatpush.bf16.msra.mxu0 %v1395
    %1826 = vmatpush.bf16.msra.mxu0 %v1391
    %1827 = vmatpush.bf16.msra.mxu0 %v1387
    %1828 = vmatpush.bf16.msra.mxu0 %v1383
    %1829 = vmatpush.bf16.msra.mxu0 %v1379
    %1830 = vmatpush.bf16.msra.mxu0 %v1375
    %1831 = vmatmul.bf16.gmra.mxu0 %v591
    %v1832 = vpop.f32.mrf.mxu0
    %v1833 = vadd.f32 %v407, %v1832
    %v1834 = vpop.f32.mrf.mxu0
    %v1835 = vadd.f32 %v407, %v1834
    %1836 = vmatmul.bf16.gmra.mxu0 %v598
    %v1837 = vpop.f32.mrf.mxu0
    %v1838 = vadd.f32 %v407, %v1837
    %v1839 = vpop.f32.mrf.mxu0
    %v1840 = vadd.f32 %v407, %v1839
    %1841 = vmatmul.bf16.gmra.mxu0 %v605
    %v1842 = vpop.f32.mrf.mxu0
    %v1843 = vadd.f32 %v407, %v1842
    %v1844 = vpop.f32.mrf.mxu0
    %v1845 = vadd.f32 %v407, %v1844
    %1846 = vmatmul.bf16.gmra.mxu0 %v612
    %v1847 = vpop.f32.mrf.mxu0
    %v1848 = vadd.f32 %v407, %v1847
    %v1849 = vpop.f32.mrf.mxu0
    %v1850 = vadd.f32 %v407, %v1849
    %1851 = vmatmul.bf16.gmra.mxu0 %v619
    %v1852 = vpop.f32.mrf.mxu0
    %v1853 = vadd.f32 %v407, %v1852
    %v1854 = vpop.f32.mrf.mxu0
    %v1855 = vadd.f32 %v407, %v1854
    %1856 = vmatmul.bf16.gmra.mxu0 %v626
    %v1857 = vpop.f32.mrf.mxu0
    %v1858 = vadd.f32 %v407, %v1857
    %v1859 = vpop.f32.mrf.mxu0
    %v1860 = vadd.f32 %v407, %v1859
    %1861 = vmatmul.bf16.gmra.mxu0 %v633
    %v1862 = vpop.f32.mrf.mxu0
    %v1863 = vadd.f32 %v407, %v1862
    %v1864 = vpop.f32.mrf.mxu0
    %v1865 = vadd.f32 %v407, %v1864
    %1866 = vmatmul.bf16.gmra.mxu0 %v640
    %v1867 = vpop.f32.mrf.mxu0
    %v1868 = vadd.f32 %v407, %v1867
    %v1869 = vpop.f32.mrf.mxu0
    %v1870 = vadd.f32 %v407, %v1869
    %1871 = vdwg.mxu0
    %1872 = vmatpush.bf16.msra.mxu0 %v1435
    %1873 = vmatpush.bf16.msra.mxu0 %v1431
    %1874 = vmatpush.bf16.msra.mxu0 %v1427
    %1875 = vmatpush.bf16.msra.mxu0 %v1423
    %1876 = vmatpush.bf16.msra.mxu0 %v1419
    %1877 = vmatpush.bf16.msra.mxu0 %v1415
    %1878 = vmatpush.bf16.msra.mxu0 %v1411
    %1879 = vmatpush.bf16.msra.mxu0 %v1407
    %1880 = vmatmul.bf16.gmra.mxu0 %v592
    %v1881 = vpop.f32.mrf.mxu0
    %v1882 = vadd.f32 %v1833, %v1881
    %v1883 = vpop.f32.mrf.mxu0
    %v1884 = vadd.f32 %v1835, %v1883
    %1885 = vmatmul.bf16.gmra.mxu0 %v599
    %v1886 = vpop.f32.mrf.mxu0
    %v1887 = vadd.f32 %v1838, %v1886
    %v1888 = vpop.f32.mrf.mxu0
    %v1889 = vadd.f32 %v1840, %v1888
    %1890 = vmatmul.bf16.gmra.mxu0 %v606
    %v1891 = vpop.f32.mrf.mxu0
    %v1892 = vadd.f32 %v1843, %v1891
    %v1893 = vpop.f32.mrf.mxu0
    %v1894 = vadd.f32 %v1845, %v1893
    %1895 = vmatmul.bf16.gmra.mxu0 %v613
    %v1896 = vpop.f32.mrf.mxu0
    %v1897 = vadd.f32 %v1848, %v1896
    %v1898 = vpop.f32.mrf.mxu0
    %v1899 = vadd.f32 %v1850, %v1898
    %1900 = vmatmul.bf16.gmra.mxu0 %v620
    %v1901 = vpop.f32.mrf.mxu0
    %v1902 = vadd.f32 %v1853, %v1901
    %v1903 = vpop.f32.mrf.mxu0
    %v1904 = vadd.f32 %v1855, %v1903
    %1905 = vmatmul.bf16.gmra.mxu0 %v627
    %v1906 = vpop.f32.mrf.mxu0
    %v1907 = vadd.f32 %v1858, %v1906
    %v1908 = vpop.f32.mrf.mxu0
    %v1909 = vadd.f32 %v1860, %v1908
    %1910 = vmatmul.bf16.gmra.mxu0 %v634
    %v1911 = vpop.f32.mrf.mxu0
    %v1912 = vadd.f32 %v1863, %v1911
    %v1913 = vpop.f32.mrf.mxu0
    %v1914 = vadd.f32 %v1865, %v1913
    %1915 = vmatmul.bf16.gmra.mxu0 %v641
    %v1916 = vpop.f32.mrf.mxu0
    %v1917 = vadd.f32 %v1868, %v1916
    %v1918 = vpop.f32.mrf.mxu0
    %v1919 = vadd.f32 %v1870, %v1918
    %1920 = vdwg.mxu0
    %1921 = vmatpush.bf16.msra.mxu0 %v1467
    %1922 = vmatpush.bf16.msra.mxu0 %v1463
    %1923 = vmatpush.bf16.msra.mxu0 %v1459
    %1924 = vmatpush.bf16.msra.mxu0 %v1455
    %1925 = vmatpush.bf16.msra.mxu0 %v1451
    %1926 = vmatpush.bf16.msra.mxu0 %v1447
    %1927 = vmatpush.bf16.msra.mxu0 %v1443
    %1928 = vmatpush.bf16.msra.mxu0 %v1439
    %1929 = vmatmul.bf16.gmra.mxu0 %v593
    %v1930 = vpop.f32.mrf.mxu0
    %v1931 = vadd.f32 %v1882, %v1930
    %v1932 = vpop.f32.mrf.mxu0
    %v1933 = vadd.f32 %v1884, %v1932
    %1934 = vmatmul.bf16.gmra.mxu0 %v600
    %v1935 = vpop.f32.mrf.mxu0
    %v1936 = vadd.f32 %v1887, %v1935
    %v1937 = vpop.f32.mrf.mxu0
    %v1938 = vadd.f32 %v1889, %v1937
    %1939 = vmatmul.bf16.gmra.mxu0 %v607
    %v1940 = vpop.f32.mrf.mxu0
    %v1941 = vadd.f32 %v1892, %v1940
    %v1942 = vpop.f32.mrf.mxu0
    %v1943 = vadd.f32 %v1894, %v1942
    %1944 = vmatmul.bf16.gmra.mxu0 %v614
    %v1945 = vpop.f32.mrf.mxu0
    %v1946 = vadd.f32 %v1897, %v1945
    %v1947 = vpop.f32.mrf.mxu0
    %v1948 = vadd.f32 %v1899, %v1947
    %1949 = vmatmul.bf16.gmra.mxu0 %v621
    %v1950 = vpop.f32.mrf.mxu0
    %v1951 = vadd.f32 %v1902, %v1950
    %v1952 = vpop.f32.mrf.mxu0
    %v1953 = vadd.f32 %v1904, %v1952
    %1954 = vmatmul.bf16.gmra.mxu0 %v628
    %v1955 = vpop.f32.mrf.mxu0
    %v1956 = vadd.f32 %v1907, %v1955
    %v1957 = vpop.f32.mrf.mxu0
    %v1958 = vadd.f32 %v1909, %v1957
    %1959 = vmatmul.bf16.gmra.mxu0 %v635
    %v1960 = vpop.f32.mrf.mxu0
    %v1961 = vadd.f32 %v1912, %v1960
    %v1962 = vpop.f32.mrf.mxu0
    %v1963 = vadd.f32 %v1914, %v1962
    %1964 = vmatmul.bf16.gmra.mxu0 %v642
    %v1965 = vpop.f32.mrf.mxu0
    %v1966 = vadd.f32 %v1917, %v1965
    %v1967 = vpop.f32.mrf.mxu0
    %v1968 = vadd.f32 %v1919, %v1967
    %1969 = vdwg.mxu0
    %1970 = vmatpush.bf16.msra.mxu0 %v1499
    %1971 = vmatpush.bf16.msra.mxu0 %v1495
    %1972 = vmatpush.bf16.msra.mxu0 %v1491
    %1973 = vmatpush.bf16.msra.mxu0 %v1487
    %1974 = vmatpush.bf16.msra.mxu0 %v1483
    %1975 = vmatpush.bf16.msra.mxu0 %v1479
    %1976 = vmatpush.bf16.msra.mxu0 %v1475
    %1977 = vmatpush.bf16.msra.mxu0 %v1471
    %1978 = vmatmul.bf16.gmra.mxu0 %v594
    %v1979 = vpop.f32.mrf.mxu0
    %v1980 = vadd.f32 %v1931, %v1979
    %v1981 = vpop.f32.mrf.mxu0
    %v1982 = vadd.f32 %v1933, %v1981
    %1983 = vmatmul.bf16.gmra.mxu0 %v601
    %v1984 = vpop.f32.mrf.mxu0
    %v1985 = vadd.f32 %v1936, %v1984
    %v1986 = vpop.f32.mrf.mxu0
    %v1987 = vadd.f32 %v1938, %v1986
    %1988 = vmatmul.bf16.gmra.mxu0 %v608
    %v1989 = vpop.f32.mrf.mxu0
    %v1990 = vadd.f32 %v1941, %v1989
    %v1991 = vpop.f32.mrf.mxu0
    %v1992 = vadd.f32 %v1943, %v1991
    %1993 = vmatmul.bf16.gmra.mxu0 %v615
    %v1994 = vpop.f32.mrf.mxu0
    %v1995 = vadd.f32 %v1946, %v1994
    %v1996 = vpop.f32.mrf.mxu0
    %v1997 = vadd.f32 %v1948, %v1996
    %1998 = vmatmul.bf16.gmra.mxu0 %v622
    %v1999 = vpop.f32.mrf.mxu0
    %v2000 = vadd.f32 %v1951, %v1999
    %v2001 = vpop.f32.mrf.mxu0
    %v2002 = vadd.f32 %v1953, %v2001
    %2003 = vmatmul.bf16.gmra.mxu0 %v629
    %v2004 = vpop.f32.mrf.mxu0
    %v2005 = vadd.f32 %v1956, %v2004
    %v2006 = vpop.f32.mrf.mxu0
    %v2007 = vadd.f32 %v1958, %v2006
    %2008 = vmatmul.bf16.gmra.mxu0 %v636
    %v2009 = vpop.f32.mrf.mxu0
    %v2010 = vadd.f32 %v1961, %v2009
    %v2011 = vpop.f32.mrf.mxu0
    %v2012 = vadd.f32 %v1963, %v2011
    %2013 = vmatmul.bf16.gmra.mxu0 %v643
    %v2014 = vpop.f32.mrf.mxu0
    %v2015 = vadd.f32 %v1966, %v2014
    %v2016 = vpop.f32.mrf.mxu0
    %v2017 = vadd.f32 %v1968, %v2016
    %2018 = vdwg.mxu0
    %2019 = vmatpush.bf16.msra.mxu0 %v1531
    %2020 = vmatpush.bf16.msra.mxu0 %v1527
    %2021 = vmatpush.bf16.msra.mxu0 %v1523
    %2022 = vmatpush.bf16.msra.mxu0 %v1519
    %2023 = vmatpush.bf16.msra.mxu0 %v1515
    %2024 = vmatpush.bf16.msra.mxu0 %v1511
    %2025 = vmatpush.bf16.msra.mxu0 %v1507
    %2026 = vmatpush.bf16.msra.mxu0 %v1503
    %2027 = vmatmul.bf16.gmra.mxu0 %v595
    %v2028 = vpop.f32.mrf.mxu0
    %v2029 = vadd.f32 %v1980, %v2028
    %v2030 = vpop.f32.mrf.mxu0
    %v2031 = vadd.f32 %v1982, %v2030
    %2032 = vmatmul.bf16.gmra.mxu0 %v602
    %v2033 = vpop.f32.mrf.mxu0
    %v2034 = vadd.f32 %v1985, %v2033
    %v2035 = vpop.f32.mrf.mxu0
    %v2036 = vadd.f32 %v1987, %v2035
    %2037 = vmatmul.bf16.gmra.mxu0 %v609
    %v2038 = vpop.f32.mrf.mxu0
    %v2039 = vadd.f32 %v1990, %v2038
    %v2040 = vpop.f32.mrf.mxu0
    %v2041 = vadd.f32 %v1992, %v2040
    %2042 = vmatmul.bf16.gmra.mxu0 %v616
    %v2043 = vpop.f32.mrf.mxu0
    %v2044 = vadd.f32 %v1995, %v2043
    %v2045 = vpop.f32.mrf.mxu0
    %v2046 = vadd.f32 %v1997, %v2045
    %2047 = vmatmul.bf16.gmra.mxu0 %v623
    %v2048 = vpop.f32.mrf.mxu0
    %v2049 = vadd.f32 %v2000, %v2048
    %v2050 = vpop.f32.mrf.mxu0
    %v2051 = vadd.f32 %v2002, %v2050
    %2052 = vmatmul.bf16.gmra.mxu0 %v630
    %v2053 = vpop.f32.mrf.mxu0
    %v2054 = vadd.f32 %v2005, %v2053
    %v2055 = vpop.f32.mrf.mxu0
    %v2056 = vadd.f32 %v2007, %v2055
    %2057 = vmatmul.bf16.gmra.mxu0 %v637
    %v2058 = vpop.f32.mrf.mxu0
    %v2059 = vadd.f32 %v2010, %v2058
    %v2060 = vpop.f32.mrf.mxu0
    %v2061 = vadd.f32 %v2012, %v2060
    %2062 = vmatmul.bf16.gmra.mxu0 %v644
    %v2063 = vpop.f32.mrf.mxu0
    %v2064 = vadd.f32 %v2015, %v2063
    %v2065 = vpop.f32.mrf.mxu0
    %v2066 = vadd.f32 %v2017, %v2065
    %2067 = vdwg.mxu0
    %2068 = vmatpush.bf16.msra.mxu0 %v1563
    %2069 = vmatpush.bf16.msra.mxu0 %v1559
    %2070 = vmatpush.bf16.msra.mxu0 %v1555
    %2071 = vmatpush.bf16.msra.mxu0 %v1551
    %2072 = vmatpush.bf16.msra.mxu0 %v1547
    %2073 = vmatpush.bf16.msra.mxu0 %v1543
    %2074 = vmatpush.bf16.msra.mxu0 %v1539
    %2075 = vmatpush.bf16.msra.mxu0 %v1535
    %2076 = vmatmul.bf16.gmra.mxu0 %v596
    %v2077 = vpop.f32.mrf.mxu0
    %v2078 = vadd.f32 %v2029, %v2077
    %v2079 = vpop.f32.mrf.mxu0
    %v2080 = vadd.f32 %v2031, %v2079
    %2081 = vmatmul.bf16.gmra.mxu0 %v603
    %v2082 = vpop.f32.mrf.mxu0
    %v2083 = vadd.f32 %v2034, %v2082
    %v2084 = vpop.f32.mrf.mxu0
    %v2085 = vadd.f32 %v2036, %v2084
    %2086 = vmatmul.bf16.gmra.mxu0 %v610
    %v2087 = vpop.f32.mrf.mxu0
    %v2088 = vadd.f32 %v2039, %v2087
    %v2089 = vpop.f32.mrf.mxu0
    %v2090 = vadd.f32 %v2041, %v2089
    %2091 = vmatmul.bf16.gmra.mxu0 %v617
    %v2092 = vpop.f32.mrf.mxu0
    %v2093 = vadd.f32 %v2044, %v2092
    %v2094 = vpop.f32.mrf.mxu0
    %v2095 = vadd.f32 %v2046, %v2094
    %2096 = vmatmul.bf16.gmra.mxu0 %v624
    %v2097 = vpop.f32.mrf.mxu0
    %v2098 = vadd.f32 %v2049, %v2097
    %v2099 = vpop.f32.mrf.mxu0
    %v2100 = vadd.f32 %v2051, %v2099
    %2101 = vmatmul.bf16.gmra.mxu0 %v631
    %v2102 = vpop.f32.mrf.mxu0
    %v2103 = vadd.f32 %v2054, %v2102
    %v2104 = vpop.f32.mrf.mxu0
    %v2105 = vadd.f32 %v2056, %v2104
    %2106 = vmatmul.bf16.gmra.mxu0 %v638
    %v2107 = vpop.f32.mrf.mxu0
    %v2108 = vadd.f32 %v2059, %v2107
    %v2109 = vpop.f32.mrf.mxu0
    %v2110 = vadd.f32 %v2061, %v2109
    %2111 = vmatmul.bf16.gmra.mxu0 %v645
    %v2112 = vpop.f32.mrf.mxu0
    %v2113 = vadd.f32 %v2064, %v2112
    %v2114 = vpop.f32.mrf.mxu0
    %v2115 = vadd.f32 %v2066, %v2114
    %2116 = vdwg.mxu0
    %2117 = vmatpush.bf16.msra.mxu0 %v1595
    %2118 = vmatpush.bf16.msra.mxu0 %v1591
    %2119 = vmatpush.bf16.msra.mxu0 %v1587
    %2120 = vmatpush.bf16.msra.mxu0 %v1583
    %2121 = vmatpush.bf16.msra.mxu0 %v1579
    %2122 = vmatpush.bf16.msra.mxu0 %v1575
    %2123 = vmatpush.bf16.msra.mxu0 %v1571
    %2124 = vmatpush.bf16.msra.mxu0 %v1567
    %2125 = vmatmul.bf16.gmra.mxu0 %v597
    %v2126 = vpop.f32.mrf.mxu0
    %v2127 = vadd.f32 %v2078, %v2126
    %v2128 = vpop.f32.mrf.mxu0
    %v2129 = vadd.f32 %v2080, %v2128
    %2130 = vmatmul.bf16.gmra.mxu0 %v604
    %v2131 = vpop.f32.mrf.mxu0
    %v2132 = vadd.f32 %v2083, %v2131
    %v2133 = vpop.f32.mrf.mxu0
    %v2134 = vadd.f32 %v2085, %v2133
    %2135 = vmatmul.bf16.gmra.mxu0 %v611
    %v2136 = vpop.f32.mrf.mxu0
    %v2137 = vadd.f32 %v2088, %v2136
    %v2138 = vpop.f32.mrf.mxu0
    %v2139 = vadd.f32 %v2090, %v2138
    %2140 = vmatmul.bf16.gmra.mxu0 %v618
    %v2141 = vpop.f32.mrf.mxu0
    %v2142 = vadd.f32 %v2093, %v2141
    %v2143 = vpop.f32.mrf.mxu0
    %v2144 = vadd.f32 %v2095, %v2143
    %2145 = vmatmul.bf16.gmra.mxu0 %v625
    %v2146 = vpop.f32.mrf.mxu0
    %v2147 = vadd.f32 %v2098, %v2146
    %v2148 = vpop.f32.mrf.mxu0
    %v2149 = vadd.f32 %v2100, %v2148
    %2150 = vmatmul.bf16.gmra.mxu0 %v632
    %v2151 = vpop.f32.mrf.mxu0
    %v2152 = vadd.f32 %v2103, %v2151
    %v2153 = vpop.f32.mrf.mxu0
    %v2154 = vadd.f32 %v2105, %v2153
    %2155 = vmatmul.bf16.gmra.mxu0 %v639
    %v2156 = vpop.f32.mrf.mxu0
    %v2157 = vadd.f32 %v2108, %v2156
    %v2158 = vpop.f32.mrf.mxu0
    %v2159 = vadd.f32 %v2110, %v2158
    %2160 = vmatmul.bf16.gmra.mxu0 %v646
    %v2161 = vpop.f32.mrf.mxu0
    %v2162 = vadd.f32 %v2113, %v2161
    %v2163 = vpop.f32.mrf.mxu0
    %v2164 = vadd.f32 %v2115, %v2163
    %2165 = vdwg.mxu0
    %2166 = vmatpush.bf16.msra.mxu0 %v1404
    %2167 = vmatpush.bf16.msra.mxu0 %v1400
    %2168 = vmatpush.bf16.msra.mxu0 %v1396
    %2169 = vmatpush.bf16.msra.mxu0 %v1392
    %2170 = vmatpush.bf16.msra.mxu0 %v1388
    %2171 = vmatpush.bf16.msra.mxu0 %v1384
    %2172 = vmatpush.bf16.msra.mxu0 %v1380
    %2173 = vmatpush.bf16.msra.mxu0 %v1376
    %2174 = vmatmul.bf16.gmra.mxu0 %v591
    %v2175 = vpop.f32.mrf.mxu0
    %v2176 = vadd.f32 %v408, %v2175
    %v2177 = vpop.f32.mrf.mxu0
    %v2178 = vadd.f32 %v408, %v2177
    %2179 = vmatmul.bf16.gmra.mxu0 %v598
    %v2180 = vpop.f32.mrf.mxu0
    %v2181 = vadd.f32 %v408, %v2180
    %v2182 = vpop.f32.mrf.mxu0
    %v2183 = vadd.f32 %v408, %v2182
    %2184 = vmatmul.bf16.gmra.mxu0 %v605
    %v2185 = vpop.f32.mrf.mxu0
    %v2186 = vadd.f32 %v408, %v2185
    %v2187 = vpop.f32.mrf.mxu0
    %v2188 = vadd.f32 %v408, %v2187
    %2189 = vmatmul.bf16.gmra.mxu0 %v612
    %v2190 = vpop.f32.mrf.mxu0
    %v2191 = vadd.f32 %v408, %v2190
    %v2192 = vpop.f32.mrf.mxu0
    %v2193 = vadd.f32 %v408, %v2192
    %2194 = vmatmul.bf16.gmra.mxu0 %v619
    %v2195 = vpop.f32.mrf.mxu0
    %v2196 = vadd.f32 %v408, %v2195
    %v2197 = vpop.f32.mrf.mxu0
    %v2198 = vadd.f32 %v408, %v2197
    %2199 = vmatmul.bf16.gmra.mxu0 %v626
    %v2200 = vpop.f32.mrf.mxu0
    %v2201 = vadd.f32 %v408, %v2200
    %v2202 = vpop.f32.mrf.mxu0
    %v2203 = vadd.f32 %v408, %v2202
    %2204 = vmatmul.bf16.gmra.mxu0 %v633
    %v2205 = vpop.f32.mrf.mxu0
    %v2206 = vadd.f32 %v408, %v2205
    %v2207 = vpop.f32.mrf.mxu0
    %v2208 = vadd.f32 %v408, %v2207
    %2209 = vmatmul.bf16.gmra.mxu0 %v640
    %v2210 = vpop.f32.mrf.mxu0
    %v2211 = vadd.f32 %v408, %v2210
    %v2212 = vpop.f32.mrf.mxu0
    %v2213 = vadd.f32 %v408, %v2212
    %2214 = vdwg.mxu0
    %2215 = vmatpush.bf16.msra.mxu0 %v1436
    %2216 = vmatpush.bf16.msra.mxu0 %v1432
    %2217 = vmatpush.bf16.msra.mxu0 %v1428
    %2218 = vmatpush.bf16.msra.mxu0 %v1424
    %2219 = vmatpush.bf16.msra.mxu0 %v1420
    %2220 = vmatpush.bf16.msra.mxu0 %v1416
    %2221 = vmatpush.bf16.msra.mxu0 %v1412
    %2222 = vmatpush.bf16.msra.mxu0 %v1408
    %2223 = vmatmul.bf16.gmra.mxu0 %v592
    %v2224 = vpop.f32.mrf.mxu0
    %v2225 = vadd.f32 %v2176, %v2224
    %v2226 = vpop.f32.mrf.mxu0
    %v2227 = vadd.f32 %v2178, %v2226
    %2228 = vmatmul.bf16.gmra.mxu0 %v599
    %v2229 = vpop.f32.mrf.mxu0
    %v2230 = vadd.f32 %v2181, %v2229
    %v2231 = vpop.f32.mrf.mxu0
    %v2232 = vadd.f32 %v2183, %v2231
    %2233 = vmatmul.bf16.gmra.mxu0 %v606
    %v2234 = vpop.f32.mrf.mxu0
    %v2235 = vadd.f32 %v2186, %v2234
    %v2236 = vpop.f32.mrf.mxu0
    %v2237 = vadd.f32 %v2188, %v2236
    %2238 = vmatmul.bf16.gmra.mxu0 %v613
    %v2239 = vpop.f32.mrf.mxu0
    %v2240 = vadd.f32 %v2191, %v2239
    %v2241 = vpop.f32.mrf.mxu0
    %v2242 = vadd.f32 %v2193, %v2241
    %2243 = vmatmul.bf16.gmra.mxu0 %v620
    %v2244 = vpop.f32.mrf.mxu0
    %v2245 = vadd.f32 %v2196, %v2244
    %v2246 = vpop.f32.mrf.mxu0
    %v2247 = vadd.f32 %v2198, %v2246
    %2248 = vmatmul.bf16.gmra.mxu0 %v627
    %v2249 = vpop.f32.mrf.mxu0
    %v2250 = vadd.f32 %v2201, %v2249
    %v2251 = vpop.f32.mrf.mxu0
    %v2252 = vadd.f32 %v2203, %v2251
    %2253 = vmatmul.bf16.gmra.mxu0 %v634
    %v2254 = vpop.f32.mrf.mxu0
    %v2255 = vadd.f32 %v2206, %v2254
    %v2256 = vpop.f32.mrf.mxu0
    %v2257 = vadd.f32 %v2208, %v2256
    %2258 = vmatmul.bf16.gmra.mxu0 %v641
    %v2259 = vpop.f32.mrf.mxu0
    %v2260 = vadd.f32 %v2211, %v2259
    %v2261 = vpop.f32.mrf.mxu0
    %v2262 = vadd.f32 %v2213, %v2261
    %2263 = vdwg.mxu0
    %2264 = vmatpush.bf16.msra.mxu0 %v1468
    %2265 = vmatpush.bf16.msra.mxu0 %v1464
    %2266 = vmatpush.bf16.msra.mxu0 %v1460
    %2267 = vmatpush.bf16.msra.mxu0 %v1456
    %2268 = vmatpush.bf16.msra.mxu0 %v1452
    %2269 = vmatpush.bf16.msra.mxu0 %v1448
    %2270 = vmatpush.bf16.msra.mxu0 %v1444
    %2271 = vmatpush.bf16.msra.mxu0 %v1440
    %2272 = vmatmul.bf16.gmra.mxu0 %v593
    %v2273 = vpop.f32.mrf.mxu0
    %v2274 = vadd.f32 %v2225, %v2273
    %v2275 = vpop.f32.mrf.mxu0
    %v2276 = vadd.f32 %v2227, %v2275
    %2277 = vmatmul.bf16.gmra.mxu0 %v600
    %v2278 = vpop.f32.mrf.mxu0
    %v2279 = vadd.f32 %v2230, %v2278
    %v2280 = vpop.f32.mrf.mxu0
    %v2281 = vadd.f32 %v2232, %v2280
    %2282 = vmatmul.bf16.gmra.mxu0 %v607
    %v2283 = vpop.f32.mrf.mxu0
    %v2284 = vadd.f32 %v2235, %v2283
    %v2285 = vpop.f32.mrf.mxu0
    %v2286 = vadd.f32 %v2237, %v2285
    %2287 = vmatmul.bf16.gmra.mxu0 %v614
    %v2288 = vpop.f32.mrf.mxu0
    %v2289 = vadd.f32 %v2240, %v2288
    %v2290 = vpop.f32.mrf.mxu0
    %v2291 = vadd.f32 %v2242, %v2290
    %2292 = vmatmul.bf16.gmra.mxu0 %v621
    %v2293 = vpop.f32.mrf.mxu0
    %v2294 = vadd.f32 %v2245, %v2293
    %v2295 = vpop.f32.mrf.mxu0
    %v2296 = vadd.f32 %v2247, %v2295
    %2297 = vmatmul.bf16.gmra.mxu0 %v628
    %v2298 = vpop.f32.mrf.mxu0
    %v2299 = vadd.f32 %v2250, %v2298
    %v2300 = vpop.f32.mrf.mxu0
    %v2301 = vadd.f32 %v2252, %v2300
    %2302 = vmatmul.bf16.gmra.mxu0 %v635
    %v2303 = vpop.f32.mrf.mxu0
    %v2304 = vadd.f32 %v2255, %v2303
    %v2305 = vpop.f32.mrf.mxu0
    %v2306 = vadd.f32 %v2257, %v2305
    %2307 = vmatmul.bf16.gmra.mxu0 %v642
    %v2308 = vpop.f32.mrf.mxu0
    %v2309 = vadd.f32 %v2260, %v2308
    %v2310 = vpop.f32.mrf.mxu0
    %v2311 = vadd.f32 %v2262, %v2310
    %2312 = vdwg.mxu0
    %2313 = vmatpush.bf16.msra.mxu0 %v1500
    %2314 = vmatpush.bf16.msra.mxu0 %v1496
    %2315 = vmatpush.bf16.msra.mxu0 %v1492
    %2316 = vmatpush.bf16.msra.mxu0 %v1488
    %2317 = vmatpush.bf16.msra.mxu0 %v1484
    %2318 = vmatpush.bf16.msra.mxu0 %v1480
    %2319 = vmatpush.bf16.msra.mxu0 %v1476
    %2320 = vmatpush.bf16.msra.mxu0 %v1472
    %2321 = vmatmul.bf16.gmra.mxu0 %v594
    %v2322 = vpop.f32.mrf.mxu0
    %v2323 = vadd.f32 %v2274, %v2322
    %v2324 = vpop.f32.mrf.mxu0
    %v2325 = vadd.f32 %v2276, %v2324
    %2326 = vmatmul.bf16.gmra.mxu0 %v601
    %v2327 = vpop.f32.mrf.mxu0
    %v2328 = vadd.f32 %v2279, %v2327
    %v2329 = vpop.f32.mrf.mxu0
    %v2330 = vadd.f32 %v2281, %v2329
    %2331 = vmatmul.bf16.gmra.mxu0 %v608
    %v2332 = vpop.f32.mrf.mxu0
    %v2333 = vadd.f32 %v2284, %v2332
    %v2334 = vpop.f32.mrf.mxu0
    %v2335 = vadd.f32 %v2286, %v2334
    %2336 = vmatmul.bf16.gmra.mxu0 %v615
    %v2337 = vpop.f32.mrf.mxu0
    %v2338 = vadd.f32 %v2289, %v2337
    %v2339 = vpop.f32.mrf.mxu0
    %v2340 = vadd.f32 %v2291, %v2339
    %2341 = vmatmul.bf16.gmra.mxu0 %v622
    %v2342 = vpop.f32.mrf.mxu0
    %v2343 = vadd.f32 %v2294, %v2342
    %v2344 = vpop.f32.mrf.mxu0
    %v2345 = vadd.f32 %v2296, %v2344
    %2346 = vmatmul.bf16.gmra.mxu0 %v629
    %v2347 = vpop.f32.mrf.mxu0
    %v2348 = vadd.f32 %v2299, %v2347
    %v2349 = vpop.f32.mrf.mxu0
    %v2350 = vadd.f32 %v2301, %v2349
    %2351 = vmatmul.bf16.gmra.mxu0 %v636
    %v2352 = vpop.f32.mrf.mxu0
    %v2353 = vadd.f32 %v2304, %v2352
    %v2354 = vpop.f32.mrf.mxu0
    %v2355 = vadd.f32 %v2306, %v2354
    %2356 = vmatmul.bf16.gmra.mxu0 %v643
    %v2357 = vpop.f32.mrf.mxu0
    %v2358 = vadd.f32 %v2309, %v2357
    %v2359 = vpop.f32.mrf.mxu0
    %v2360 = vadd.f32 %v2311, %v2359
    %2361 = vdwg.mxu0
    %2362 = vmatpush.bf16.msra.mxu0 %v1532
    %2363 = vmatpush.bf16.msra.mxu0 %v1528
    %2364 = vmatpush.bf16.msra.mxu0 %v1524
    %2365 = vmatpush.bf16.msra.mxu0 %v1520
    %2366 = vmatpush.bf16.msra.mxu0 %v1516
    %2367 = vmatpush.bf16.msra.mxu0 %v1512
    %2368 = vmatpush.bf16.msra.mxu0 %v1508
    %2369 = vmatpush.bf16.msra.mxu0 %v1504
    %2370 = vmatmul.bf16.gmra.mxu0 %v595
    %v2371 = vpop.f32.mrf.mxu0
    %v2372 = vadd.f32 %v2323, %v2371
    %v2373 = vpop.f32.mrf.mxu0
    %v2374 = vadd.f32 %v2325, %v2373
    %2375 = vmatmul.bf16.gmra.mxu0 %v602
    %v2376 = vpop.f32.mrf.mxu0
    %v2377 = vadd.f32 %v2328, %v2376
    %v2378 = vpop.f32.mrf.mxu0
    %v2379 = vadd.f32 %v2330, %v2378
    %2380 = vmatmul.bf16.gmra.mxu0 %v609
    %v2381 = vpop.f32.mrf.mxu0
    %v2382 = vadd.f32 %v2333, %v2381
    %v2383 = vpop.f32.mrf.mxu0
    %v2384 = vadd.f32 %v2335, %v2383
    %2385 = vmatmul.bf16.gmra.mxu0 %v616
    %v2386 = vpop.f32.mrf.mxu0
    %v2387 = vadd.f32 %v2338, %v2386
    %v2388 = vpop.f32.mrf.mxu0
    %v2389 = vadd.f32 %v2340, %v2388
    %2390 = vmatmul.bf16.gmra.mxu0 %v623
    %v2391 = vpop.f32.mrf.mxu0
    %v2392 = vadd.f32 %v2343, %v2391
    %v2393 = vpop.f32.mrf.mxu0
    %v2394 = vadd.f32 %v2345, %v2393
    %2395 = vmatmul.bf16.gmra.mxu0 %v630
    %v2396 = vpop.f32.mrf.mxu0
    %v2397 = vadd.f32 %v2348, %v2396
    %v2398 = vpop.f32.mrf.mxu0
    %v2399 = vadd.f32 %v2350, %v2398
    %2400 = vmatmul.bf16.gmra.mxu0 %v637
    %v2401 = vpop.f32.mrf.mxu0
    %v2402 = vadd.f32 %v2353, %v2401
    %v2403 = vpop.f32.mrf.mxu0
    %v2404 = vadd.f32 %v2355, %v2403
    %2405 = vmatmul.bf16.gmra.mxu0 %v644
    %v2406 = vpop.f32.mrf.mxu0
    %v2407 = vadd.f32 %v2358, %v2406
    %v2408 = vpop.f32.mrf.mxu0
    %v2409 = vadd.f32 %v2360, %v2408
    %2410 = vdwg.mxu0
    %2411 = vmatpush.bf16.msra.mxu0 %v1564
    %2412 = vmatpush.bf16.msra.mxu0 %v1560
    %2413 = vmatpush.bf16.msra.mxu0 %v1556
    %2414 = vmatpush.bf16.msra.mxu0 %v1552
    %2415 = vmatpush.bf16.msra.mxu0 %v1548
    %2416 = vmatpush.bf16.msra.mxu0 %v1544
    %2417 = vmatpush.bf16.msra.mxu0 %v1540
    %2418 = vmatpush.bf16.msra.mxu0 %v1536
    %2419 = vmatmul.bf16.gmra.mxu0 %v596
    %v2420 = vpop.f32.mrf.mxu0
    %v2421 = vadd.f32 %v2372, %v2420
    %v2422 = vpop.f32.mrf.mxu0
    %v2423 = vadd.f32 %v2374, %v2422
    %2424 = vmatmul.bf16.gmra.mxu0 %v603
    %v2425 = vpop.f32.mrf.mxu0
    %v2426 = vadd.f32 %v2377, %v2425
    %v2427 = vpop.f32.mrf.mxu0
    %v2428 = vadd.f32 %v2379, %v2427
    %2429 = vmatmul.bf16.gmra.mxu0 %v610
    %v2430 = vpop.f32.mrf.mxu0
    %v2431 = vadd.f32 %v2382, %v2430
    %v2432 = vpop.f32.mrf.mxu0
    %v2433 = vadd.f32 %v2384, %v2432
    %2434 = vmatmul.bf16.gmra.mxu0 %v617
    %v2435 = vpop.f32.mrf.mxu0
    %v2436 = vadd.f32 %v2387, %v2435
    %v2437 = vpop.f32.mrf.mxu0
    %v2438 = vadd.f32 %v2389, %v2437
    %2439 = vmatmul.bf16.gmra.mxu0 %v624
    %v2440 = vpop.f32.mrf.mxu0
    %v2441 = vadd.f32 %v2392, %v2440
    %v2442 = vpop.f32.mrf.mxu0
    %v2443 = vadd.f32 %v2394, %v2442
    %2444 = vmatmul.bf16.gmra.mxu0 %v631
    %v2445 = vpop.f32.mrf.mxu0
    %v2446 = vadd.f32 %v2397, %v2445
    %v2447 = vpop.f32.mrf.mxu0
    %v2448 = vadd.f32 %v2399, %v2447
    %2449 = vmatmul.bf16.gmra.mxu0 %v638
    %v2450 = vpop.f32.mrf.mxu0
    %v2451 = vadd.f32 %v2402, %v2450
    %v2452 = vpop.f32.mrf.mxu0
    %v2453 = vadd.f32 %v2404, %v2452
    %2454 = vmatmul.bf16.gmra.mxu0 %v645
    %v2455 = vpop.f32.mrf.mxu0
    %v2456 = vadd.f32 %v2407, %v2455
    %v2457 = vpop.f32.mrf.mxu0
    %v2458 = vadd.f32 %v2409, %v2457
    %2459 = vdwg.mxu0
    %2460 = vmatpush.bf16.msra.mxu0 %v1596
    %2461 = vmatpush.bf16.msra.mxu0 %v1592
    %2462 = vmatpush.bf16.msra.mxu0 %v1588
    %2463 = vmatpush.bf16.msra.mxu0 %v1584
    %2464 = vmatpush.bf16.msra.mxu0 %v1580
    %2465 = vmatpush.bf16.msra.mxu0 %v1576
    %2466 = vmatpush.bf16.msra.mxu0 %v1572
    %2467 = vmatpush.bf16.msra.mxu0 %v1568
    %2468 = vmatmul.bf16.gmra.mxu0 %v597
    %v2469 = vpop.f32.mrf.mxu0
    %v2470 = vadd.f32 %v2421, %v2469
    %v2471 = vpop.f32.mrf.mxu0
    %v2472 = vadd.f32 %v2423, %v2471
    %2473 = vmatmul.bf16.gmra.mxu0 %v604
    %v2474 = vpop.f32.mrf.mxu0
    %v2475 = vadd.f32 %v2426, %v2474
    %v2476 = vpop.f32.mrf.mxu0
    %v2477 = vadd.f32 %v2428, %v2476
    %2478 = vmatmul.bf16.gmra.mxu0 %v611
    %v2479 = vpop.f32.mrf.mxu0
    %v2480 = vadd.f32 %v2431, %v2479
    %v2481 = vpop.f32.mrf.mxu0
    %v2482 = vadd.f32 %v2433, %v2481
    %2483 = vmatmul.bf16.gmra.mxu0 %v618
    %v2484 = vpop.f32.mrf.mxu0
    %v2485 = vadd.f32 %v2436, %v2484
    %v2486 = vpop.f32.mrf.mxu0
    %v2487 = vadd.f32 %v2438, %v2486
    %2488 = vmatmul.bf16.gmra.mxu0 %v625
    %v2489 = vpop.f32.mrf.mxu0
    %v2490 = vadd.f32 %v2441, %v2489
    %v2491 = vpop.f32.mrf.mxu0
    %v2492 = vadd.f32 %v2443, %v2491
    %2493 = vmatmul.bf16.gmra.mxu0 %v632
    %v2494 = vpop.f32.mrf.mxu0
    %v2495 = vadd.f32 %v2446, %v2494
    %v2496 = vpop.f32.mrf.mxu0
    %v2497 = vadd.f32 %v2448, %v2496
    %2498 = vmatmul.bf16.gmra.mxu0 %v639
    %v2499 = vpop.f32.mrf.mxu0
    %v2500 = vadd.f32 %v2451, %v2499
    %v2501 = vpop.f32.mrf.mxu0
    %v2502 = vadd.f32 %v2453, %v2501
    %2503 = vmatmul.bf16.gmra.mxu0 %v646
    %v2504 = vpop.f32.mrf.mxu0
    %v2505 = vadd.f32 %v2456, %v2504
    %v2506 = vpop.f32.mrf.mxu0
    %v2507 = vadd.f32 %v2458, %v2506
    %2508 = vdwg.mxu0
    %2509 = vmatpush.bf16.msra.mxu0 %v1405
    %2510 = vmatpush.bf16.msra.mxu0 %v1401
    %2511 = vmatpush.bf16.msra.mxu0 %v1397
    %2512 = vmatpush.bf16.msra.mxu0 %v1393
    %2513 = vmatpush.bf16.msra.mxu0 %v1389
    %2514 = vmatpush.bf16.msra.mxu0 %v1385
    %2515 = vmatpush.bf16.msra.mxu0 %v1381
    %2516 = vmatpush.bf16.msra.mxu0 %v1377
    %2517 = vmatmul.bf16.gmra.mxu0 %v591
    %v2518 = vpop.f32.mrf.mxu0
    %v2519 = vadd.f32 %v409, %v2518
    %v2520 = vpop.f32.mrf.mxu0
    %v2521 = vadd.f32 %v409, %v2520
    %2522 = vmatmul.bf16.gmra.mxu0 %v598
    %v2523 = vpop.f32.mrf.mxu0
    %v2524 = vadd.f32 %v409, %v2523
    %v2525 = vpop.f32.mrf.mxu0
    %v2526 = vadd.f32 %v409, %v2525
    %2527 = vmatmul.bf16.gmra.mxu0 %v605
    %v2528 = vpop.f32.mrf.mxu0
    %v2529 = vadd.f32 %v409, %v2528
    %v2530 = vpop.f32.mrf.mxu0
    %v2531 = vadd.f32 %v409, %v2530
    %2532 = vmatmul.bf16.gmra.mxu0 %v612
    %v2533 = vpop.f32.mrf.mxu0
    %v2534 = vadd.f32 %v409, %v2533
    %v2535 = vpop.f32.mrf.mxu0
    %v2536 = vadd.f32 %v409, %v2535
    %2537 = vmatmul.bf16.gmra.mxu0 %v619
    %v2538 = vpop.f32.mrf.mxu0
    %v2539 = vadd.f32 %v409, %v2538
    %v2540 = vpop.f32.mrf.mxu0
    %v2541 = vadd.f32 %v409, %v2540
    %2542 = vmatmul.bf16.gmra.mxu0 %v626
    %v2543 = vpop.f32.mrf.mxu0
    %v2544 = vadd.f32 %v409, %v2543
    %v2545 = vpop.f32.mrf.mxu0
    %v2546 = vadd.f32 %v409, %v2545
    %2547 = vmatmul.bf16.gmra.mxu0 %v633
    %v2548 = vpop.f32.mrf.mxu0
    %v2549 = vadd.f32 %v409, %v2548
    %v2550 = vpop.f32.mrf.mxu0
    %v2551 = vadd.f32 %v409, %v2550
    %2552 = vmatmul.bf16.gmra.mxu0 %v640
    %v2553 = vpop.f32.mrf.mxu0
    %v2554 = vadd.f32 %v409, %v2553
    %v2555 = vpop.f32.mrf.mxu0
    %v2556 = vadd.f32 %v409, %v2555
    %2557 = vdwg.mxu0
    %2558 = vmatpush.bf16.msra.mxu0 %v1437
    %2559 = vmatpush.bf16.msra.mxu0 %v1433
    %2560 = vmatpush.bf16.msra.mxu0 %v1429
    %2561 = vmatpush.bf16.msra.mxu0 %v1425
    %2562 = vmatpush.bf16.msra.mxu0 %v1421
    %2563 = vmatpush.bf16.msra.mxu0 %v1417
    %2564 = vmatpush.bf16.msra.mxu0 %v1413
    %2565 = vmatpush.bf16.msra.mxu0 %v1409
    %2566 = vmatmul.bf16.gmra.mxu0 %v592
    %v2567 = vpop.f32.mrf.mxu0
    %v2568 = vadd.f32 %v2519, %v2567
    %v2569 = vpop.f32.mrf.mxu0
    %v2570 = vadd.f32 %v2521, %v2569
    %2571 = vmatmul.bf16.gmra.mxu0 %v599
    %v2572 = vpop.f32.mrf.mxu0
    %v2573 = vadd.f32 %v2524, %v2572
    %v2574 = vpop.f32.mrf.mxu0
    %v2575 = vadd.f32 %v2526, %v2574
    %2576 = vmatmul.bf16.gmra.mxu0 %v606
    %v2577 = vpop.f32.mrf.mxu0
    %v2578 = vadd.f32 %v2529, %v2577
    %v2579 = vpop.f32.mrf.mxu0
    %v2580 = vadd.f32 %v2531, %v2579
    %2581 = vmatmul.bf16.gmra.mxu0 %v613
    %v2582 = vpop.f32.mrf.mxu0
    %v2583 = vadd.f32 %v2534, %v2582
    %v2584 = vpop.f32.mrf.mxu0
    %v2585 = vadd.f32 %v2536, %v2584
    %2586 = vmatmul.bf16.gmra.mxu0 %v620
    %v2587 = vpop.f32.mrf.mxu0
    %v2588 = vadd.f32 %v2539, %v2587
    %v2589 = vpop.f32.mrf.mxu0
    %v2590 = vadd.f32 %v2541, %v2589
    %2591 = vmatmul.bf16.gmra.mxu0 %v627
    %v2592 = vpop.f32.mrf.mxu0
    %v2593 = vadd.f32 %v2544, %v2592
    %v2594 = vpop.f32.mrf.mxu0
    %v2595 = vadd.f32 %v2546, %v2594
    %2596 = vmatmul.bf16.gmra.mxu0 %v634
    %v2597 = vpop.f32.mrf.mxu0
    %v2598 = vadd.f32 %v2549, %v2597
    %v2599 = vpop.f32.mrf.mxu0
    %v2600 = vadd.f32 %v2551, %v2599
    %2601 = vmatmul.bf16.gmra.mxu0 %v641
    %v2602 = vpop.f32.mrf.mxu0
    %v2603 = vadd.f32 %v2554, %v2602
    %v2604 = vpop.f32.mrf.mxu0
    %v2605 = vadd.f32 %v2556, %v2604
    %2606 = vdwg.mxu0
    %2607 = vmatpush.bf16.msra.mxu0 %v1469
    %2608 = vmatpush.bf16.msra.mxu0 %v1465
    %2609 = vmatpush.bf16.msra.mxu0 %v1461
    %2610 = vmatpush.bf16.msra.mxu0 %v1457
    %2611 = vmatpush.bf16.msra.mxu0 %v1453
    %2612 = vmatpush.bf16.msra.mxu0 %v1449
    %2613 = vmatpush.bf16.msra.mxu0 %v1445
    %2614 = vmatpush.bf16.msra.mxu0 %v1441
    %2615 = vmatmul.bf16.gmra.mxu0 %v593
    %v2616 = vpop.f32.mrf.mxu0
    %v2617 = vadd.f32 %v2568, %v2616
    %v2618 = vpop.f32.mrf.mxu0
    %v2619 = vadd.f32 %v2570, %v2618
    %2620 = vmatmul.bf16.gmra.mxu0 %v600
    %v2621 = vpop.f32.mrf.mxu0
    %v2622 = vadd.f32 %v2573, %v2621
    %v2623 = vpop.f32.mrf.mxu0
    %v2624 = vadd.f32 %v2575, %v2623
    %2625 = vmatmul.bf16.gmra.mxu0 %v607
    %v2626 = vpop.f32.mrf.mxu0
    %v2627 = vadd.f32 %v2578, %v2626
    %v2628 = vpop.f32.mrf.mxu0
    %v2629 = vadd.f32 %v2580, %v2628
    %2630 = vmatmul.bf16.gmra.mxu0 %v614
    %v2631 = vpop.f32.mrf.mxu0
    %v2632 = vadd.f32 %v2583, %v2631
    %v2633 = vpop.f32.mrf.mxu0
    %v2634 = vadd.f32 %v2585, %v2633
    %2635 = vmatmul.bf16.gmra.mxu0 %v621
    %v2636 = vpop.f32.mrf.mxu0
    %v2637 = vadd.f32 %v2588, %v2636
    %v2638 = vpop.f32.mrf.mxu0
    %v2639 = vadd.f32 %v2590, %v2638
    %2640 = vmatmul.bf16.gmra.mxu0 %v628
    %v2641 = vpop.f32.mrf.mxu0
    %v2642 = vadd.f32 %v2593, %v2641
    %v2643 = vpop.f32.mrf.mxu0
    %v2644 = vadd.f32 %v2595, %v2643
    %2645 = vmatmul.bf16.gmra.mxu0 %v635
    %v2646 = vpop.f32.mrf.mxu0
    %v2647 = vadd.f32 %v2598, %v2646
    %v2648 = vpop.f32.mrf.mxu0
    %v2649 = vadd.f32 %v2600, %v2648
    %2650 = vmatmul.bf16.gmra.mxu0 %v642
    %v2651 = vpop.f32.mrf.mxu0
    %v2652 = vadd.f32 %v2603, %v2651
    %v2653 = vpop.f32.mrf.mxu0
    %v2654 = vadd.f32 %v2605, %v2653
    %2655 = vdwg.mxu0
    %2656 = vmatpush.bf16.msra.mxu0 %v1501
    %2657 = vmatpush.bf16.msra.mxu0 %v1497
    %2658 = vmatpush.bf16.msra.mxu0 %v1493
    %2659 = vmatpush.bf16.msra.mxu0 %v1489
    %2660 = vmatpush.bf16.msra.mxu0 %v1485
    %2661 = vmatpush.bf16.msra.mxu0 %v1481
    %2662 = vmatpush.bf16.msra.mxu0 %v1477
    %2663 = vmatpush.bf16.msra.mxu0 %v1473
    %2664 = vmatmul.bf16.gmra.mxu0 %v594
    %v2665 = vpop.f32.mrf.mxu0
    %v2666 = vadd.f32 %v2617, %v2665
    %v2667 = vpop.f32.mrf.mxu0
    %v2668 = vadd.f32 %v2619, %v2667
    %2669 = vmatmul.bf16.gmra.mxu0 %v601
    %v2670 = vpop.f32.mrf.mxu0
    %v2671 = vadd.f32 %v2622, %v2670
    %v2672 = vpop.f32.mrf.mxu0
    %v2673 = vadd.f32 %v2624, %v2672
    %2674 = vmatmul.bf16.gmra.mxu0 %v608
    %v2675 = vpop.f32.mrf.mxu0
    %v2676 = vadd.f32 %v2627, %v2675
    %v2677 = vpop.f32.mrf.mxu0
    %v2678 = vadd.f32 %v2629, %v2677
    %2679 = vmatmul.bf16.gmra.mxu0 %v615
    %v2680 = vpop.f32.mrf.mxu0
    %v2681 = vadd.f32 %v2632, %v2680
    %v2682 = vpop.f32.mrf.mxu0
    %v2683 = vadd.f32 %v2634, %v2682
    %2684 = vmatmul.bf16.gmra.mxu0 %v622
    %v2685 = vpop.f32.mrf.mxu0
    %v2686 = vadd.f32 %v2637, %v2685
    %v2687 = vpop.f32.mrf.mxu0
    %v2688 = vadd.f32 %v2639, %v2687
    %2689 = vmatmul.bf16.gmra.mxu0 %v629
    %v2690 = vpop.f32.mrf.mxu0
    %v2691 = vadd.f32 %v2642, %v2690
    %v2692 = vpop.f32.mrf.mxu0
    %v2693 = vadd.f32 %v2644, %v2692
    %2694 = vmatmul.bf16.gmra.mxu0 %v636
    %v2695 = vpop.f32.mrf.mxu0
    %v2696 = vadd.f32 %v2647, %v2695
    %v2697 = vpop.f32.mrf.mxu0
    %v2698 = vadd.f32 %v2649, %v2697
    %2699 = vmatmul.bf16.gmra.mxu0 %v643
    %v2700 = vpop.f32.mrf.mxu0
    %v2701 = vadd.f32 %v2652, %v2700
    %v2702 = vpop.f32.mrf.mxu0
    %v2703 = vadd.f32 %v2654, %v2702
    %2704 = vdwg.mxu0
    %2705 = vmatpush.bf16.msra.mxu0 %v1533
    %2706 = vmatpush.bf16.msra.mxu0 %v1529
    %2707 = vmatpush.bf16.msra.mxu0 %v1525
    %2708 = vmatpush.bf16.msra.mxu0 %v1521
    %2709 = vmatpush.bf16.msra.mxu0 %v1517
    %2710 = vmatpush.bf16.msra.mxu0 %v1513
    %2711 = vmatpush.bf16.msra.mxu0 %v1509
    %2712 = vmatpush.bf16.msra.mxu0 %v1505
    %2713 = vmatmul.bf16.gmra.mxu0 %v595
    %v2714 = vpop.f32.mrf.mxu0
    %v2715 = vadd.f32 %v2666, %v2714
    %v2716 = vpop.f32.mrf.mxu0
    %v2717 = vadd.f32 %v2668, %v2716
    %2718 = vmatmul.bf16.gmra.mxu0 %v602
    %v2719 = vpop.f32.mrf.mxu0
    %v2720 = vadd.f32 %v2671, %v2719
    %v2721 = vpop.f32.mrf.mxu0
    %v2722 = vadd.f32 %v2673, %v2721
    %2723 = vmatmul.bf16.gmra.mxu0 %v609
    %v2724 = vpop.f32.mrf.mxu0
    %v2725 = vadd.f32 %v2676, %v2724
    %v2726 = vpop.f32.mrf.mxu0
    %v2727 = vadd.f32 %v2678, %v2726
    %2728 = vmatmul.bf16.gmra.mxu0 %v616
    %v2729 = vpop.f32.mrf.mxu0
    %v2730 = vadd.f32 %v2681, %v2729
    %v2731 = vpop.f32.mrf.mxu0
    %v2732 = vadd.f32 %v2683, %v2731
    %2733 = vmatmul.bf16.gmra.mxu0 %v623
    %v2734 = vpop.f32.mrf.mxu0
    %v2735 = vadd.f32 %v2686, %v2734
    %v2736 = vpop.f32.mrf.mxu0
    %v2737 = vadd.f32 %v2688, %v2736
    %2738 = vmatmul.bf16.gmra.mxu0 %v630
    %v2739 = vpop.f32.mrf.mxu0
    %v2740 = vadd.f32 %v2691, %v2739
    %v2741 = vpop.f32.mrf.mxu0
    %v2742 = vadd.f32 %v2693, %v2741
    %2743 = vmatmul.bf16.gmra.mxu0 %v637
    %v2744 = vpop.f32.mrf.mxu0
    %v2745 = vadd.f32 %v2696, %v2744
    %v2746 = vpop.f32.mrf.mxu0
    %v2747 = vadd.f32 %v2698, %v2746
    %2748 = vmatmul.bf16.gmra.mxu0 %v644
    %v2749 = vpop.f32.mrf.mxu0
    %v2750 = vadd.f32 %v2701, %v2749
    %v2751 = vpop.f32.mrf.mxu0
    %v2752 = vadd.f32 %v2703, %v2751
    %2753 = vdwg.mxu0
    %2754 = vmatpush.bf16.msra.mxu0 %v1565
    %2755 = vmatpush.bf16.msra.mxu0 %v1561
    %2756 = vmatpush.bf16.msra.mxu0 %v1557
    %2757 = vmatpush.bf16.msra.mxu0 %v1553
    %2758 = vmatpush.bf16.msra.mxu0 %v1549
    %2759 = vmatpush.bf16.msra.mxu0 %v1545
    %2760 = vmatpush.bf16.msra.mxu0 %v1541
    %2761 = vmatpush.bf16.msra.mxu0 %v1537
    %2762 = vmatmul.bf16.gmra.mxu0 %v596
    %v2763 = vpop.f32.mrf.mxu0
    %v2764 = vadd.f32 %v2715, %v2763
    %v2765 = vpop.f32.mrf.mxu0
    %v2766 = vadd.f32 %v2717, %v2765
    %2767 = vmatmul.bf16.gmra.mxu0 %v603
    %v2768 = vpop.f32.mrf.mxu0
    %v2769 = vadd.f32 %v2720, %v2768
    %v2770 = vpop.f32.mrf.mxu0
    %v2771 = vadd.f32 %v2722, %v2770
    %2772 = vmatmul.bf16.gmra.mxu0 %v610
    %v2773 = vpop.f32.mrf.mxu0
    %v2774 = vadd.f32 %v2725, %v2773
    %v2775 = vpop.f32.mrf.mxu0
    %v2776 = vadd.f32 %v2727, %v2775
    %2777 = vmatmul.bf16.gmra.mxu0 %v617
    %v2778 = vpop.f32.mrf.mxu0
    %v2779 = vadd.f32 %v2730, %v2778
    %v2780 = vpop.f32.mrf.mxu0
    %v2781 = vadd.f32 %v2732, %v2780
    %2782 = vmatmul.bf16.gmra.mxu0 %v624
    %v2783 = vpop.f32.mrf.mxu0
    %v2784 = vadd.f32 %v2735, %v2783
    %v2785 = vpop.f32.mrf.mxu0
    %v2786 = vadd.f32 %v2737, %v2785
    %2787 = vmatmul.bf16.gmra.mxu0 %v631
    %v2788 = vpop.f32.mrf.mxu0
    %v2789 = vadd.f32 %v2740, %v2788
    %v2790 = vpop.f32.mrf.mxu0
    %v2791 = vadd.f32 %v2742, %v2790
    %2792 = vmatmul.bf16.gmra.mxu0 %v638
    %v2793 = vpop.f32.mrf.mxu0
    %v2794 = vadd.f32 %v2745, %v2793
    %v2795 = vpop.f32.mrf.mxu0
    %v2796 = vadd.f32 %v2747, %v2795
    %2797 = vmatmul.bf16.gmra.mxu0 %v645
    %v2798 = vpop.f32.mrf.mxu0
    %v2799 = vadd.f32 %v2750, %v2798
    %v2800 = vpop.f32.mrf.mxu0
    %v2801 = vadd.f32 %v2752, %v2800
    %2802 = vdwg.mxu0
    %2803 = vmatpush.bf16.msra.mxu0 %v1597
    %2804 = vmatpush.bf16.msra.mxu0 %v1593
    %2805 = vmatpush.bf16.msra.mxu0 %v1589
    %2806 = vmatpush.bf16.msra.mxu0 %v1585
    %2807 = vmatpush.bf16.msra.mxu0 %v1581
    %2808 = vmatpush.bf16.msra.mxu0 %v1577
    %2809 = vmatpush.bf16.msra.mxu0 %v1573
    %2810 = vmatpush.bf16.msra.mxu0 %v1569
    %2811 = vmatmul.bf16.gmra.mxu0 %v597
    %v2812 = vpop.f32.mrf.mxu0
    %v2813 = vadd.f32 %v2764, %v2812
    %v2814 = vpop.f32.mrf.mxu0
    %v2815 = vadd.f32 %v2766, %v2814
    %2816 = vmatmul.bf16.gmra.mxu0 %v604
    %v2817 = vpop.f32.mrf.mxu0
    %v2818 = vadd.f32 %v2769, %v2817
    %v2819 = vpop.f32.mrf.mxu0
    %v2820 = vadd.f32 %v2771, %v2819
    %2821 = vmatmul.bf16.gmra.mxu0 %v611
    %v2822 = vpop.f32.mrf.mxu0
    %v2823 = vadd.f32 %v2774, %v2822
    %v2824 = vpop.f32.mrf.mxu0
    %v2825 = vadd.f32 %v2776, %v2824
    %2826 = vmatmul.bf16.gmra.mxu0 %v618
    %v2827 = vpop.f32.mrf.mxu0
    %v2828 = vadd.f32 %v2779, %v2827
    %v2829 = vpop.f32.mrf.mxu0
    %v2830 = vadd.f32 %v2781, %v2829
    %2831 = vmatmul.bf16.gmra.mxu0 %v625
    %v2832 = vpop.f32.mrf.mxu0
    %v2833 = vadd.f32 %v2784, %v2832
    %v2834 = vpop.f32.mrf.mxu0
    %v2835 = vadd.f32 %v2786, %v2834
    %2836 = vmatmul.bf16.gmra.mxu0 %v632
    %v2837 = vpop.f32.mrf.mxu0
    %v2838 = vadd.f32 %v2789, %v2837
    %v2839 = vpop.f32.mrf.mxu0
    %v2840 = vadd.f32 %v2791, %v2839
    %2841 = vmatmul.bf16.gmra.mxu0 %v639
    %v2842 = vpop.f32.mrf.mxu0
    %v2843 = vadd.f32 %v2794, %v2842
    %v2844 = vpop.f32.mrf.mxu0
    %v2845 = vadd.f32 %v2796, %v2844
    %2846 = vmatmul.bf16.gmra.mxu0 %v646
    %v2847 = vpop.f32.mrf.mxu0
    %v2848 = vadd.f32 %v2799, %v2847
    %v2849 = vpop.f32.mrf.mxu0
    %v2850 = vadd.f32 %v2801, %v2849
    %2851 = vdwg.mxu0
    %2852 = vmatpush.bf16.msra.mxu0 %v1406
    %2853 = vmatpush.bf16.msra.mxu0 %v1402
    %2854 = vmatpush.bf16.msra.mxu0 %v1398
    %2855 = vmatpush.bf16.msra.mxu0 %v1394
    %2856 = vmatpush.bf16.msra.mxu0 %v1390
    %2857 = vmatpush.bf16.msra.mxu0 %v1386
    %2858 = vmatpush.bf16.msra.mxu0 %v1382
    %2859 = vmatpush.bf16.msra.mxu0 %v1378
    %2860 = vmatmul.bf16.gmra.mxu0 %v591
    %v2861 = vpop.f32.mrf.mxu0
    %v2862 = vadd.f32 %v410, %v2861
    %v2863 = vpop.f32.mrf.mxu0
    %v2864 = vadd.f32 %v410, %v2863
    %2865 = vmatmul.bf16.gmra.mxu0 %v598
    %v2866 = vpop.f32.mrf.mxu0
    %v2867 = vadd.f32 %v410, %v2866
    %v2868 = vpop.f32.mrf.mxu0
    %v2869 = vadd.f32 %v410, %v2868
    %2870 = vmatmul.bf16.gmra.mxu0 %v605
    %v2871 = vpop.f32.mrf.mxu0
    %v2872 = vadd.f32 %v410, %v2871
    %v2873 = vpop.f32.mrf.mxu0
    %v2874 = vadd.f32 %v410, %v2873
    %2875 = vmatmul.bf16.gmra.mxu0 %v612
    %v2876 = vpop.f32.mrf.mxu0
    %v2877 = vadd.f32 %v410, %v2876
    %v2878 = vpop.f32.mrf.mxu0
    %v2879 = vadd.f32 %v410, %v2878
    %2880 = vmatmul.bf16.gmra.mxu0 %v619
    %v2881 = vpop.f32.mrf.mxu0
    %v2882 = vadd.f32 %v410, %v2881
    %v2883 = vpop.f32.mrf.mxu0
    %v2884 = vadd.f32 %v410, %v2883
    %2885 = vmatmul.bf16.gmra.mxu0 %v626
    %v2886 = vpop.f32.mrf.mxu0
    %v2887 = vadd.f32 %v410, %v2886
    %v2888 = vpop.f32.mrf.mxu0
    %v2889 = vadd.f32 %v410, %v2888
    %2890 = vmatmul.bf16.gmra.mxu0 %v633
    %v2891 = vpop.f32.mrf.mxu0
    %v2892 = vadd.f32 %v410, %v2891
    %v2893 = vpop.f32.mrf.mxu0
    %v2894 = vadd.f32 %v410, %v2893
    %2895 = vmatmul.bf16.gmra.mxu0 %v640
    %v2896 = vpop.f32.mrf.mxu0
    %v2897 = vadd.f32 %v410, %v2896
    %v2898 = vpop.f32.mrf.mxu0
    %v2899 = vadd.f32 %v410, %v2898
    %2900 = vdwg.mxu0
    %2901 = vmatpush.bf16.msra.mxu0 %v1438
    %2902 = vmatpush.bf16.msra.mxu0 %v1434
    %2903 = vmatpush.bf16.msra.mxu0 %v1430
    %2904 = vmatpush.bf16.msra.mxu0 %v1426
    %2905 = vmatpush.bf16.msra.mxu0 %v1422
    %2906 = vmatpush.bf16.msra.mxu0 %v1418
    %2907 = vmatpush.bf16.msra.mxu0 %v1414
    %2908 = vmatpush.bf16.msra.mxu0 %v1410
    %2909 = vmatmul.bf16.gmra.mxu0 %v592
    %v2910 = vpop.f32.mrf.mxu0
    %v2911 = vadd.f32 %v2862, %v2910
    %v2912 = vpop.f32.mrf.mxu0
    %v2913 = vadd.f32 %v2864, %v2912
    %2914 = vmatmul.bf16.gmra.mxu0 %v599
    %v2915 = vpop.f32.mrf.mxu0
    %v2916 = vadd.f32 %v2867, %v2915
    %v2917 = vpop.f32.mrf.mxu0
    %v2918 = vadd.f32 %v2869, %v2917
    %2919 = vmatmul.bf16.gmra.mxu0 %v606
    %v2920 = vpop.f32.mrf.mxu0
    %v2921 = vadd.f32 %v2872, %v2920
    %v2922 = vpop.f32.mrf.mxu0
    %v2923 = vadd.f32 %v2874, %v2922
    %2924 = vmatmul.bf16.gmra.mxu0 %v613
    %v2925 = vpop.f32.mrf.mxu0
    %v2926 = vadd.f32 %v2877, %v2925
    %v2927 = vpop.f32.mrf.mxu0
    %v2928 = vadd.f32 %v2879, %v2927
    %2929 = vmatmul.bf16.gmra.mxu0 %v620
    %v2930 = vpop.f32.mrf.mxu0
    %v2931 = vadd.f32 %v2882, %v2930
    %v2932 = vpop.f32.mrf.mxu0
    %v2933 = vadd.f32 %v2884, %v2932
    %2934 = vmatmul.bf16.gmra.mxu0 %v627
    %v2935 = vpop.f32.mrf.mxu0
    %v2936 = vadd.f32 %v2887, %v2935
    %v2937 = vpop.f32.mrf.mxu0
    %v2938 = vadd.f32 %v2889, %v2937
    %2939 = vmatmul.bf16.gmra.mxu0 %v634
    %v2940 = vpop.f32.mrf.mxu0
    %v2941 = vadd.f32 %v2892, %v2940
    %v2942 = vpop.f32.mrf.mxu0
    %v2943 = vadd.f32 %v2894, %v2942
    %2944 = vmatmul.bf16.gmra.mxu0 %v641
    %v2945 = vpop.f32.mrf.mxu0
    %v2946 = vadd.f32 %v2897, %v2945
    %v2947 = vpop.f32.mrf.mxu0
    %v2948 = vadd.f32 %v2899, %v2947
    %2949 = vdwg.mxu0
    %2950 = vmatpush.bf16.msra.mxu0 %v1470
    %2951 = vmatpush.bf16.msra.mxu0 %v1466
    %2952 = vmatpush.bf16.msra.mxu0 %v1462
    %2953 = vmatpush.bf16.msra.mxu0 %v1458
    %2954 = vmatpush.bf16.msra.mxu0 %v1454
    %2955 = vmatpush.bf16.msra.mxu0 %v1450
    %2956 = vmatpush.bf16.msra.mxu0 %v1446
    %2957 = vmatpush.bf16.msra.mxu0 %v1442
    %2958 = vmatmul.bf16.gmra.mxu0 %v593
    %v2959 = vpop.f32.mrf.mxu0
    %v2960 = vadd.f32 %v2911, %v2959
    %v2961 = vpop.f32.mrf.mxu0
    %v2962 = vadd.f32 %v2913, %v2961
    %2963 = vmatmul.bf16.gmra.mxu0 %v600
    %v2964 = vpop.f32.mrf.mxu0
    %v2965 = vadd.f32 %v2916, %v2964
    %v2966 = vpop.f32.mrf.mxu0
    %v2967 = vadd.f32 %v2918, %v2966
    %2968 = vmatmul.bf16.gmra.mxu0 %v607
    %v2969 = vpop.f32.mrf.mxu0
    %v2970 = vadd.f32 %v2921, %v2969
    %v2971 = vpop.f32.mrf.mxu0
    %v2972 = vadd.f32 %v2923, %v2971
    %2973 = vmatmul.bf16.gmra.mxu0 %v614
    %v2974 = vpop.f32.mrf.mxu0
    %v2975 = vadd.f32 %v2926, %v2974
    %v2976 = vpop.f32.mrf.mxu0
    %v2977 = vadd.f32 %v2928, %v2976
    %2978 = vmatmul.bf16.gmra.mxu0 %v621
    %v2979 = vpop.f32.mrf.mxu0
    %v2980 = vadd.f32 %v2931, %v2979
    %v2981 = vpop.f32.mrf.mxu0
    %v2982 = vadd.f32 %v2933, %v2981
    %2983 = vmatmul.bf16.gmra.mxu0 %v628
    %v2984 = vpop.f32.mrf.mxu0
    %v2985 = vadd.f32 %v2936, %v2984
    %v2986 = vpop.f32.mrf.mxu0
    %v2987 = vadd.f32 %v2938, %v2986
    %2988 = vmatmul.bf16.gmra.mxu0 %v635
    %v2989 = vpop.f32.mrf.mxu0
    %v2990 = vadd.f32 %v2941, %v2989
    %v2991 = vpop.f32.mrf.mxu0
    %v2992 = vadd.f32 %v2943, %v2991
    %2993 = vmatmul.bf16.gmra.mxu0 %v642
    %v2994 = vpop.f32.mrf.mxu0
    %v2995 = vadd.f32 %v2946, %v2994
    %v2996 = vpop.f32.mrf.mxu0
    %v2997 = vadd.f32 %v2948, %v2996
    %2998 = vdwg.mxu0
    %2999 = vmatpush.bf16.msra.mxu0 %v1502
    %3000 = vmatpush.bf16.msra.mxu0 %v1498
    %3001 = vmatpush.bf16.msra.mxu0 %v1494
    %3002 = vmatpush.bf16.msra.mxu0 %v1490
    %3003 = vmatpush.bf16.msra.mxu0 %v1486
    %3004 = vmatpush.bf16.msra.mxu0 %v1482
    %3005 = vmatpush.bf16.msra.mxu0 %v1478
    %3006 = vmatpush.bf16.msra.mxu0 %v1474
    %3007 = vmatmul.bf16.gmra.mxu0 %v594
    %v3008 = vpop.f32.mrf.mxu0
    %v3009 = vadd.f32 %v2960, %v3008
    %v3010 = vpop.f32.mrf.mxu0
    %v3011 = vadd.f32 %v2962, %v3010
    %3012 = vmatmul.bf16.gmra.mxu0 %v601
    %v3013 = vpop.f32.mrf.mxu0
    %v3014 = vadd.f32 %v2965, %v3013
    %v3015 = vpop.f32.mrf.mxu0
    %v3016 = vadd.f32 %v2967, %v3015
    %3017 = vmatmul.bf16.gmra.mxu0 %v608
    %v3018 = vpop.f32.mrf.mxu0
    %v3019 = vadd.f32 %v2970, %v3018
    %v3020 = vpop.f32.mrf.mxu0
    %v3021 = vadd.f32 %v2972, %v3020
    %3022 = vmatmul.bf16.gmra.mxu0 %v615
    %v3023 = vpop.f32.mrf.mxu0
    %v3024 = vadd.f32 %v2975, %v3023
    %v3025 = vpop.f32.mrf.mxu0
    %v3026 = vadd.f32 %v2977, %v3025
    %3027 = vmatmul.bf16.gmra.mxu0 %v622
    %v3028 = vpop.f32.mrf.mxu0
    %v3029 = vadd.f32 %v2980, %v3028
    %v3030 = vpop.f32.mrf.mxu0
    %v3031 = vadd.f32 %v2982, %v3030
    %3032 = vmatmul.bf16.gmra.mxu0 %v629
    %v3033 = vpop.f32.mrf.mxu0
    %v3034 = vadd.f32 %v2985, %v3033
    %v3035 = vpop.f32.mrf.mxu0
    %v3036 = vadd.f32 %v2987, %v3035
    %3037 = vmatmul.bf16.gmra.mxu0 %v636
    %v3038 = vpop.f32.mrf.mxu0
    %v3039 = vadd.f32 %v2990, %v3038
    %v3040 = vpop.f32.mrf.mxu0
    %v3041 = vadd.f32 %v2992, %v3040
    %3042 = vmatmul.bf16.gmra.mxu0 %v643
    %v3043 = vpop.f32.mrf.mxu0
    %v3044 = vadd.f32 %v2995, %v3043
    %v3045 = vpop.f32.mrf.mxu0
    %v3046 = vadd.f32 %v2997, %v3045
    %3047 = vdwg.mxu0
    %3048 = vmatpush.bf16.msra.mxu0 %v1534
    %3049 = vmatpush.bf16.msra.mxu0 %v1530
    %3050 = vmatpush.bf16.msra.mxu0 %v1526
    %3051 = vmatpush.bf16.msra.mxu0 %v1522
    %3052 = vmatpush.bf16.msra.mxu0 %v1518
    %3053 = vmatpush.bf16.msra.mxu0 %v1514
    %3054 = vmatpush.bf16.msra.mxu0 %v1510
    %3055 = vmatpush.bf16.msra.mxu0 %v1506
    %3056 = vmatmul.bf16.gmra.mxu0 %v595
    %v3057 = vpop.f32.mrf.mxu0
    %v3058 = vadd.f32 %v3009, %v3057
    %v3059 = vpop.f32.mrf.mxu0
    %v3060 = vadd.f32 %v3011, %v3059
    %3061 = vmatmul.bf16.gmra.mxu0 %v602
    %v3062 = vpop.f32.mrf.mxu0
    %v3063 = vadd.f32 %v3014, %v3062
    %v3064 = vpop.f32.mrf.mxu0
    %v3065 = vadd.f32 %v3016, %v3064
    %3066 = vmatmul.bf16.gmra.mxu0 %v609
    %v3067 = vpop.f32.mrf.mxu0
    %v3068 = vadd.f32 %v3019, %v3067
    %v3069 = vpop.f32.mrf.mxu0
    %v3070 = vadd.f32 %v3021, %v3069
    %3071 = vmatmul.bf16.gmra.mxu0 %v616
    %v3072 = vpop.f32.mrf.mxu0
    %v3073 = vadd.f32 %v3024, %v3072
    %v3074 = vpop.f32.mrf.mxu0
    %v3075 = vadd.f32 %v3026, %v3074
    %3076 = vmatmul.bf16.gmra.mxu0 %v623
    %v3077 = vpop.f32.mrf.mxu0
    %v3078 = vadd.f32 %v3029, %v3077
    %v3079 = vpop.f32.mrf.mxu0
    %v3080 = vadd.f32 %v3031, %v3079
    %3081 = vmatmul.bf16.gmra.mxu0 %v630
    %v3082 = vpop.f32.mrf.mxu0
    %v3083 = vadd.f32 %v3034, %v3082
    %v3084 = vpop.f32.mrf.mxu0
    %v3085 = vadd.f32 %v3036, %v3084
    %3086 = vmatmul.bf16.gmra.mxu0 %v637
    %v3087 = vpop.f32.mrf.mxu0
    %v3088 = vadd.f32 %v3039, %v3087
    %v3089 = vpop.f32.mrf.mxu0
    %v3090 = vadd.f32 %v3041, %v3089
    %3091 = vmatmul.bf16.gmra.mxu0 %v644
    %v3092 = vpop.f32.mrf.mxu0
    %v3093 = vadd.f32 %v3044, %v3092
    %v3094 = vpop.f32.mrf.mxu0
    %v3095 = vadd.f32 %v3046, %v3094
    %3096 = vdwg.mxu0
    %3097 = vmatpush.bf16.msra.mxu0 %v1566
    %3098 = vmatpush.bf16.msra.mxu0 %v1562
    %3099 = vmatpush.bf16.msra.mxu0 %v1558
    %3100 = vmatpush.bf16.msra.mxu0 %v1554
    %3101 = vmatpush.bf16.msra.mxu0 %v1550
    %3102 = vmatpush.bf16.msra.mxu0 %v1546
    %3103 = vmatpush.bf16.msra.mxu0 %v1542
    %3104 = vmatpush.bf16.msra.mxu0 %v1538
    %3105 = vmatmul.bf16.gmra.mxu0 %v596
    %v3106 = vpop.f32.mrf.mxu0
    %v3107 = vadd.f32 %v3058, %v3106
    %v3108 = vpop.f32.mrf.mxu0
    %v3109 = vadd.f32 %v3060, %v3108
    %3110 = vmatmul.bf16.gmra.mxu0 %v603
    %v3111 = vpop.f32.mrf.mxu0
    %v3112 = vadd.f32 %v3063, %v3111
    %v3113 = vpop.f32.mrf.mxu0
    %v3114 = vadd.f32 %v3065, %v3113
    %3115 = vmatmul.bf16.gmra.mxu0 %v610
    %v3116 = vpop.f32.mrf.mxu0
    %v3117 = vadd.f32 %v3068, %v3116
    %v3118 = vpop.f32.mrf.mxu0
    %v3119 = vadd.f32 %v3070, %v3118
    %3120 = vmatmul.bf16.gmra.mxu0 %v617
    %v3121 = vpop.f32.mrf.mxu0
    %v3122 = vadd.f32 %v3073, %v3121
    %v3123 = vpop.f32.mrf.mxu0
    %v3124 = vadd.f32 %v3075, %v3123
    %3125 = vmatmul.bf16.gmra.mxu0 %v624
    %v3126 = vpop.f32.mrf.mxu0
    %v3127 = vadd.f32 %v3078, %v3126
    %v3128 = vpop.f32.mrf.mxu0
    %v3129 = vadd.f32 %v3080, %v3128
    %3130 = vmatmul.bf16.gmra.mxu0 %v631
    %v3131 = vpop.f32.mrf.mxu0
    %v3132 = vadd.f32 %v3083, %v3131
    %v3133 = vpop.f32.mrf.mxu0
    %v3134 = vadd.f32 %v3085, %v3133
    %3135 = vmatmul.bf16.gmra.mxu0 %v638
    %v3136 = vpop.f32.mrf.mxu0
    %v3137 = vadd.f32 %v3088, %v3136
    %v3138 = vpop.f32.mrf.mxu0
    %v3139 = vadd.f32 %v3090, %v3138
    %3140 = vmatmul.bf16.gmra.mxu0 %v645
    %v3141 = vpop.f32.mrf.mxu0
    %v3142 = vadd.f32 %v3093, %v3141
    %v3143 = vpop.f32.mrf.mxu0
    %v3144 = vadd.f32 %v3095, %v3143
    %3145 = vdwg.mxu0
    %3146 = vmatpush.bf16.msra.mxu0 %v1598
    %3147 = vmatpush.bf16.msra.mxu0 %v1594
    %3148 = vmatpush.bf16.msra.mxu0 %v1590
    %3149 = vmatpush.bf16.msra.mxu0 %v1586
    %3150 = vmatpush.bf16.msra.mxu0 %v1582
    %3151 = vmatpush.bf16.msra.mxu0 %v1578
    %3152 = vmatpush.bf16.msra.mxu0 %v1574
    %3153 = vmatpush.bf16.msra.mxu0 %v1570
    %3154 = vmatmul.bf16.gmra.mxu0 %v597
    %v3155 = vpop.f32.mrf.mxu0
    %v3156 = vadd.f32 %v3107, %v3155
    %v3157 = vpop.f32.mrf.mxu0
    %v3158 = vadd.f32 %v3109, %v3157
    %3159 = vmatmul.bf16.gmra.mxu0 %v604
    %v3160 = vpop.f32.mrf.mxu0
    %v3161 = vadd.f32 %v3112, %v3160
    %v3162 = vpop.f32.mrf.mxu0
    %v3163 = vadd.f32 %v3114, %v3162
    %3164 = vmatmul.bf16.gmra.mxu0 %v611
    %v3165 = vpop.f32.mrf.mxu0
    %v3166 = vadd.f32 %v3117, %v3165
    %v3167 = vpop.f32.mrf.mxu0
    %v3168 = vadd.f32 %v3119, %v3167
    %3169 = vmatmul.bf16.gmra.mxu0 %v618
    %v3170 = vpop.f32.mrf.mxu0
    %v3171 = vadd.f32 %v3122, %v3170
    %v3172 = vpop.f32.mrf.mxu0
    %v3173 = vadd.f32 %v3124, %v3172
    %3174 = vmatmul.bf16.gmra.mxu0 %v625
    %v3175 = vpop.f32.mrf.mxu0
    %v3176 = vadd.f32 %v3127, %v3175
    %v3177 = vpop.f32.mrf.mxu0
    %v3178 = vadd.f32 %v3129, %v3177
    %3179 = vmatmul.bf16.gmra.mxu0 %v632
    %v3180 = vpop.f32.mrf.mxu0
    %v3181 = vadd.f32 %v3132, %v3180
    %v3182 = vpop.f32.mrf.mxu0
    %v3183 = vadd.f32 %v3134, %v3182
    %3184 = vmatmul.bf16.gmra.mxu0 %v639
    %v3185 = vpop.f32.mrf.mxu0
    %v3186 = vadd.f32 %v3137, %v3185
    %v3187 = vpop.f32.mrf.mxu0
    %v3188 = vadd.f32 %v3139, %v3187
    %3189 = vmatmul.bf16.gmra.mxu0 %v646
    %v3190 = vpop.f32.mrf.mxu0
    %v3191 = vadd.f32 %v3142, %v3190
    %v3192 = vpop.f32.mrf.mxu0
    %v3193 = vadd.f32 %v3144, %v3192
    %3194 = vdwg.mxu0
    %v3195 = vmax.f32 %v2127, 0.0
    %v3196 = vmax.f32 %v2470, 0.0
    %v3197 = vmax.f32 %v2813, 0.0
    %v3198 = vmax.f32 %v3156, 0.0
    %v3199 = vmax.f32 %v2129, 0.0
    %v3200 = vmax.f32 %v2472, 0.0
    %v3201 = vmax.f32 %v2815, 0.0
    %v3202 = vmax.f32 %v3158, 0.0
    %v3203 = vmax.f32 %v2132, 0.0
    %v3204 = vmax.f32 %v2475, 0.0
    %v3205 = vmax.f32 %v2818, 0.0
    %v3206 = vmax.f32 %v3161, 0.0
    %v3207 = vmax.f32 %v2134, 0.0
    %v3208 = vmax.f32 %v2477, 0.0
    %v3209 = vmax.f32 %v2820, 0.0
    %v3210 = vmax.f32 %v3163, 0.0
    %v3211 = vmax.f32 %v2137, 0.0
    %v3212 = vmax.f32 %v2480, 0.0
    %v3213 = vmax.f32 %v2823, 0.0
    %v3214 = vmax.f32 %v3166, 0.0
    %v3215 = vmax.f32 %v2139, 0.0
    %v3216 = vmax.f32 %v2482, 0.0
    %v3217 = vmax.f32 %v2825, 0.0
    %v3218 = vmax.f32 %v3168, 0.0
    %v3219 = vmax.f32 %v2142, 0.0
    %v3220 = vmax.f32 %v2485, 0.0
    %v3221 = vmax.f32 %v2828, 0.0
    %v3222 = vmax.f32 %v3171, 0.0
    %v3223 = vmax.f32 %v2144, 0.0
    %v3224 = vmax.f32 %v2487, 0.0
    %v3225 = vmax.f32 %v2830, 0.0
    %v3226 = vmax.f32 %v3173, 0.0
    %v3227 = vmax.f32 %v2147, 0.0
    %v3228 = vmax.f32 %v2490, 0.0
    %v3229 = vmax.f32 %v2833, 0.0
    %v3230 = vmax.f32 %v3176, 0.0
    %v3231 = vmax.f32 %v2149, 0.0
    %v3232 = vmax.f32 %v2492, 0.0
    %v3233 = vmax.f32 %v2835, 0.0
    %v3234 = vmax.f32 %v3178, 0.0
    %v3235 = vmax.f32 %v2152, 0.0
    %v3236 = vmax.f32 %v2495, 0.0
    %v3237 = vmax.f32 %v2838, 0.0
    %v3238 = vmax.f32 %v3181, 0.0
    %v3239 = vmax.f32 %v2154, 0.0
    %v3240 = vmax.f32 %v2497, 0.0
    %v3241 = vmax.f32 %v2840, 0.0
    %v3242 = vmax.f32 %v3183, 0.0
    %v3243 = vmax.f32 %v2157, 0.0
    %v3244 = vmax.f32 %v2500, 0.0
    %v3245 = vmax.f32 %v2843, 0.0
    %v3246 = vmax.f32 %v3186, 0.0
    %v3247 = vmax.f32 %v2159, 0.0
    %v3248 = vmax.f32 %v2502, 0.0
    %v3249 = vmax.f32 %v2845, 0.0
    %v3250 = vmax.f32 %v3188, 0.0
    %v3251 = vmax.f32 %v2162, 0.0
    %v3252 = vmax.f32 %v2505, 0.0
    %v3253 = vmax.f32 %v2848, 0.0
    %v3254 = vmax.f32 %v3191, 0.0
    %v3255 = vmax.f32 %v2164, 0.0
    %v3256 = vmax.f32 %v2507, 0.0
    %v3257 = vmax.f32 %v2850, 0.0
    %v3258 = vmax.f32 %v3193, 0.0
    %v3259 = vpack.c.bf16 %v3196, %v3195
    %v3260 = vpack.c.bf16 %v3198, %v3197
    %v3261 = vpack.c.bf16 %v3200, %v3199
    %v3262 = vpack.c.bf16 %v3202, %v3201
    %v3263 = vpack.c.bf16 %v3204, %v3203
    %v3264 = vpack.c.bf16 %v3206, %v3205
    %v3265 = vpack.c.bf16 %v3208, %v3207
    %v3266 = vpack.c.bf16 %v3210, %v3209
    %v3267 = vpack.c.bf16 %v3212, %v3211
    %v3268 = vpack.c.bf16 %v3214, %v3213
    %v3269 = vpack.c.bf16 %v3216, %v3215
    %v3270 = vpack.c.bf16 %v3218, %v3217
    %v3271 = vpack.c.bf16 %v3220, %v3219
    %v3272 = vpack.c.bf16 %v3222, %v3221
    %v3273 = vpack.c.bf16 %v3224, %v3223
    %v3274 = vpack.c.bf16 %v3226, %v3225
    %v3275 = vpack.c.bf16 %v3228, %v3227
    %v3276 = vpack.c.bf16 %v3230, %v3229
    %v3277 = vpack.c.bf16 %v3232, %v3231
    %v3278 = vpack.c.bf16 %v3234, %v3233
    %v3279 = vpack.c.bf16 %v3236, %v3235
    %v3280 = vpack.c.bf16 %v3238, %v3237
    %v3281 = vpack.c.bf16 %v3240, %v3239
    %v3282 = vpack.c.bf16 %v3242, %v3241
    %v3283 = vpack.c.bf16 %v3244, %v3243
    %v3284 = vpack.c.bf16 %v3246, %v3245
    %v3285 = vpack.c.bf16 %v3248, %v3247
    %v3286 = vpack.c.bf16 %v3250, %v3249
    %v3287 = vpack.c.bf16 %v3252, %v3251
    %v3288 = vpack.c.bf16 %v3254, %v3253
    %v3289 = vpack.c.bf16 %v3256, %v3255
    %v3290 = vpack.c.bf16 %v3258, %v3257
    %3291 = vst [vmem:[#allocation2] sm:$0xff] %v3259
    %3292 = vst [vmem:[#allocation2 + $0x8] sm:$0xff] %v3260
    %3293 = vst [vmem:[#allocation2 + $0x10] sm:$0xff] %v3261
    %3294 = vst [vmem:[#allocation2 + $0x18] sm:$0xff] %v3262
    %3295 = vst [vmem:[#allocation2 + $0x20] sm:$0xff] %v3263
    %3296 = vst [vmem:[#allocation2 + $0x28] sm:$0xff] %v3264
    %3297 = vst [vmem:[#allocation2 + $0x30] sm:$0xff] %v3265
    %3298 = vst [vmem:[#allocation2 + $0x38] sm:$0xff] %v3266
    %3299 = vst [vmem:[#allocation2 + $0x40] sm:$0xff] %v3267
    %3300 = vst [vmem:[#allocation2 + $0x48] sm:$0xff] %v3268
    %3301 = vst [vmem:[#allocation2 + $0x50] sm:$0xff] %v3269
    %3302 = vst [vmem:[#allocation2 + $0x58] sm:$0xff] %v3270
    %3303 = vst [vmem:[#allocation2 + $0x60] sm:$0xff] %v3271
    %3304 = vst [vmem:[#allocation2 + $0x68] sm:$0xff] %v3272
    %3305 = vst [vmem:[#allocation2 + $0x70] sm:$0xff] %v3273
    %3306 = vst [vmem:[#allocation2 + $0x78] sm:$0xff] %v3274
    %3307 = vst [vmem:[#allocation2 + $0x80] sm:$0xff] %v3275
    %3308 = vst [vmem:[#allocation2 + $0x88] sm:$0xff] %v3276
    %3309 = vst [vmem:[#allocation2 + $0x90] sm:$0xff] %v3277
    %3310 = vst [vmem:[#allocation2 + $0x98] sm:$0xff] %v3278
    %3311 = vst [vmem:[#allocation2 + $0xa0] sm:$0xff] %v3279
    %3312 = vst [vmem:[#allocation2 + $0xa8] sm:$0xff] %v3280
    %3313 = vst [vmem:[#allocation2 + $0xb0] sm:$0xff] %v3281
    %3314 = vst [vmem:[#allocation2 + $0xb8] sm:$0xff] %v3282
    %3315 = vst [vmem:[#allocation2 + $0xc0] sm:$0xff] %v3283
    %3316 = vst [vmem:[#allocation2 + $0xc8] sm:$0xff] %v3284
    %3317 = vst [vmem:[#allocation2 + $0xd0] sm:$0xff] %v3285
    %3318 = vst [vmem:[#allocation2 + $0xd8] sm:$0xff] %v3286
    %3319 = vst [vmem:[#allocation2 + $0xe0] sm:$0xff] %v3287
    %3320 = vst [vmem:[#allocation2 + $0xe8] sm:$0xff] %v3288
    %3321 = vst [vmem:[#allocation2 + $0xf0] sm:$0xff] %v3289
    %3322 = vst [vmem:[#allocation2 + $0xf8] sm:$0xff] %v3290
    %v3323 = vld [vmem:[#allocation2] sm:$0xff]
    %v3324 = vld [vmem:[#allocation2 + $0x8] sm:$0xff]
    %v3325 = vld [vmem:[#allocation2 + $0x10] sm:$0xff]
    %v3326 = vld [vmem:[#allocation2 + $0x18] sm:$0xff]
    %v3327 = vld [vmem:[#allocation2 + $0x20] sm:$0xff]
    %v3328 = vld [vmem:[#allocation2 + $0x28] sm:$0xff]
    %v3329 = vld [vmem:[#allocation2 + $0x30] sm:$0xff]
    %v3330 = vld [vmem:[#allocation2 + $0x38] sm:$0xff]
    %v3331 = vld [vmem:[#allocation2 + $0x40] sm:$0xff]
    %v3332 = vld [vmem:[#allocation2 + $0x48] sm:$0xff]
    %v3333 = vld [vmem:[#allocation2 + $0x50] sm:$0xff]
    %v3334 = vld [vmem:[#allocation2 + $0x58] sm:$0xff]
    %v3335 = vld [vmem:[#allocation2 + $0x60] sm:$0xff]
    %v3336 = vld [vmem:[#allocation2 + $0x68] sm:$0xff]
    %v3337 = vld [vmem:[#allocation2 + $0x70] sm:$0xff]
    %v3338 = vld [vmem:[#allocation2 + $0x78] sm:$0xff]
    %v3339 = vld [vmem:[#allocation2 + $0x80] sm:$0xff]
    %v3340 = vld [vmem:[#allocation2 + $0x88] sm:$0xff]
    %v3341 = vld [vmem:[#allocation2 + $0x90] sm:$0xff]
    %v3342 = vld [vmem:[#allocation2 + $0x98] sm:$0xff]
    %v3343 = vld [vmem:[#allocation2 + $0xa0] sm:$0xff]
    %v3344 = vld [vmem:[#allocation2 + $0xa8] sm:$0xff]
    %v3345 = vld [vmem:[#allocation2 + $0xb0] sm:$0xff]
    %v3346 = vld [vmem:[#allocation2 + $0xb8] sm:$0xff]
    %v3347 = vld [vmem:[#allocation2 + $0xc0] sm:$0xff]
    %v3348 = vld [vmem:[#allocation2 + $0xc8] sm:$0xff]
    %v3349 = vld [vmem:[#allocation2 + $0xd0] sm:$0xff]
    %v3350 = vld [vmem:[#allocation2 + $0xd8] sm:$0xff]
    %v3351 = vld [vmem:[#allocation2 + $0xe0] sm:$0xff]
    %v3352 = vld [vmem:[#allocation2 + $0xe8] sm:$0xff]
    %v3353 = vld [vmem:[#allocation2 + $0xf0] sm:$0xff]
    %v3354 = vld [vmem:[#allocation2 + $0xf8] sm:$0xff]
    %v3355 = vld [vmem:[#allocation10] sm:$0xff]
    %v3356 = vld [vmem:[#allocation10 + $0x8] sm:$0xff]
    %v3357 = vld [vmem:[#allocation10 + $0x10] sm:$0xff]
    %v3358 = vld [vmem:[#allocation10 + $0x18] sm:$0xff]
    %v3359 = vld [vmem:[#allocation10 + $0x20] sm:$0xff]
    %v3360 = vld [vmem:[#allocation10 + $0x28] sm:$0xff]
    %v3361 = vld [vmem:[#allocation10 + $0x30] sm:$0xff]
    %v3362 = vld [vmem:[#allocation10 + $0x38] sm:$0xff]
    %v3363 = vld [vmem:[#allocation10 + $0x40] sm:$0xff]
    %v3364 = vld [vmem:[#allocation10 + $0x48] sm:$0xff]
    %v3365 = vld [vmem:[#allocation10 + $0x50] sm:$0xff]
    %v3366 = vld [vmem:[#allocation10 + $0x58] sm:$0xff]
    %v3367 = vld [vmem:[#allocation10 + $0x60] sm:$0xff]
    %v3368 = vld [vmem:[#allocation10 + $0x68] sm:$0xff]
    %v3369 = vld [vmem:[#allocation10 + $0x70] sm:$0xff]
    %v3370 = vld [vmem:[#allocation10 + $0x78] sm:$0xff]
    %v3371 = vld [vmem:[#allocation10 + $0x80] sm:$0xff]
    %v3372 = vld [vmem:[#allocation10 + $0x88] sm:$0xff]
    %v3373 = vld [vmem:[#allocation10 + $0x90] sm:$0xff]
    %v3374 = vld [vmem:[#allocation10 + $0x98] sm:$0xff]
    %v3375 = vld [vmem:[#allocation10 + $0xa0] sm:$0xff]
    %v3376 = vld [vmem:[#allocation10 + $0xa8] sm:$0xff]
    %v3377 = vld [vmem:[#allocation10 + $0xb0] sm:$0xff]
    %v3378 = vld [vmem:[#allocation10 + $0xb8] sm:$0xff]
    %v3379 = vld [vmem:[#allocation10 + $0xc0] sm:$0xff]
    %v3380 = vld [vmem:[#allocation10 + $0xc8] sm:$0xff]
    %v3381 = vld [vmem:[#allocation10 + $0xd0] sm:$0xff]
    %v3382 = vld [vmem:[#allocation10 + $0xd8] sm:$0xff]
    %v3383 = vld [vmem:[#allocation10 + $0xe0] sm:$0xff]
    %v3384 = vld [vmem:[#allocation10 + $0xe8] sm:$0xff]
    %v3385 = vld [vmem:[#allocation10 + $0xf0] sm:$0xff]
    %v3386 = vld [vmem:[#allocation10 + $0xf8] sm:$0xff]
    %v3387 = vld [vmem:[#allocation10 + $0x100] sm:$0xff]
    %v3388 = vld [vmem:[#allocation10 + $0x108] sm:$0xff]
    %v3389 = vld [vmem:[#allocation10 + $0x110] sm:$0xff]
    %v3390 = vld [vmem:[#allocation10 + $0x118] sm:$0xff]
    %v3391 = vld [vmem:[#allocation10 + $0x120] sm:$0xff]
    %v3392 = vld [vmem:[#allocation10 + $0x128] sm:$0xff]
    %v3393 = vld [vmem:[#allocation10 + $0x130] sm:$0xff]
    %v3394 = vld [vmem:[#allocation10 + $0x138] sm:$0xff]
    %v3395 = vld [vmem:[#allocation10 + $0x140] sm:$0xff]
    %v3396 = vld [vmem:[#allocation10 + $0x148] sm:$0xff]
    %v3397 = vld [vmem:[#allocation10 + $0x150] sm:$0xff]
    %v3398 = vld [vmem:[#allocation10 + $0x158] sm:$0xff]
    %v3399 = vld [vmem:[#allocation10 + $0x160] sm:$0xff]
    %v3400 = vld [vmem:[#allocation10 + $0x168] sm:$0xff]
    %v3401 = vld [vmem:[#allocation10 + $0x170] sm:$0xff]
    %v3402 = vld [vmem:[#allocation10 + $0x178] sm:$0xff]
    %v3403 = vld [vmem:[#allocation10 + $0x180] sm:$0xff]
    %v3404 = vld [vmem:[#allocation10 + $0x188] sm:$0xff]
    %v3405 = vld [vmem:[#allocation10 + $0x190] sm:$0xff]
    %v3406 = vld [vmem:[#allocation10 + $0x198] sm:$0xff]
    %v3407 = vld [vmem:[#allocation10 + $0x1a0] sm:$0xff]
    %v3408 = vld [vmem:[#allocation10 + $0x1a8] sm:$0xff]
    %v3409 = vld [vmem:[#allocation10 + $0x1b0] sm:$0xff]
    %v3410 = vld [vmem:[#allocation10 + $0x1b8] sm:$0xff]
    %v3411 = vld [vmem:[#allocation10 + $0x1c0] sm:$0xff]
    %v3412 = vld [vmem:[#allocation10 + $0x1c8] sm:$0xff]
    %v3413 = vld [vmem:[#allocation10 + $0x1d0] sm:$0xff]
    %v3414 = vld [vmem:[#allocation10 + $0x1d8] sm:$0xff]
    %v3415 = vld [vmem:[#allocation10 + $0x1e0] sm:$0xff]
    %v3416 = vld [vmem:[#allocation10 + $0x1e8] sm:$0xff]
    %v3417 = vld [vmem:[#allocation10 + $0x1f0] sm:$0xff]
    %v3418 = vld [vmem:[#allocation10 + $0x1f8] sm:$0xff]
    %v3419 = vld [vmem:[#allocation10 + $0x200] sm:$0xff]
    %v3420 = vld [vmem:[#allocation10 + $0x208] sm:$0xff]
    %v3421 = vld [vmem:[#allocation10 + $0x210] sm:$0xff]
    %v3422 = vld [vmem:[#allocation10 + $0x218] sm:$0xff]
    %v3423 = vld [vmem:[#allocation10 + $0x220] sm:$0xff]
    %v3424 = vld [vmem:[#allocation10 + $0x228] sm:$0xff]
    %v3425 = vld [vmem:[#allocation10 + $0x230] sm:$0xff]
    %v3426 = vld [vmem:[#allocation10 + $0x238] sm:$0xff]
    %v3427 = vld [vmem:[#allocation10 + $0x240] sm:$0xff]
    %v3428 = vld [vmem:[#allocation10 + $0x248] sm:$0xff]
    %v3429 = vld [vmem:[#allocation10 + $0x250] sm:$0xff]
    %v3430 = vld [vmem:[#allocation10 + $0x258] sm:$0xff]
    %v3431 = vld [vmem:[#allocation10 + $0x260] sm:$0xff]
    %v3432 = vld [vmem:[#allocation10 + $0x268] sm:$0xff]
    %v3433 = vld [vmem:[#allocation10 + $0x270] sm:$0xff]
    %v3434 = vld [vmem:[#allocation10 + $0x278] sm:$0xff]
    %v3435 = vld [vmem:[#allocation10 + $0x280] sm:$0xff]
    %v3436 = vld [vmem:[#allocation10 + $0x288] sm:$0xff]
    %v3437 = vld [vmem:[#allocation10 + $0x290] sm:$0xff]
    %v3438 = vld [vmem:[#allocation10 + $0x298] sm:$0xff]
    %v3439 = vld [vmem:[#allocation10 + $0x2a0] sm:$0xff]
    %v3440 = vld [vmem:[#allocation10 + $0x2a8] sm:$0xff]
    %v3441 = vld [vmem:[#allocation10 + $0x2b0] sm:$0xff]
    %v3442 = vld [vmem:[#allocation10 + $0x2b8] sm:$0xff]
    %v3443 = vld [vmem:[#allocation10 + $0x2c0] sm:$0xff]
    %v3444 = vld [vmem:[#allocation10 + $0x2c8] sm:$0xff]
    %v3445 = vld [vmem:[#allocation10 + $0x2d0] sm:$0xff]
    %v3446 = vld [vmem:[#allocation10 + $0x2d8] sm:$0xff]
    %v3447 = vld [vmem:[#allocation10 + $0x2e0] sm:$0xff]
    %v3448 = vld [vmem:[#allocation10 + $0x2e8] sm:$0xff]
    %v3449 = vld [vmem:[#allocation10 + $0x2f0] sm:$0xff]
    %v3450 = vld [vmem:[#allocation10 + $0x2f8] sm:$0xff]
    %v3451 = vld [vmem:[#allocation10 + $0x300] sm:$0xff]
    %v3452 = vld [vmem:[#allocation10 + $0x308] sm:$0xff]
    %v3453 = vld [vmem:[#allocation10 + $0x310] sm:$0xff]
    %v3454 = vld [vmem:[#allocation10 + $0x318] sm:$0xff]
    %v3455 = vld [vmem:[#allocation10 + $0x320] sm:$0xff]
    %v3456 = vld [vmem:[#allocation10 + $0x328] sm:$0xff]
    %v3457 = vld [vmem:[#allocation10 + $0x330] sm:$0xff]
    %v3458 = vld [vmem:[#allocation10 + $0x338] sm:$0xff]
    %v3459 = vld [vmem:[#allocation10 + $0x340] sm:$0xff]
    %v3460 = vld [vmem:[#allocation10 + $0x348] sm:$0xff]
    %v3461 = vld [vmem:[#allocation10 + $0x350] sm:$0xff]
    %v3462 = vld [vmem:[#allocation10 + $0x358] sm:$0xff]
    %v3463 = vld [vmem:[#allocation10 + $0x360] sm:$0xff]
    %v3464 = vld [vmem:[#allocation10 + $0x368] sm:$0xff]
    %v3465 = vld [vmem:[#allocation10 + $0x370] sm:$0xff]
    %v3466 = vld [vmem:[#allocation10 + $0x378] sm:$0xff]
    %v3467 = vld [vmem:[#allocation10 + $0x380] sm:$0xff]
    %v3468 = vld [vmem:[#allocation10 + $0x388] sm:$0xff]
    %v3469 = vld [vmem:[#allocation10 + $0x390] sm:$0xff]
    %v3470 = vld [vmem:[#allocation10 + $0x398] sm:$0xff]
    %v3471 = vld [vmem:[#allocation10 + $0x3a0] sm:$0xff]
    %v3472 = vld [vmem:[#allocation10 + $0x3a8] sm:$0xff]
    %v3473 = vld [vmem:[#allocation10 + $0x3b0] sm:$0xff]
    %v3474 = vld [vmem:[#allocation10 + $0x3b8] sm:$0xff]
    %v3475 = vld [vmem:[#allocation10 + $0x3c0] sm:$0xff]
    %v3476 = vld [vmem:[#allocation10 + $0x3c8] sm:$0xff]
    %v3477 = vld [vmem:[#allocation10 + $0x3d0] sm:$0xff]
    %v3478 = vld [vmem:[#allocation10 + $0x3d8] sm:$0xff]
    %v3479 = vld [vmem:[#allocation10 + $0x3e0] sm:$0xff]
    %v3480 = vld [vmem:[#allocation10 + $0x3e8] sm:$0xff]
    %v3481 = vld [vmem:[#allocation10 + $0x3f0] sm:$0xff]
    %v3482 = vld [vmem:[#allocation10 + $0x3f8] sm:$0xff]
    %v3483 = vld [vmem:[#allocation12] sm:$0xf]
    %v3485 = vperm.slane %v3483, 0
    %v3486 = vperm.slane %v3483, 1
    %v3487 = vperm.slane %v3483, 2
    %v3488 = vperm.slane %v3483, 3
    %v3525 = vunpack.c.l.b16 %v3323
    %v3526 = vunpack.c.h.b16 %v3323
    %v3527 = vunpack.c.l.b16 %v3324
    %v3528 = vunpack.c.h.b16 %v3324
    %v3529 = vunpack.c.l.b16 %v3325
    %v3530 = vunpack.c.h.b16 %v3325
    %v3531 = vunpack.c.l.b16 %v3326
    %v3532 = vunpack.c.h.b16 %v3326
    %v3533 = vunpack.c.l.b16 %v3327
    %v3534 = vunpack.c.h.b16 %v3327
    %v3535 = vunpack.c.l.b16 %v3328
    %v3536 = vunpack.c.h.b16 %v3328
    %v3537 = vunpack.c.l.b16 %v3329
    %v3538 = vunpack.c.h.b16 %v3329
    %v3539 = vunpack.c.l.b16 %v3330
    %v3540 = vunpack.c.h.b16 %v3330
    %v3541 = vunpack.c.l.b16 %v3331
    %v3542 = vunpack.c.h.b16 %v3331
    %v3543 = vunpack.c.l.b16 %v3332
    %v3544 = vunpack.c.h.b16 %v3332
    %v3545 = vunpack.c.l.b16 %v3333
    %v3546 = vunpack.c.h.b16 %v3333
    %v3547 = vunpack.c.l.b16 %v3334
    %v3548 = vunpack.c.h.b16 %v3334
    %v3549 = vunpack.c.l.b16 %v3335
    %v3550 = vunpack.c.h.b16 %v3335
    %v3551 = vunpack.c.l.b16 %v3336
    %v3552 = vunpack.c.h.b16 %v3336
    %v3553 = vunpack.c.l.b16 %v3337
    %v3554 = vunpack.c.h.b16 %v3337
    %v3555 = vunpack.c.l.b16 %v3338
    %v3556 = vunpack.c.h.b16 %v3338
    %v3557 = vunpack.c.l.b16 %v3339
    %v3558 = vunpack.c.h.b16 %v3339
    %v3559 = vunpack.c.l.b16 %v3340
    %v3560 = vunpack.c.h.b16 %v3340
    %v3561 = vunpack.c.l.b16 %v3341
    %v3562 = vunpack.c.h.b16 %v3341
    %v3563 = vunpack.c.l.b16 %v3342
    %v3564 = vunpack.c.h.b16 %v3342
    %v3565 = vunpack.c.l.b16 %v3343
    %v3566 = vunpack.c.h.b16 %v3343
    %v3567 = vunpack.c.l.b16 %v3344
    %v3568 = vunpack.c.h.b16 %v3344
    %v3569 = vunpack.c.l.b16 %v3345
    %v3570 = vunpack.c.h.b16 %v3345
    %v3571 = vunpack.c.l.b16 %v3346
    %v3572 = vunpack.c.h.b16 %v3346
    %v3573 = vunpack.c.l.b16 %v3347
    %v3574 = vunpack.c.h.b16 %v3347
    %v3575 = vunpack.c.l.b16 %v3348
    %v3576 = vunpack.c.h.b16 %v3348
    %v3577 = vunpack.c.l.b16 %v3349
    %v3578 = vunpack.c.h.b16 %v3349
    %v3579 = vunpack.c.l.b16 %v3350
    %v3580 = vunpack.c.h.b16 %v3350
    %v3581 = vunpack.c.l.b16 %v3351
    %v3582 = vunpack.c.h.b16 %v3351
    %v3583 = vunpack.c.l.b16 %v3352
    %v3584 = vunpack.c.h.b16 %v3352
    %v3585 = vunpack.c.l.b16 %v3353
    %v3586 = vunpack.c.h.b16 %v3353
    %v3587 = vunpack.c.l.b16 %v3354
    %v3588 = vunpack.c.h.b16 %v3354
    %v3589 = vpack.c.b16 %v3529, %v3525
    %v3590 = vpack.c.b16 %v3530, %v3526
    %v3591 = vpack.c.b16 %v3531, %v3527
    %v3592 = vpack.c.b16 %v3532, %v3528
    %v3593 = vpack.c.b16 %v3537, %v3533
    %v3594 = vpack.c.b16 %v3538, %v3534
    %v3595 = vpack.c.b16 %v3539, %v3535
    %v3596 = vpack.c.b16 %v3540, %v3536
    %v3597 = vpack.c.b16 %v3545, %v3541
    %v3598 = vpack.c.b16 %v3546, %v3542
    %v3599 = vpack.c.b16 %v3547, %v3543
    %v3600 = vpack.c.b16 %v3548, %v3544
    %v3601 = vpack.c.b16 %v3553, %v3549
    %v3602 = vpack.c.b16 %v3554, %v3550
    %v3603 = vpack.c.b16 %v3555, %v3551
    %v3604 = vpack.c.b16 %v3556, %v3552
    %v3605 = vpack.c.b16 %v3561, %v3557
    %v3606 = vpack.c.b16 %v3562, %v3558
    %v3607 = vpack.c.b16 %v3563, %v3559
    %v3608 = vpack.c.b16 %v3564, %v3560
    %v3609 = vpack.c.b16 %v3569, %v3565
    %v3610 = vpack.c.b16 %v3570, %v3566
    %v3611 = vpack.c.b16 %v3571, %v3567
    %v3612 = vpack.c.b16 %v3572, %v3568
    %v3613 = vpack.c.b16 %v3577, %v3573
    %v3614 = vpack.c.b16 %v3578, %v3574
    %v3615 = vpack.c.b16 %v3579, %v3575
    %v3616 = vpack.c.b16 %v3580, %v3576
    %v3617 = vpack.c.b16 %v3585, %v3581
    %v3618 = vpack.c.b16 %v3586, %v3582
    %v3619 = vpack.c.b16 %v3587, %v3583
    %v3620 = vpack.c.b16 %v3588, %v3584
    %v3781 = vunpack.c.l.b16 %v3355
    %v3782 = vunpack.c.h.b16 %v3355
    %v3783 = vunpack.c.l.b16 %v3356
    %v3784 = vunpack.c.h.b16 %v3356
    %v3785 = vunpack.c.l.b16 %v3357
    %v3786 = vunpack.c.h.b16 %v3357
    %v3787 = vunpack.c.l.b16 %v3358
    %v3788 = vunpack.c.h.b16 %v3358
    %v3789 = vunpack.c.l.b16 %v3359
    %v3790 = vunpack.c.h.b16 %v3359
    %v3791 = vunpack.c.l.b16 %v3360
    %v3792 = vunpack.c.h.b16 %v3360
    %v3793 = vunpack.c.l.b16 %v3361
    %v3794 = vunpack.c.h.b16 %v3361
    %v3795 = vunpack.c.l.b16 %v3362
    %v3796 = vunpack.c.h.b16 %v3362
    %v3797 = vunpack.c.l.b16 %v3363
    %v3798 = vunpack.c.h.b16 %v3363
    %v3799 = vunpack.c.l.b16 %v3364
    %v3800 = vunpack.c.h.b16 %v3364
    %v3801 = vunpack.c.l.b16 %v3365
    %v3802 = vunpack.c.h.b16 %v3365
    %v3803 = vunpack.c.l.b16 %v3366
    %v3804 = vunpack.c.h.b16 %v3366
    %v3805 = vunpack.c.l.b16 %v3367
    %v3806 = vunpack.c.h.b16 %v3367
    %v3807 = vunpack.c.l.b16 %v3368
    %v3808 = vunpack.c.h.b16 %v3368
    %v3809 = vunpack.c.l.b16 %v3369
    %v3810 = vunpack.c.h.b16 %v3369
    %v3811 = vunpack.c.l.b16 %v3370
    %v3812 = vunpack.c.h.b16 %v3370
    %v3813 = vunpack.c.l.b16 %v3371
    %v3814 = vunpack.c.h.b16 %v3371
    %v3815 = vunpack.c.l.b16 %v3372
    %v3816 = vunpack.c.h.b16 %v3372
    %v3817 = vunpack.c.l.b16 %v3373
    %v3818 = vunpack.c.h.b16 %v3373
    %v3819 = vunpack.c.l.b16 %v3374
    %v3820 = vunpack.c.h.b16 %v3374
    %v3821 = vunpack.c.l.b16 %v3375
    %v3822 = vunpack.c.h.b16 %v3375
    %v3823 = vunpack.c.l.b16 %v3376
    %v3824 = vunpack.c.h.b16 %v3376
    %v3825 = vunpack.c.l.b16 %v3377
    %v3826 = vunpack.c.h.b16 %v3377
    %v3827 = vunpack.c.l.b16 %v3378
    %v3828 = vunpack.c.h.b16 %v3378
    %v3829 = vunpack.c.l.b16 %v3379
    %v3830 = vunpack.c.h.b16 %v3379
    %v3831 = vunpack.c.l.b16 %v3380
    %v3832 = vunpack.c.h.b16 %v3380
    %v3833 = vunpack.c.l.b16 %v3381
    %v3834 = vunpack.c.h.b16 %v3381
    %v3835 = vunpack.c.l.b16 %v3382
    %v3836 = vunpack.c.h.b16 %v3382
    %v3837 = vunpack.c.l.b16 %v3383
    %v3838 = vunpack.c.h.b16 %v3383
    %v3839 = vunpack.c.l.b16 %v3384
    %v3840 = vunpack.c.h.b16 %v3384
    %v3841 = vunpack.c.l.b16 %v3385
    %v3842 = vunpack.c.h.b16 %v3385
    %v3843 = vunpack.c.l.b16 %v3386
    %v3844 = vunpack.c.h.b16 %v3386
    %v3845 = vunpack.c.l.b16 %v3387
    %v3846 = vunpack.c.h.b16 %v3387
    %v3847 = vunpack.c.l.b16 %v3388
    %v3848 = vunpack.c.h.b16 %v3388
    %v3849 = vunpack.c.l.b16 %v3389
    %v3850 = vunpack.c.h.b16 %v3389
    %v3851 = vunpack.c.l.b16 %v3390
    %v3852 = vunpack.c.h.b16 %v3390
    %v3853 = vunpack.c.l.b16 %v3391
    %v3854 = vunpack.c.h.b16 %v3391
    %v3855 = vunpack.c.l.b16 %v3392
    %v3856 = vunpack.c.h.b16 %v3392
    %v3857 = vunpack.c.l.b16 %v3393
    %v3858 = vunpack.c.h.b16 %v3393
    %v3859 = vunpack.c.l.b16 %v3394
    %v3860 = vunpack.c.h.b16 %v3394
    %v3861 = vunpack.c.l.b16 %v3395
    %v3862 = vunpack.c.h.b16 %v3395
    %v3863 = vunpack.c.l.b16 %v3396
    %v3864 = vunpack.c.h.b16 %v3396
    %v3865 = vunpack.c.l.b16 %v3397
    %v3866 = vunpack.c.h.b16 %v3397
    %v3867 = vunpack.c.l.b16 %v3398
    %v3868 = vunpack.c.h.b16 %v3398
    %v3869 = vunpack.c.l.b16 %v3399
    %v3870 = vunpack.c.h.b16 %v3399
    %v3871 = vunpack.c.l.b16 %v3400
    %v3872 = vunpack.c.h.b16 %v3400
    %v3873 = vunpack.c.l.b16 %v3401
    %v3874 = vunpack.c.h.b16 %v3401
    %v3875 = vunpack.c.l.b16 %v3402
    %v3876 = vunpack.c.h.b16 %v3402
    %v3877 = vunpack.c.l.b16 %v3403
    %v3878 = vunpack.c.h.b16 %v3403
    %v3879 = vunpack.c.l.b16 %v3404
    %v3880 = vunpack.c.h.b16 %v3404
    %v3881 = vunpack.c.l.b16 %v3405
    %v3882 = vunpack.c.h.b16 %v3405
    %v3883 = vunpack.c.l.b16 %v3406
    %v3884 = vunpack.c.h.b16 %v3406
    %v3885 = vunpack.c.l.b16 %v3407
    %v3886 = vunpack.c.h.b16 %v3407
    %v3887 = vunpack.c.l.b16 %v3408
    %v3888 = vunpack.c.h.b16 %v3408
    %v3889 = vunpack.c.l.b16 %v3409
    %v3890 = vunpack.c.h.b16 %v3409
    %v3891 = vunpack.c.l.b16 %v3410
    %v3892 = vunpack.c.h.b16 %v3410
    %v3893 = vunpack.c.l.b16 %v3411
    %v3894 = vunpack.c.h.b16 %v3411
    %v3895 = vunpack.c.l.b16 %v3412
    %v3896 = vunpack.c.h.b16 %v3412
    %v3897 = vunpack.c.l.b16 %v3413
    %v3898 = vunpack.c.h.b16 %v3413
    %v3899 = vunpack.c.l.b16 %v3414
    %v3900 = vunpack.c.h.b16 %v3414
    %v3901 = vunpack.c.l.b16 %v3415
    %v3902 = vunpack.c.h.b16 %v3415
    %v3903 = vunpack.c.l.b16 %v3416
    %v3904 = vunpack.c.h.b16 %v3416
    %v3905 = vunpack.c.l.b16 %v3417
    %v3906 = vunpack.c.h.b16 %v3417
    %v3907 = vunpack.c.l.b16 %v3418
    %v3908 = vunpack.c.h.b16 %v3418
    %v3909 = vunpack.c.l.b16 %v3419
    %v3910 = vunpack.c.h.b16 %v3419
    %v3911 = vunpack.c.l.b16 %v3420
    %v3912 = vunpack.c.h.b16 %v3420
    %v3913 = vunpack.c.l.b16 %v3421
    %v3914 = vunpack.c.h.b16 %v3421
    %v3915 = vunpack.c.l.b16 %v3422
    %v3916 = vunpack.c.h.b16 %v3422
    %v3917 = vunpack.c.l.b16 %v3423
    %v3918 = vunpack.c.h.b16 %v3423
    %v3919 = vunpack.c.l.b16 %v3424
    %v3920 = vunpack.c.h.b16 %v3424
    %v3921 = vunpack.c.l.b16 %v3425
    %v3922 = vunpack.c.h.b16 %v3425
    %v3923 = vunpack.c.l.b16 %v3426
    %v3924 = vunpack.c.h.b16 %v3426
    %v3925 = vunpack.c.l.b16 %v3427
    %v3926 = vunpack.c.h.b16 %v3427
    %v3927 = vunpack.c.l.b16 %v3428
    %v3928 = vunpack.c.h.b16 %v3428
    %v3929 = vunpack.c.l.b16 %v3429
    %v3930 = vunpack.c.h.b16 %v3429
    %v3931 = vunpack.c.l.b16 %v3430
    %v3932 = vunpack.c.h.b16 %v3430
    %v3933 = vunpack.c.l.b16 %v3431
    %v3934 = vunpack.c.h.b16 %v3431
    %v3935 = vunpack.c.l.b16 %v3432
    %v3936 = vunpack.c.h.b16 %v3432
    %v3937 = vunpack.c.l.b16 %v3433
    %v3938 = vunpack.c.h.b16 %v3433
    %v3939 = vunpack.c.l.b16 %v3434
    %v3940 = vunpack.c.h.b16 %v3434
    %v3941 = vunpack.c.l.b16 %v3435
    %v3942 = vunpack.c.h.b16 %v3435
    %v3943 = vunpack.c.l.b16 %v3436
    %v3944 = vunpack.c.h.b16 %v3436
    %v3945 = vunpack.c.l.b16 %v3437
    %v3946 = vunpack.c.h.b16 %v3437
    %v3947 = vunpack.c.l.b16 %v3438
    %v3948 = vunpack.c.h.b16 %v3438
    %v3949 = vunpack.c.l.b16 %v3439
    %v3950 = vunpack.c.h.b16 %v3439
    %v3951 = vunpack.c.l.b16 %v3440
    %v3952 = vunpack.c.h.b16 %v3440
    %v3953 = vunpack.c.l.b16 %v3441
    %v3954 = vunpack.c.h.b16 %v3441
    %v3955 = vunpack.c.l.b16 %v3442
    %v3956 = vunpack.c.h.b16 %v3442
    %v3957 = vunpack.c.l.b16 %v3443
    %v3958 = vunpack.c.h.b16 %v3443
    %v3959 = vunpack.c.l.b16 %v3444
    %v3960 = vunpack.c.h.b16 %v3444
    %v3961 = vunpack.c.l.b16 %v3445
    %v3962 = vunpack.c.h.b16 %v3445
    %v3963 = vunpack.c.l.b16 %v3446
    %v3964 = vunpack.c.h.b16 %v3446
    %v3965 = vunpack.c.l.b16 %v3447
    %v3966 = vunpack.c.h.b16 %v3447
    %v3967 = vunpack.c.l.b16 %v3448
    %v3968 = vunpack.c.h.b16 %v3448
    %v3969 = vunpack.c.l.b16 %v3449
    %v3970 = vunpack.c.h.b16 %v3449
    %v3971 = vunpack.c.l.b16 %v3450
    %v3972 = vunpack.c.h.b16 %v3450
    %v3973 = vunpack.c.l.b16 %v3451
    %v3974 = vunpack.c.h.b16 %v3451
    %v3975 = vunpack.c.l.b16 %v3452
    %v3976 = vunpack.c.h.b16 %v3452
    %v3977 = vunpack.c.l.b16 %v3453
    %v3978 = vunpack.c.h.b16 %v3453
    %v3979 = vunpack.c.l.b16 %v3454
    %v3980 = vunpack.c.h.b16 %v3454
    %v3981 = vunpack.c.l.b16 %v3455
    %v3982 = vunpack.c.h.b16 %v3455
    %v3983 = vunpack.c.l.b16 %v3456
    %v3984 = vunpack.c.h.b16 %v3456
    %v3985 = vunpack.c.l.b16 %v3457
    %v3986 = vunpack.c.h.b16 %v3457
    %v3987 = vunpack.c.l.b16 %v3458
    %v3988 = vunpack.c.h.b16 %v3458
    %v3989 = vunpack.c.l.b16 %v3459
    %v3990 = vunpack.c.h.b16 %v3459
    %v3991 = vunpack.c.l.b16 %v3460
    %v3992 = vunpack.c.h.b16 %v3460
    %v3993 = vunpack.c.l.b16 %v3461
    %v3994 = vunpack.c.h.b16 %v3461
    %v3995 = vunpack.c.l.b16 %v3462
    %v3996 = vunpack.c.h.b16 %v3462
    %v3997 = vunpack.c.l.b16 %v3463
    %v3998 = vunpack.c.h.b16 %v3463
    %v3999 = vunpack.c.l.b16 %v3464
    %v4000 = vunpack.c.h.b16 %v3464
    %v4001 = vunpack.c.l.b16 %v3465
    %v4002 = vunpack.c.h.b16 %v3465
    %v4003 = vunpack.c.l.b16 %v3466
    %v4004 = vunpack.c.h.b16 %v3466
    %v4005 = vunpack.c.l.b16 %v3467
    %v4006 = vunpack.c.h.b16 %v3467
    %v4007 = vunpack.c.l.b16 %v3468
    %v4008 = vunpack.c.h.b16 %v3468
    %v4009 = vunpack.c.l.b16 %v3469
    %v4010 = vunpack.c.h.b16 %v3469
    %v4011 = vunpack.c.l.b16 %v3470
    %v4012 = vunpack.c.h.b16 %v3470
    %v4013 = vunpack.c.l.b16 %v3471
    %v4014 = vunpack.c.h.b16 %v3471
    %v4015 = vunpack.c.l.b16 %v3472
    %v4016 = vunpack.c.h.b16 %v3472
    %v4017 = vunpack.c.l.b16 %v3473
    %v4018 = vunpack.c.h.b16 %v3473
    %v4019 = vunpack.c.l.b16 %v3474
    %v4020 = vunpack.c.h.b16 %v3474
    %v4021 = vunpack.c.l.b16 %v3475
    %v4022 = vunpack.c.h.b16 %v3475
    %v4023 = vunpack.c.l.b16 %v3476
    %v4024 = vunpack.c.h.b16 %v3476
    %v4025 = vunpack.c.l.b16 %v3477
    %v4026 = vunpack.c.h.b16 %v3477
    %v4027 = vunpack.c.l.b16 %v3478
    %v4028 = vunpack.c.h.b16 %v3478
    %v4029 = vunpack.c.l.b16 %v3479
    %v4030 = vunpack.c.h.b16 %v3479
    %v4031 = vunpack.c.l.b16 %v3480
    %v4032 = vunpack.c.h.b16 %v3480
    %v4033 = vunpack.c.l.b16 %v3481
    %v4034 = vunpack.c.h.b16 %v3481
    %v4035 = vunpack.c.l.b16 %v3482
    %v4036 = vunpack.c.h.b16 %v3482
    %v4037 = vpack.c.b16 %v3785, %v3781
    %v4038 = vpack.c.b16 %v3786, %v3782
    %v4039 = vpack.c.b16 %v3787, %v3783
    %v4040 = vpack.c.b16 %v3788, %v3784
    %v4041 = vpack.c.b16 %v3793, %v3789
    %v4042 = vpack.c.b16 %v3794, %v3790
    %v4043 = vpack.c.b16 %v3795, %v3791
    %v4044 = vpack.c.b16 %v3796, %v3792
    %v4045 = vpack.c.b16 %v3801, %v3797
    %v4046 = vpack.c.b16 %v3802, %v3798
    %v4047 = vpack.c.b16 %v3803, %v3799
    %v4048 = vpack.c.b16 %v3804, %v3800
    %v4049 = vpack.c.b16 %v3809, %v3805
    %v4050 = vpack.c.b16 %v3810, %v3806
    %v4051 = vpack.c.b16 %v3811, %v3807
    %v4052 = vpack.c.b16 %v3812, %v3808
    %v4053 = vpack.c.b16 %v3817, %v3813
    %v4054 = vpack.c.b16 %v3818, %v3814
    %v4055 = vpack.c.b16 %v3819, %v3815
    %v4056 = vpack.c.b16 %v3820, %v3816
    %v4057 = vpack.c.b16 %v3825, %v3821
    %v4058 = vpack.c.b16 %v3826, %v3822
    %v4059 = vpack.c.b16 %v3827, %v3823
    %v4060 = vpack.c.b16 %v3828, %v3824
    %v4061 = vpack.c.b16 %v3833, %v3829
    %v4062 = vpack.c.b16 %v3834, %v3830
    %v4063 = vpack.c.b16 %v3835, %v3831
    %v4064 = vpack.c.b16 %v3836, %v3832
    %v4065 = vpack.c.b16 %v3841, %v3837
    %v4066 = vpack.c.b16 %v3842, %v3838
    %v4067 = vpack.c.b16 %v3843, %v3839
    %v4068 = vpack.c.b16 %v3844, %v3840
    %v4069 = vpack.c.b16 %v3849, %v3845
    %v4070 = vpack.c.b16 %v3850, %v3846
    %v4071 = vpack.c.b16 %v3851, %v3847
    %v4072 = vpack.c.b16 %v3852, %v3848
    %v4073 = vpack.c.b16 %v3857, %v3853
    %v4074 = vpack.c.b16 %v3858, %v3854
    %v4075 = vpack.c.b16 %v3859, %v3855
    %v4076 = vpack.c.b16 %v3860, %v3856
    %v4077 = vpack.c.b16 %v3865, %v3861
    %v4078 = vpack.c.b16 %v3866, %v3862
    %v4079 = vpack.c.b16 %v3867, %v3863
    %v4080 = vpack.c.b16 %v3868, %v3864
    %v4081 = vpack.c.b16 %v3873, %v3869
    %v4082 = vpack.c.b16 %v3874, %v3870
    %v4083 = vpack.c.b16 %v3875, %v3871
    %v4084 = vpack.c.b16 %v3876, %v3872
    %v4085 = vpack.c.b16 %v3881, %v3877
    %v4086 = vpack.c.b16 %v3882, %v3878
    %v4087 = vpack.c.b16 %v3883, %v3879
    %v4088 = vpack.c.b16 %v3884, %v3880
    %v4089 = vpack.c.b16 %v3889, %v3885
    %v4090 = vpack.c.b16 %v3890, %v3886
    %v4091 = vpack.c.b16 %v3891, %v3887
    %v4092 = vpack.c.b16 %v3892, %v3888
    %v4093 = vpack.c.b16 %v3897, %v3893
    %v4094 = vpack.c.b16 %v3898, %v3894
    %v4095 = vpack.c.b16 %v3899, %v3895
    %v4096 = vpack.c.b16 %v3900, %v3896
    %v4097 = vpack.c.b16 %v3905, %v3901
    %v4098 = vpack.c.b16 %v3906, %v3902
    %v4099 = vpack.c.b16 %v3907, %v3903
    %v4100 = vpack.c.b16 %v3908, %v3904
    %v4101 = vpack.c.b16 %v3913, %v3909
    %v4102 = vpack.c.b16 %v3914, %v3910
    %v4103 = vpack.c.b16 %v3915, %v3911
    %v4104 = vpack.c.b16 %v3916, %v3912
    %v4105 = vpack.c.b16 %v3921, %v3917
    %v4106 = vpack.c.b16 %v3922, %v3918
    %v4107 = vpack.c.b16 %v3923, %v3919
    %v4108 = vpack.c.b16 %v3924, %v3920
    %v4109 = vpack.c.b16 %v3929, %v3925
    %v4110 = vpack.c.b16 %v3930, %v3926
    %v4111 = vpack.c.b16 %v3931, %v3927
    %v4112 = vpack.c.b16 %v3932, %v3928
    %v4113 = vpack.c.b16 %v3937, %v3933
    %v4114 = vpack.c.b16 %v3938, %v3934
    %v4115 = vpack.c.b16 %v3939, %v3935
    %v4116 = vpack.c.b16 %v3940, %v3936
    %v4117 = vpack.c.b16 %v3945, %v3941
    %v4118 = vpack.c.b16 %v3946, %v3942
    %v4119 = vpack.c.b16 %v3947, %v3943
    %v4120 = vpack.c.b16 %v3948, %v3944
    %v4121 = vpack.c.b16 %v3953, %v3949
    %v4122 = vpack.c.b16 %v3954, %v3950
    %v4123 = vpack.c.b16 %v3955, %v3951
    %v4124 = vpack.c.b16 %v3956, %v3952
    %v4125 = vpack.c.b16 %v3961, %v3957
    %v4126 = vpack.c.b16 %v3962, %v3958
    %v4127 = vpack.c.b16 %v3963, %v3959
    %v4128 = vpack.c.b16 %v3964, %v3960
    %v4129 = vpack.c.b16 %v3969, %v3965
    %v4130 = vpack.c.b16 %v3970, %v3966
    %v4131 = vpack.c.b16 %v3971, %v3967
    %v4132 = vpack.c.b16 %v3972, %v3968
    %v4133 = vpack.c.b16 %v3977, %v3973
    %v4134 = vpack.c.b16 %v3978, %v3974
    %v4135 = vpack.c.b16 %v3979, %v3975
    %v4136 = vpack.c.b16 %v3980, %v3976
    %v4137 = vpack.c.b16 %v3985, %v3981
    %v4138 = vpack.c.b16 %v3986, %v3982
    %v4139 = vpack.c.b16 %v3987, %v3983
    %v4140 = vpack.c.b16 %v3988, %v3984
    %v4141 = vpack.c.b16 %v3993, %v3989
    %v4142 = vpack.c.b16 %v3994, %v3990
    %v4143 = vpack.c.b16 %v3995, %v3991
    %v4144 = vpack.c.b16 %v3996, %v3992
    %v4145 = vpack.c.b16 %v4001, %v3997
    %v4146 = vpack.c.b16 %v4002, %v3998
    %v4147 = vpack.c.b16 %v4003, %v3999
    %v4148 = vpack.c.b16 %v4004, %v4000
    %v4149 = vpack.c.b16 %v4009, %v4005
    %v4150 = vpack.c.b16 %v4010, %v4006
    %v4151 = vpack.c.b16 %v4011, %v4007
    %v4152 = vpack.c.b16 %v4012, %v4008
    %v4153 = vpack.c.b16 %v4017, %v4013
    %v4154 = vpack.c.b16 %v4018, %v4014
    %v4155 = vpack.c.b16 %v4019, %v4015
    %v4156 = vpack.c.b16 %v4020, %v4016
    %v4157 = vpack.c.b16 %v4025, %v4021
    %v4158 = vpack.c.b16 %v4026, %v4022
    %v4159 = vpack.c.b16 %v4027, %v4023
    %v4160 = vpack.c.b16 %v4028, %v4024
    %v4161 = vpack.c.b16 %v4033, %v4029
    %v4162 = vpack.c.b16 %v4034, %v4030
    %v4163 = vpack.c.b16 %v4035, %v4031
    %v4164 = vpack.c.b16 %v4036, %v4032
    %4293 = vmatpush.bf16.msra.mxu0 %v4065
    %4294 = vmatpush.bf16.msra.mxu0 %v4061
    %4295 = vmatpush.bf16.msra.mxu0 %v4057
    %4296 = vmatpush.bf16.msra.mxu0 %v4053
    %4297 = vmatpush.bf16.msra.mxu0 %v4049
    %4298 = vmatpush.bf16.msra.mxu0 %v4045
    %4299 = vmatpush.bf16.msra.mxu0 %v4041
    %4300 = vmatpush.bf16.msra.mxu0 %v4037
    %4301 = vmatmul.bf16.gmra.mxu0 %v3589
    %v4302 = vpop.f32.mrf.mxu0
    %v4303 = vadd.f32 %v3485, %v4302
    %v4304 = vpop.f32.mrf.mxu0
    %v4305 = vadd.f32 %v3485, %v4304
    %4306 = vmatmul.bf16.gmra.mxu0 %v3593
    %v4307 = vpop.f32.mrf.mxu0
    %v4308 = vadd.f32 %v3485, %v4307
    %v4309 = vpop.f32.mrf.mxu0
    %v4310 = vadd.f32 %v3485, %v4309
    %4311 = vmatmul.bf16.gmra.mxu0 %v3597
    %v4312 = vpop.f32.mrf.mxu0
    %v4313 = vadd.f32 %v3485, %v4312
    %v4314 = vpop.f32.mrf.mxu0
    %v4315 = vadd.f32 %v3485, %v4314
    %4316 = vmatmul.bf16.gmra.mxu0 %v3601
    %v4317 = vpop.f32.mrf.mxu0
    %v4318 = vadd.f32 %v3485, %v4317
    %v4319 = vpop.f32.mrf.mxu0
    %v4320 = vadd.f32 %v3485, %v4319
    %4321 = vmatmul.bf16.gmra.mxu0 %v3605
    %v4322 = vpop.f32.mrf.mxu0
    %v4323 = vadd.f32 %v3485, %v4322
    %v4324 = vpop.f32.mrf.mxu0
    %v4325 = vadd.f32 %v3485, %v4324
    %4326 = vmatmul.bf16.gmra.mxu0 %v3609
    %v4327 = vpop.f32.mrf.mxu0
    %v4328 = vadd.f32 %v3485, %v4327
    %v4329 = vpop.f32.mrf.mxu0
    %v4330 = vadd.f32 %v3485, %v4329
    %4331 = vmatmul.bf16.gmra.mxu0 %v3613
    %v4332 = vpop.f32.mrf.mxu0
    %v4333 = vadd.f32 %v3485, %v4332
    %v4334 = vpop.f32.mrf.mxu0
    %v4335 = vadd.f32 %v3485, %v4334
    %4336 = vmatmul.bf16.gmra.mxu0 %v3617
    %v4337 = vpop.f32.mrf.mxu0
    %v4338 = vadd.f32 %v3485, %v4337
    %v4339 = vpop.f32.mrf.mxu0
    %v4340 = vadd.f32 %v3485, %v4339
    %4341 = vdwg.mxu0
    %4342 = vmatpush.bf16.msra.mxu0 %v4097
    %4343 = vmatpush.bf16.msra.mxu0 %v4093
    %4344 = vmatpush.bf16.msra.mxu0 %v4089
    %4345 = vmatpush.bf16.msra.mxu0 %v4085
    %4346 = vmatpush.bf16.msra.mxu0 %v4081
    %4347 = vmatpush.bf16.msra.mxu0 %v4077
    %4348 = vmatpush.bf16.msra.mxu0 %v4073
    %4349 = vmatpush.bf16.msra.mxu0 %v4069
    %4350 = vmatmul.bf16.gmra.mxu0 %v3590
    %v4351 = vpop.f32.mrf.mxu0
    %v4352 = vadd.f32 %v4303, %v4351
    %v4353 = vpop.f32.mrf.mxu0
    %v4354 = vadd.f32 %v4305, %v4353
    %4355 = vmatmul.bf16.gmra.mxu0 %v3594
    %v4356 = vpop.f32.mrf.mxu0
    %v4357 = vadd.f32 %v4308, %v4356
    %v4358 = vpop.f32.mrf.mxu0
    %v4359 = vadd.f32 %v4310, %v4358
    %4360 = vmatmul.bf16.gmra.mxu0 %v3598
    %v4361 = vpop.f32.mrf.mxu0
    %v4362 = vadd.f32 %v4313, %v4361
    %v4363 = vpop.f32.mrf.mxu0
    %v4364 = vadd.f32 %v4315, %v4363
    %4365 = vmatmul.bf16.gmra.mxu0 %v3602
    %v4366 = vpop.f32.mrf.mxu0
    %v4367 = vadd.f32 %v4318, %v4366
    %v4368 = vpop.f32.mrf.mxu0
    %v4369 = vadd.f32 %v4320, %v4368
    %4370 = vmatmul.bf16.gmra.mxu0 %v3606
    %v4371 = vpop.f32.mrf.mxu0
    %v4372 = vadd.f32 %v4323, %v4371
    %v4373 = vpop.f32.mrf.mxu0
    %v4374 = vadd.f32 %v4325, %v4373
    %4375 = vmatmul.bf16.gmra.mxu0 %v3610
    %v4376 = vpop.f32.mrf.mxu0
    %v4377 = vadd.f32 %v4328, %v4376
    %v4378 = vpop.f32.mrf.mxu0
    %v4379 = vadd.f32 %v4330, %v4378
    %4380 = vmatmul.bf16.gmra.mxu0 %v3614
    %v4381 = vpop.f32.mrf.mxu0
    %v4382 = vadd.f32 %v4333, %v4381
    %v4383 = vpop.f32.mrf.mxu0
    %v4384 = vadd.f32 %v4335, %v4383
    %4385 = vmatmul.bf16.gmra.mxu0 %v3618
    %v4386 = vpop.f32.mrf.mxu0
    %v4387 = vadd.f32 %v4338, %v4386
    %v4388 = vpop.f32.mrf.mxu0
    %v4389 = vadd.f32 %v4340, %v4388
    %4390 = vdwg.mxu0
    %4391 = vmatpush.bf16.msra.mxu0 %v4129
    %4392 = vmatpush.bf16.msra.mxu0 %v4125
    %4393 = vmatpush.bf16.msra.mxu0 %v4121
    %4394 = vmatpush.bf16.msra.mxu0 %v4117
    %4395 = vmatpush.bf16.msra.mxu0 %v4113
    %4396 = vmatpush.bf16.msra.mxu0 %v4109
    %4397 = vmatpush.bf16.msra.mxu0 %v4105
    %4398 = vmatpush.bf16.msra.mxu0 %v4101
    %4399 = vmatmul.bf16.gmra.mxu0 %v3591
    %v4400 = vpop.f32.mrf.mxu0
    %v4401 = vadd.f32 %v4352, %v4400
    %v4402 = vpop.f32.mrf.mxu0
    %v4403 = vadd.f32 %v4354, %v4402
    %4404 = vmatmul.bf16.gmra.mxu0 %v3595
    %v4405 = vpop.f32.mrf.mxu0
    %v4406 = vadd.f32 %v4357, %v4405
    %v4407 = vpop.f32.mrf.mxu0
    %v4408 = vadd.f32 %v4359, %v4407
    %4409 = vmatmul.bf16.gmra.mxu0 %v3599
    %v4410 = vpop.f32.mrf.mxu0
    %v4411 = vadd.f32 %v4362, %v4410
    %v4412 = vpop.f32.mrf.mxu0
    %v4413 = vadd.f32 %v4364, %v4412
    %4414 = vmatmul.bf16.gmra.mxu0 %v3603
    %v4415 = vpop.f32.mrf.mxu0
    %v4416 = vadd.f32 %v4367, %v4415
    %v4417 = vpop.f32.mrf.mxu0
    %v4418 = vadd.f32 %v4369, %v4417
    %4419 = vmatmul.bf16.gmra.mxu0 %v3607
    %v4420 = vpop.f32.mrf.mxu0
    %v4421 = vadd.f32 %v4372, %v4420
    %v4422 = vpop.f32.mrf.mxu0
    %v4423 = vadd.f32 %v4374, %v4422
    %4424 = vmatmul.bf16.gmra.mxu0 %v3611
    %v4425 = vpop.f32.mrf.mxu0
    %v4426 = vadd.f32 %v4377, %v4425
    %v4427 = vpop.f32.mrf.mxu0
    %v4428 = vadd.f32 %v4379, %v4427
    %4429 = vmatmul.bf16.gmra.mxu0 %v3615
    %v4430 = vpop.f32.mrf.mxu0
    %v4431 = vadd.f32 %v4382, %v4430
    %v4432 = vpop.f32.mrf.mxu0
    %v4433 = vadd.f32 %v4384, %v4432
    %4434 = vmatmul.bf16.gmra.mxu0 %v3619
    %v4435 = vpop.f32.mrf.mxu0
    %v4436 = vadd.f32 %v4387, %v4435
    %v4437 = vpop.f32.mrf.mxu0
    %v4438 = vadd.f32 %v4389, %v4437
    %4439 = vdwg.mxu0
    %4440 = vmatpush.bf16.msra.mxu0 %v4161
    %4441 = vmatpush.bf16.msra.mxu0 %v4157
    %4442 = vmatpush.bf16.msra.mxu0 %v4153
    %4443 = vmatpush.bf16.msra.mxu0 %v4149
    %4444 = vmatpush.bf16.msra.mxu0 %v4145
    %4445 = vmatpush.bf16.msra.mxu0 %v4141
    %4446 = vmatpush.bf16.msra.mxu0 %v4137
    %4447 = vmatpush.bf16.msra.mxu0 %v4133
    %4448 = vmatmul.bf16.gmra.mxu0 %v3592
    %v4449 = vpop.f32.mrf.mxu0
    %v4450 = vadd.f32 %v4401, %v4449
    %v4451 = vpop.f32.mrf.mxu0
    %v4452 = vadd.f32 %v4403, %v4451
    %4453 = vmatmul.bf16.gmra.mxu0 %v3596
    %v4454 = vpop.f32.mrf.mxu0
    %v4455 = vadd.f32 %v4406, %v4454
    %v4456 = vpop.f32.mrf.mxu0
    %v4457 = vadd.f32 %v4408, %v4456
    %4458 = vmatmul.bf16.gmra.mxu0 %v3600
    %v4459 = vpop.f32.mrf.mxu0
    %v4460 = vadd.f32 %v4411, %v4459
    %v4461 = vpop.f32.mrf.mxu0
    %v4462 = vadd.f32 %v4413, %v4461
    %4463 = vmatmul.bf16.gmra.mxu0 %v3604
    %v4464 = vpop.f32.mrf.mxu0
    %v4465 = vadd.f32 %v4416, %v4464
    %v4466 = vpop.f32.mrf.mxu0
    %v4467 = vadd.f32 %v4418, %v4466
    %4468 = vmatmul.bf16.gmra.mxu0 %v3608
    %v4469 = vpop.f32.mrf.mxu0
    %v4470 = vadd.f32 %v4421, %v4469
    %v4471 = vpop.f32.mrf.mxu0
    %v4472 = vadd.f32 %v4423, %v4471
    %4473 = vmatmul.bf16.gmra.mxu0 %v3612
    %v4474 = vpop.f32.mrf.mxu0
    %v4475 = vadd.f32 %v4426, %v4474
    %v4476 = vpop.f32.mrf.mxu0
    %v4477 = vadd.f32 %v4428, %v4476
    %4478 = vmatmul.bf16.gmra.mxu0 %v3616
    %v4479 = vpop.f32.mrf.mxu0
    %v4480 = vadd.f32 %v4431, %v4479
    %v4481 = vpop.f32.mrf.mxu0
    %v4482 = vadd.f32 %v4433, %v4481
    %4483 = vmatmul.bf16.gmra.mxu0 %v3620
    %v4484 = vpop.f32.mrf.mxu0
    %v4485 = vadd.f32 %v4436, %v4484
    %v4486 = vpop.f32.mrf.mxu0
    %v4487 = vadd.f32 %v4438, %v4486
    %4488 = vdwg.mxu0
    %4489 = vmatpush.bf16.msra.mxu0 %v4066
    %4490 = vmatpush.bf16.msra.mxu0 %v4062
    %4491 = vmatpush.bf16.msra.mxu0 %v4058
    %4492 = vmatpush.bf16.msra.mxu0 %v4054
    %4493 = vmatpush.bf16.msra.mxu0 %v4050
    %4494 = vmatpush.bf16.msra.mxu0 %v4046
    %4495 = vmatpush.bf16.msra.mxu0 %v4042
    %4496 = vmatpush.bf16.msra.mxu0 %v4038
    %4497 = vmatmul.bf16.gmra.mxu0 %v3589
    %v4498 = vpop.f32.mrf.mxu0
    %v4499 = vadd.f32 %v3486, %v4498
    %v4500 = vpop.f32.mrf.mxu0
    %v4501 = vadd.f32 %v3486, %v4500
    %4502 = vmatmul.bf16.gmra.mxu0 %v3593
    %v4503 = vpop.f32.mrf.mxu0
    %v4504 = vadd.f32 %v3486, %v4503
    %v4505 = vpop.f32.mrf.mxu0
    %v4506 = vadd.f32 %v3486, %v4505
    %4507 = vmatmul.bf16.gmra.mxu0 %v3597
    %v4508 = vpop.f32.mrf.mxu0
    %v4509 = vadd.f32 %v3486, %v4508
    %v4510 = vpop.f32.mrf.mxu0
    %v4511 = vadd.f32 %v3486, %v4510
    %4512 = vmatmul.bf16.gmra.mxu0 %v3601
    %v4513 = vpop.f32.mrf.mxu0
    %v4514 = vadd.f32 %v3486, %v4513
    %v4515 = vpop.f32.mrf.mxu0
    %v4516 = vadd.f32 %v3486, %v4515
    %4517 = vmatmul.bf16.gmra.mxu0 %v3605
    %v4518 = vpop.f32.mrf.mxu0
    %v4519 = vadd.f32 %v3486, %v4518
    %v4520 = vpop.f32.mrf.mxu0
    %v4521 = vadd.f32 %v3486, %v4520
    %4522 = vmatmul.bf16.gmra.mxu0 %v3609
    %v4523 = vpop.f32.mrf.mxu0
    %v4524 = vadd.f32 %v3486, %v4523
    %v4525 = vpop.f32.mrf.mxu0
    %v4526 = vadd.f32 %v3486, %v4525
    %4527 = vmatmul.bf16.gmra.mxu0 %v3613
    %v4528 = vpop.f32.mrf.mxu0
    %v4529 = vadd.f32 %v3486, %v4528
    %v4530 = vpop.f32.mrf.mxu0
    %v4531 = vadd.f32 %v3486, %v4530
    %4532 = vmatmul.bf16.gmra.mxu0 %v3617
    %v4533 = vpop.f32.mrf.mxu0
    %v4534 = vadd.f32 %v3486, %v4533
    %v4535 = vpop.f32.mrf.mxu0
    %v4536 = vadd.f32 %v3486, %v4535
    %4537 = vdwg.mxu0
    %4538 = vmatpush.bf16.msra.mxu0 %v4098
    %4539 = vmatpush.bf16.msra.mxu0 %v4094
    %4540 = vmatpush.bf16.msra.mxu0 %v4090
    %4541 = vmatpush.bf16.msra.mxu0 %v4086
    %4542 = vmatpush.bf16.msra.mxu0 %v4082
    %4543 = vmatpush.bf16.msra.mxu0 %v4078
    %4544 = vmatpush.bf16.msra.mxu0 %v4074
    %4545 = vmatpush.bf16.msra.mxu0 %v4070
    %4546 = vmatmul.bf16.gmra.mxu0 %v3590
    %v4547 = vpop.f32.mrf.mxu0
    %v4548 = vadd.f32 %v4499, %v4547
    %v4549 = vpop.f32.mrf.mxu0
    %v4550 = vadd.f32 %v4501, %v4549
    %4551 = vmatmul.bf16.gmra.mxu0 %v3594
    %v4552 = vpop.f32.mrf.mxu0
    %v4553 = vadd.f32 %v4504, %v4552
    %v4554 = vpop.f32.mrf.mxu0
    %v4555 = vadd.f32 %v4506, %v4554
    %4556 = vmatmul.bf16.gmra.mxu0 %v3598
    %v4557 = vpop.f32.mrf.mxu0
    %v4558 = vadd.f32 %v4509, %v4557
    %v4559 = vpop.f32.mrf.mxu0
    %v4560 = vadd.f32 %v4511, %v4559
    %4561 = vmatmul.bf16.gmra.mxu0 %v3602
    %v4562 = vpop.f32.mrf.mxu0
    %v4563 = vadd.f32 %v4514, %v4562
    %v4564 = vpop.f32.mrf.mxu0
    %v4565 = vadd.f32 %v4516, %v4564
    %4566 = vmatmul.bf16.gmra.mxu0 %v3606
    %v4567 = vpop.f32.mrf.mxu0
    %v4568 = vadd.f32 %v4519, %v4567
    %v4569 = vpop.f32.mrf.mxu0
    %v4570 = vadd.f32 %v4521, %v4569
    %4571 = vmatmul.bf16.gmra.mxu0 %v3610
    %v4572 = vpop.f32.mrf.mxu0
    %v4573 = vadd.f32 %v4524, %v4572
    %v4574 = vpop.f32.mrf.mxu0
    %v4575 = vadd.f32 %v4526, %v4574
    %4576 = vmatmul.bf16.gmra.mxu0 %v3614
    %v4577 = vpop.f32.mrf.mxu0
    %v4578 = vadd.f32 %v4529, %v4577
    %v4579 = vpop.f32.mrf.mxu0
    %v4580 = vadd.f32 %v4531, %v4579
    %4581 = vmatmul.bf16.gmra.mxu0 %v3618
    %v4582 = vpop.f32.mrf.mxu0
    %v4583 = vadd.f32 %v4534, %v4582
    %v4584 = vpop.f32.mrf.mxu0
    %v4585 = vadd.f32 %v4536, %v4584
    %4586 = vdwg.mxu0
    %4587 = vmatpush.bf16.msra.mxu0 %v4130
    %4588 = vmatpush.bf16.msra.mxu0 %v4126
    %4589 = vmatpush.bf16.msra.mxu0 %v4122
    %4590 = vmatpush.bf16.msra.mxu0 %v4118
    %4591 = vmatpush.bf16.msra.mxu0 %v4114
    %4592 = vmatpush.bf16.msra.mxu0 %v4110
    %4593 = vmatpush.bf16.msra.mxu0 %v4106
    %4594 = vmatpush.bf16.msra.mxu0 %v4102
    %4595 = vmatmul.bf16.gmra.mxu0 %v3591
    %v4596 = vpop.f32.mrf.mxu0
    %v4597 = vadd.f32 %v4548, %v4596
    %v4598 = vpop.f32.mrf.mxu0
    %v4599 = vadd.f32 %v4550, %v4598
    %4600 = vmatmul.bf16.gmra.mxu0 %v3595
    %v4601 = vpop.f32.mrf.mxu0
    %v4602 = vadd.f32 %v4553, %v4601
    %v4603 = vpop.f32.mrf.mxu0
    %v4604 = vadd.f32 %v4555, %v4603
    %4605 = vmatmul.bf16.gmra.mxu0 %v3599
    %v4606 = vpop.f32.mrf.mxu0
    %v4607 = vadd.f32 %v4558, %v4606
    %v4608 = vpop.f32.mrf.mxu0
    %v4609 = vadd.f32 %v4560, %v4608
    %4610 = vmatmul.bf16.gmra.mxu0 %v3603
    %v4611 = vpop.f32.mrf.mxu0
    %v4612 = vadd.f32 %v4563, %v4611
    %v4613 = vpop.f32.mrf.mxu0
    %v4614 = vadd.f32 %v4565, %v4613
    %4615 = vmatmul.bf16.gmra.mxu0 %v3607
    %v4616 = vpop.f32.mrf.mxu0
    %v4617 = vadd.f32 %v4568, %v4616
    %v4618 = vpop.f32.mrf.mxu0
    %v4619 = vadd.f32 %v4570, %v4618
    %4620 = vmatmul.bf16.gmra.mxu0 %v3611
    %v4621 = vpop.f32.mrf.mxu0
    %v4622 = vadd.f32 %v4573, %v4621
    %v4623 = vpop.f32.mrf.mxu0
    %v4624 = vadd.f32 %v4575, %v4623
    %4625 = vmatmul.bf16.gmra.mxu0 %v3615
    %v4626 = vpop.f32.mrf.mxu0
    %v4627 = vadd.f32 %v4578, %v4626
    %v4628 = vpop.f32.mrf.mxu0
    %v4629 = vadd.f32 %v4580, %v4628
    %4630 = vmatmul.bf16.gmra.mxu0 %v3619
    %v4631 = vpop.f32.mrf.mxu0
    %v4632 = vadd.f32 %v4583, %v4631
    %v4633 = vpop.f32.mrf.mxu0
    %v4634 = vadd.f32 %v4585, %v4633
    %4635 = vdwg.mxu0
    %4636 = vmatpush.bf16.msra.mxu0 %v4162
    %4637 = vmatpush.bf16.msra.mxu0 %v4158
    %4638 = vmatpush.bf16.msra.mxu0 %v4154
    %4639 = vmatpush.bf16.msra.mxu0 %v4150
    %4640 = vmatpush.bf16.msra.mxu0 %v4146
    %4641 = vmatpush.bf16.msra.mxu0 %v4142
    %4642 = vmatpush.bf16.msra.mxu0 %v4138
    %4643 = vmatpush.bf16.msra.mxu0 %v4134
    %4644 = vmatmul.bf16.gmra.mxu0 %v3592
    %v4645 = vpop.f32.mrf.mxu0
    %v4646 = vadd.f32 %v4597, %v4645
    %v4647 = vpop.f32.mrf.mxu0
    %v4648 = vadd.f32 %v4599, %v4647
    %4649 = vmatmul.bf16.gmra.mxu0 %v3596
    %v4650 = vpop.f32.mrf.mxu0
    %v4651 = vadd.f32 %v4602, %v4650
    %v4652 = vpop.f32.mrf.mxu0
    %v4653 = vadd.f32 %v4604, %v4652
    %4654 = vmatmul.bf16.gmra.mxu0 %v3600
    %v4655 = vpop.f32.mrf.mxu0
    %v4656 = vadd.f32 %v4607, %v4655
    %v4657 = vpop.f32.mrf.mxu0
    %v4658 = vadd.f32 %v4609, %v4657
    %4659 = vmatmul.bf16.gmra.mxu0 %v3604
    %v4660 = vpop.f32.mrf.mxu0
    %v4661 = vadd.f32 %v4612, %v4660
    %v4662 = vpop.f32.mrf.mxu0
    %v4663 = vadd.f32 %v4614, %v4662
    %4664 = vmatmul.bf16.gmra.mxu0 %v3608
    %v4665 = vpop.f32.mrf.mxu0
    %v4666 = vadd.f32 %v4617, %v4665
    %v4667 = vpop.f32.mrf.mxu0
    %v4668 = vadd.f32 %v4619, %v4667
    %4669 = vmatmul.bf16.gmra.mxu0 %v3612
    %v4670 = vpop.f32.mrf.mxu0
    %v4671 = vadd.f32 %v4622, %v4670
    %v4672 = vpop.f32.mrf.mxu0
    %v4673 = vadd.f32 %v4624, %v4672
    %4674 = vmatmul.bf16.gmra.mxu0 %v3616
    %v4675 = vpop.f32.mrf.mxu0
    %v4676 = vadd.f32 %v4627, %v4675
    %v4677 = vpop.f32.mrf.mxu0
    %v4678 = vadd.f32 %v4629, %v4677
    %4679 = vmatmul.bf16.gmra.mxu0 %v3620
    %v4680 = vpop.f32.mrf.mxu0
    %v4681 = vadd.f32 %v4632, %v4680
    %v4682 = vpop.f32.mrf.mxu0
    %v4683 = vadd.f32 %v4634, %v4682
    %4684 = vdwg.mxu0
    %4685 = vmatpush.bf16.msra.mxu0 %v4067
    %4686 = vmatpush.bf16.msra.mxu0 %v4063
    %4687 = vmatpush.bf16.msra.mxu0 %v4059
    %4688 = vmatpush.bf16.msra.mxu0 %v4055
    %4689 = vmatpush.bf16.msra.mxu0 %v4051
    %4690 = vmatpush.bf16.msra.mxu0 %v4047
    %4691 = vmatpush.bf16.msra.mxu0 %v4043
    %4692 = vmatpush.bf16.msra.mxu0 %v4039
    %4693 = vmatmul.bf16.gmra.mxu0 %v3589
    %v4694 = vpop.f32.mrf.mxu0
    %v4695 = vadd.f32 %v3487, %v4694
    %v4696 = vpop.f32.mrf.mxu0
    %v4697 = vadd.f32 %v3487, %v4696
    %4698 = vmatmul.bf16.gmra.mxu0 %v3593
    %v4699 = vpop.f32.mrf.mxu0
    %v4700 = vadd.f32 %v3487, %v4699
    %v4701 = vpop.f32.mrf.mxu0
    %v4702 = vadd.f32 %v3487, %v4701
    %4703 = vmatmul.bf16.gmra.mxu0 %v3597
    %v4704 = vpop.f32.mrf.mxu0
    %v4705 = vadd.f32 %v3487, %v4704
    %v4706 = vpop.f32.mrf.mxu0
    %v4707 = vadd.f32 %v3487, %v4706
    %4708 = vmatmul.bf16.gmra.mxu0 %v3601
    %v4709 = vpop.f32.mrf.mxu0
    %v4710 = vadd.f32 %v3487, %v4709
    %v4711 = vpop.f32.mrf.mxu0
    %v4712 = vadd.f32 %v3487, %v4711
    %4713 = vmatmul.bf16.gmra.mxu0 %v3605
    %v4714 = vpop.f32.mrf.mxu0
    %v4715 = vadd.f32 %v3487, %v4714
    %v4716 = vpop.f32.mrf.mxu0
    %v4717 = vadd.f32 %v3487, %v4716
    %4718 = vmatmul.bf16.gmra.mxu0 %v3609
    %v4719 = vpop.f32.mrf.mxu0
    %v4720 = vadd.f32 %v3487, %v4719
    %v4721 = vpop.f32.mrf.mxu0
    %v4722 = vadd.f32 %v3487, %v4721
    %4723 = vmatmul.bf16.gmra.mxu0 %v3613
    %v4724 = vpop.f32.mrf.mxu0
    %v4725 = vadd.f32 %v3487, %v4724
    %v4726 = vpop.f32.mrf.mxu0
    %v4727 = vadd.f32 %v3487, %v4726
    %4728 = vmatmul.bf16.gmra.mxu0 %v3617
    %v4729 = vpop.f32.mrf.mxu0
    %v4730 = vadd.f32 %v3487, %v4729
    %v4731 = vpop.f32.mrf.mxu0
    %v4732 = vadd.f32 %v3487, %v4731
    %4733 = vdwg.mxu0
    %4734 = vmatpush.bf16.msra.mxu0 %v4099
    %4735 = vmatpush.bf16.msra.mxu0 %v4095
    %4736 = vmatpush.bf16.msra.mxu0 %v4091
    %4737 = vmatpush.bf16.msra.mxu0 %v4087
    %4738 = vmatpush.bf16.msra.mxu0 %v4083
    %4739 = vmatpush.bf16.msra.mxu0 %v4079
    %4740 = vmatpush.bf16.msra.mxu0 %v4075
    %4741 = vmatpush.bf16.msra.mxu0 %v4071
    %4742 = vmatmul.bf16.gmra.mxu0 %v3590
    %v4743 = vpop.f32.mrf.mxu0
    %v4744 = vadd.f32 %v4695, %v4743
    %v4745 = vpop.f32.mrf.mxu0
    %v4746 = vadd.f32 %v4697, %v4745
    %4747 = vmatmul.bf16.gmra.mxu0 %v3594
    %v4748 = vpop.f32.mrf.mxu0
    %v4749 = vadd.f32 %v4700, %v4748
    %v4750 = vpop.f32.mrf.mxu0
    %v4751 = vadd.f32 %v4702, %v4750
    %4752 = vmatmul.bf16.gmra.mxu0 %v3598
    %v4753 = vpop.f32.mrf.mxu0
    %v4754 = vadd.f32 %v4705, %v4753
    %v4755 = vpop.f32.mrf.mxu0
    %v4756 = vadd.f32 %v4707, %v4755
    %4757 = vmatmul.bf16.gmra.mxu0 %v3602
    %v4758 = vpop.f32.mrf.mxu0
    %v4759 = vadd.f32 %v4710, %v4758
    %v4760 = vpop.f32.mrf.mxu0
    %v4761 = vadd.f32 %v4712, %v4760
    %4762 = vmatmul.bf16.gmra.mxu0 %v3606
    %v4763 = vpop.f32.mrf.mxu0
    %v4764 = vadd.f32 %v4715, %v4763
    %v4765 = vpop.f32.mrf.mxu0
    %v4766 = vadd.f32 %v4717, %v4765
    %4767 = vmatmul.bf16.gmra.mxu0 %v3610
    %v4768 = vpop.f32.mrf.mxu0
    %v4769 = vadd.f32 %v4720, %v4768
    %v4770 = vpop.f32.mrf.mxu0
    %v4771 = vadd.f32 %v4722, %v4770
    %4772 = vmatmul.bf16.gmra.mxu0 %v3614
    %v4773 = vpop.f32.mrf.mxu0
    %v4774 = vadd.f32 %v4725, %v4773
    %v4775 = vpop.f32.mrf.mxu0
    %v4776 = vadd.f32 %v4727, %v4775
    %4777 = vmatmul.bf16.gmra.mxu0 %v3618
    %v4778 = vpop.f32.mrf.mxu0
    %v4779 = vadd.f32 %v4730, %v4778
    %v4780 = vpop.f32.mrf.mxu0
    %v4781 = vadd.f32 %v4732, %v4780
    %4782 = vdwg.mxu0
    %4783 = vmatpush.bf16.msra.mxu0 %v4131
    %4784 = vmatpush.bf16.msra.mxu0 %v4127
    %4785 = vmatpush.bf16.msra.mxu0 %v4123
    %4786 = vmatpush.bf16.msra.mxu0 %v4119
    %4787 = vmatpush.bf16.msra.mxu0 %v4115
    %4788 = vmatpush.bf16.msra.mxu0 %v4111
    %4789 = vmatpush.bf16.msra.mxu0 %v4107
    %4790 = vmatpush.bf16.msra.mxu0 %v4103
    %4791 = vmatmul.bf16.gmra.mxu0 %v3591
    %v4792 = vpop.f32.mrf.mxu0
    %v4793 = vadd.f32 %v4744, %v4792
    %v4794 = vpop.f32.mrf.mxu0
    %v4795 = vadd.f32 %v4746, %v4794
    %4796 = vmatmul.bf16.gmra.mxu0 %v3595
    %v4797 = vpop.f32.mrf.mxu0
    %v4798 = vadd.f32 %v4749, %v4797
    %v4799 = vpop.f32.mrf.mxu0
    %v4800 = vadd.f32 %v4751, %v4799
    %4801 = vmatmul.bf16.gmra.mxu0 %v3599
    %v4802 = vpop.f32.mrf.mxu0
    %v4803 = vadd.f32 %v4754, %v4802
    %v4804 = vpop.f32.mrf.mxu0
    %v4805 = vadd.f32 %v4756, %v4804
    %4806 = vmatmul.bf16.gmra.mxu0 %v3603
    %v4807 = vpop.f32.mrf.mxu0
    %v4808 = vadd.f32 %v4759, %v4807
    %v4809 = vpop.f32.mrf.mxu0
    %v4810 = vadd.f32 %v4761, %v4809
    %4811 = vmatmul.bf16.gmra.mxu0 %v3607
    %v4812 = vpop.f32.mrf.mxu0
    %v4813 = vadd.f32 %v4764, %v4812
    %v4814 = vpop.f32.mrf.mxu0
    %v4815 = vadd.f32 %v4766, %v4814
    %4816 = vmatmul.bf16.gmra.mxu0 %v3611
    %v4817 = vpop.f32.mrf.mxu0
    %v4818 = vadd.f32 %v4769, %v4817
    %v4819 = vpop.f32.mrf.mxu0
    %v4820 = vadd.f32 %v4771, %v4819
    %4821 = vmatmul.bf16.gmra.mxu0 %v3615
    %v4822 = vpop.f32.mrf.mxu0
    %v4823 = vadd.f32 %v4774, %v4822
    %v4824 = vpop.f32.mrf.mxu0
    %v4825 = vadd.f32 %v4776, %v4824
    %4826 = vmatmul.bf16.gmra.mxu0 %v3619
    %v4827 = vpop.f32.mrf.mxu0
    %v4828 = vadd.f32 %v4779, %v4827
    %v4829 = vpop.f32.mrf.mxu0
    %v4830 = vadd.f32 %v4781, %v4829
    %4831 = vdwg.mxu0
    %4832 = vmatpush.bf16.msra.mxu0 %v4163
    %4833 = vmatpush.bf16.msra.mxu0 %v4159
    %4834 = vmatpush.bf16.msra.mxu0 %v4155
    %4835 = vmatpush.bf16.msra.mxu0 %v4151
    %4836 = vmatpush.bf16.msra.mxu0 %v4147
    %4837 = vmatpush.bf16.msra.mxu0 %v4143
    %4838 = vmatpush.bf16.msra.mxu0 %v4139
    %4839 = vmatpush.bf16.msra.mxu0 %v4135
    %4840 = vmatmul.bf16.gmra.mxu0 %v3592
    %v4841 = vpop.f32.mrf.mxu0
    %v4842 = vadd.f32 %v4793, %v4841
    %v4843 = vpop.f32.mrf.mxu0
    %v4844 = vadd.f32 %v4795, %v4843
    %4845 = vmatmul.bf16.gmra.mxu0 %v3596
    %v4846 = vpop.f32.mrf.mxu0
    %v4847 = vadd.f32 %v4798, %v4846
    %v4848 = vpop.f32.mrf.mxu0
    %v4849 = vadd.f32 %v4800, %v4848
    %4850 = vmatmul.bf16.gmra.mxu0 %v3600
    %v4851 = vpop.f32.mrf.mxu0
    %v4852 = vadd.f32 %v4803, %v4851
    %v4853 = vpop.f32.mrf.mxu0
    %v4854 = vadd.f32 %v4805, %v4853
    %4855 = vmatmul.bf16.gmra.mxu0 %v3604
    %v4856 = vpop.f32.mrf.mxu0
    %v4857 = vadd.f32 %v4808, %v4856
    %v4858 = vpop.f32.mrf.mxu0
    %v4859 = vadd.f32 %v4810, %v4858
    %4860 = vmatmul.bf16.gmra.mxu0 %v3608
    %v4861 = vpop.f32.mrf.mxu0
    %v4862 = vadd.f32 %v4813, %v4861
    %v4863 = vpop.f32.mrf.mxu0
    %v4864 = vadd.f32 %v4815, %v4863
    %4865 = vmatmul.bf16.gmra.mxu0 %v3612
    %v4866 = vpop.f32.mrf.mxu0
    %v4867 = vadd.f32 %v4818, %v4866
    %v4868 = vpop.f32.mrf.mxu0
    %v4869 = vadd.f32 %v4820, %v4868
    %4870 = vmatmul.bf16.gmra.mxu0 %v3616
    %v4871 = vpop.f32.mrf.mxu0
    %v4872 = vadd.f32 %v4823, %v4871
    %v4873 = vpop.f32.mrf.mxu0
    %v4874 = vadd.f32 %v4825, %v4873
    %4875 = vmatmul.bf16.gmra.mxu0 %v3620
    %v4876 = vpop.f32.mrf.mxu0
    %v4877 = vadd.f32 %v4828, %v4876
    %v4878 = vpop.f32.mrf.mxu0
    %v4879 = vadd.f32 %v4830, %v4878
    %4880 = vdwg.mxu0
    %4881 = vmatpush.bf16.msra.mxu0 %v4068
    %4882 = vmatpush.bf16.msra.mxu0 %v4064
    %4883 = vmatpush.bf16.msra.mxu0 %v4060
    %4884 = vmatpush.bf16.msra.mxu0 %v4056
    %4885 = vmatpush.bf16.msra.mxu0 %v4052
    %4886 = vmatpush.bf16.msra.mxu0 %v4048
    %4887 = vmatpush.bf16.msra.mxu0 %v4044
    %4888 = vmatpush.bf16.msra.mxu0 %v4040
    %4889 = vmatmul.bf16.gmra.mxu0 %v3589
    %v4890 = vpop.f32.mrf.mxu0
    %v4891 = vadd.f32 %v3488, %v4890
    %v4892 = vpop.f32.mrf.mxu0
    %v4893 = vadd.f32 %v3488, %v4892
    %4894 = vmatmul.bf16.gmra.mxu0 %v3593
    %v4895 = vpop.f32.mrf.mxu0
    %v4896 = vadd.f32 %v3488, %v4895
    %v4897 = vpop.f32.mrf.mxu0
    %v4898 = vadd.f32 %v3488, %v4897
    %4899 = vmatmul.bf16.gmra.mxu0 %v3597
    %v4900 = vpop.f32.mrf.mxu0
    %v4901 = vadd.f32 %v3488, %v4900
    %v4902 = vpop.f32.mrf.mxu0
    %v4903 = vadd.f32 %v3488, %v4902
    %4904 = vmatmul.bf16.gmra.mxu0 %v3601
    %v4905 = vpop.f32.mrf.mxu0
    %v4906 = vadd.f32 %v3488, %v4905
    %v4907 = vpop.f32.mrf.mxu0
    %v4908 = vadd.f32 %v3488, %v4907
    %4909 = vmatmul.bf16.gmra.mxu0 %v3605
    %v4910 = vpop.f32.mrf.mxu0
    %v4911 = vadd.f32 %v3488, %v4910
    %v4912 = vpop.f32.mrf.mxu0
    %v4913 = vadd.f32 %v3488, %v4912
    %4914 = vmatmul.bf16.gmra.mxu0 %v3609
    %v4915 = vpop.f32.mrf.mxu0
    %v4916 = vadd.f32 %v3488, %v4915
    %v4917 = vpop.f32.mrf.mxu0
    %v4918 = vadd.f32 %v3488, %v4917
    %4919 = vmatmul.bf16.gmra.mxu0 %v3613
    %v4920 = vpop.f32.mrf.mxu0
    %v4921 = vadd.f32 %v3488, %v4920
    %v4922 = vpop.f32.mrf.mxu0
    %v4923 = vadd.f32 %v3488, %v4922
    %4924 = vmatmul.bf16.gmra.mxu0 %v3617
    %v4925 = vpop.f32.mrf.mxu0
    %v4926 = vadd.f32 %v3488, %v4925
    %v4927 = vpop.f32.mrf.mxu0
    %v4928 = vadd.f32 %v3488, %v4927
    %4929 = vdwg.mxu0
    %4930 = vmatpush.bf16.msra.mxu0 %v4100
    %4931 = vmatpush.bf16.msra.mxu0 %v4096
    %4932 = vmatpush.bf16.msra.mxu0 %v4092
    %4933 = vmatpush.bf16.msra.mxu0 %v4088
    %4934 = vmatpush.bf16.msra.mxu0 %v4084
    %4935 = vmatpush.bf16.msra.mxu0 %v4080
    %4936 = vmatpush.bf16.msra.mxu0 %v4076
    %4937 = vmatpush.bf16.msra.mxu0 %v4072
    %4938 = vmatmul.bf16.gmra.mxu0 %v3590
    %v4939 = vpop.f32.mrf.mxu0
    %v4940 = vadd.f32 %v4891, %v4939
    %v4941 = vpop.f32.mrf.mxu0
    %v4942 = vadd.f32 %v4893, %v4941
    %4943 = vmatmul.bf16.gmra.mxu0 %v3594
    %v4944 = vpop.f32.mrf.mxu0
    %v4945 = vadd.f32 %v4896, %v4944
    %v4946 = vpop.f32.mrf.mxu0
    %v4947 = vadd.f32 %v4898, %v4946
    %4948 = vmatmul.bf16.gmra.mxu0 %v3598
    %v4949 = vpop.f32.mrf.mxu0
    %v4950 = vadd.f32 %v4901, %v4949
    %v4951 = vpop.f32.mrf.mxu0
    %v4952 = vadd.f32 %v4903, %v4951
    %4953 = vmatmul.bf16.gmra.mxu0 %v3602
    %v4954 = vpop.f32.mrf.mxu0
    %v4955 = vadd.f32 %v4906, %v4954
    %v4956 = vpop.f32.mrf.mxu0
    %v4957 = vadd.f32 %v4908, %v4956
    %4958 = vmatmul.bf16.gmra.mxu0 %v3606
    %v4959 = vpop.f32.mrf.mxu0
    %v4960 = vadd.f32 %v4911, %v4959
    %v4961 = vpop.f32.mrf.mxu0
    %v4962 = vadd.f32 %v4913, %v4961
    %4963 = vmatmul.bf16.gmra.mxu0 %v3610
    %v4964 = vpop.f32.mrf.mxu0
    %v4965 = vadd.f32 %v4916, %v4964
    %v4966 = vpop.f32.mrf.mxu0
    %v4967 = vadd.f32 %v4918, %v4966
    %4968 = vmatmul.bf16.gmra.mxu0 %v3614
    %v4969 = vpop.f32.mrf.mxu0
    %v4970 = vadd.f32 %v4921, %v4969
    %v4971 = vpop.f32.mrf.mxu0
    %v4972 = vadd.f32 %v4923, %v4971
    %4973 = vmatmul.bf16.gmra.mxu0 %v3618
    %v4974 = vpop.f32.mrf.mxu0
    %v4975 = vadd.f32 %v4926, %v4974
    %v4976 = vpop.f32.mrf.mxu0
    %v4977 = vadd.f32 %v4928, %v4976
    %4978 = vdwg.mxu0
    %4979 = vmatpush.bf16.msra.mxu0 %v4132
    %4980 = vmatpush.bf16.msra.mxu0 %v4128
    %4981 = vmatpush.bf16.msra.mxu0 %v4124
    %4982 = vmatpush.bf16.msra.mxu0 %v4120
    %4983 = vmatpush.bf16.msra.mxu0 %v4116
    %4984 = vmatpush.bf16.msra.mxu0 %v4112
    %4985 = vmatpush.bf16.msra.mxu0 %v4108
    %4986 = vmatpush.bf16.msra.mxu0 %v4104
    %4987 = vmatmul.bf16.gmra.mxu0 %v3591
    %v4988 = vpop.f32.mrf.mxu0
    %v4989 = vadd.f32 %v4940, %v4988
    %v4990 = vpop.f32.mrf.mxu0
    %v4991 = vadd.f32 %v4942, %v4990
    %4992 = vmatmul.bf16.gmra.mxu0 %v3595
    %v4993 = vpop.f32.mrf.mxu0
    %v4994 = vadd.f32 %v4945, %v4993
    %v4995 = vpop.f32.mrf.mxu0
    %v4996 = vadd.f32 %v4947, %v4995
    %4997 = vmatmul.bf16.gmra.mxu0 %v3599
    %v4998 = vpop.f32.mrf.mxu0
    %v4999 = vadd.f32 %v4950, %v4998
    %v5000 = vpop.f32.mrf.mxu0
    %v5001 = vadd.f32 %v4952, %v5000
    %5002 = vmatmul.bf16.gmra.mxu0 %v3603
    %v5003 = vpop.f32.mrf.mxu0
    %v5004 = vadd.f32 %v4955, %v5003
    %v5005 = vpop.f32.mrf.mxu0
    %v5006 = vadd.f32 %v4957, %v5005
    %5007 = vmatmul.bf16.gmra.mxu0 %v3607
    %v5008 = vpop.f32.mrf.mxu0
    %v5009 = vadd.f32 %v4960, %v5008
    %v5010 = vpop.f32.mrf.mxu0
    %v5011 = vadd.f32 %v4962, %v5010
    %5012 = vmatmul.bf16.gmra.mxu0 %v3611
    %v5013 = vpop.f32.mrf.mxu0
    %v5014 = vadd.f32 %v4965, %v5013
    %v5015 = vpop.f32.mrf.mxu0
    %v5016 = vadd.f32 %v4967, %v5015
    %5017 = vmatmul.bf16.gmra.mxu0 %v3615
    %v5018 = vpop.f32.mrf.mxu0
    %v5019 = vadd.f32 %v4970, %v5018
    %v5020 = vpop.f32.mrf.mxu0
    %v5021 = vadd.f32 %v4972, %v5020
    %5022 = vmatmul.bf16.gmra.mxu0 %v3619
    %v5023 = vpop.f32.mrf.mxu0
    %v5024 = vadd.f32 %v4975, %v5023
    %v5025 = vpop.f32.mrf.mxu0
    %v5026 = vadd.f32 %v4977, %v5025
    %5027 = vdwg.mxu0
    %5028 = vmatpush.bf16.msra.mxu0 %v4164
    %5029 = vmatpush.bf16.msra.mxu0 %v4160
    %5030 = vmatpush.bf16.msra.mxu0 %v4156
    %5031 = vmatpush.bf16.msra.mxu0 %v4152
    %5032 = vmatpush.bf16.msra.mxu0 %v4148
    %5033 = vmatpush.bf16.msra.mxu0 %v4144
    %5034 = vmatpush.bf16.msra.mxu0 %v4140
    %5035 = vmatpush.bf16.msra.mxu0 %v4136
    %5036 = vmatmul.bf16.gmra.mxu0 %v3592
    %v5037 = vpop.f32.mrf.mxu0
    %v5038 = vadd.f32 %v4989, %v5037
    %v5039 = vpop.f32.mrf.mxu0
    %v5040 = vadd.f32 %v4991, %v5039
    %5041 = vmatmul.bf16.gmra.mxu0 %v3596
    %v5042 = vpop.f32.mrf.mxu0
    %v5043 = vadd.f32 %v4994, %v5042
    %v5044 = vpop.f32.mrf.mxu0
    %v5045 = vadd.f32 %v4996, %v5044
    %5046 = vmatmul.bf16.gmra.mxu0 %v3600
    %v5047 = vpop.f32.mrf.mxu0
    %v5048 = vadd.f32 %v4999, %v5047
    %v5049 = vpop.f32.mrf.mxu0
    %v5050 = vadd.f32 %v5001, %v5049
    %5051 = vmatmul.bf16.gmra.mxu0 %v3604
    %v5052 = vpop.f32.mrf.mxu0
    %v5053 = vadd.f32 %v5004, %v5052
    %v5054 = vpop.f32.mrf.mxu0
    %v5055 = vadd.f32 %v5006, %v5054
    %5056 = vmatmul.bf16.gmra.mxu0 %v3608
    %v5057 = vpop.f32.mrf.mxu0
    %v5058 = vadd.f32 %v5009, %v5057
    %v5059 = vpop.f32.mrf.mxu0
    %v5060 = vadd.f32 %v5011, %v5059
    %5061 = vmatmul.bf16.gmra.mxu0 %v3612
    %v5062 = vpop.f32.mrf.mxu0
    %v5063 = vadd.f32 %v5014, %v5062
    %v5064 = vpop.f32.mrf.mxu0
    %v5065 = vadd.f32 %v5016, %v5064
    %5066 = vmatmul.bf16.gmra.mxu0 %v3616
    %v5067 = vpop.f32.mrf.mxu0
    %v5068 = vadd.f32 %v5019, %v5067
    %v5069 = vpop.f32.mrf.mxu0
    %v5070 = vadd.f32 %v5021, %v5069
    %5071 = vmatmul.bf16.gmra.mxu0 %v3620
    %v5072 = vpop.f32.mrf.mxu0
    %v5073 = vadd.f32 %v5024, %v5072
    %v5074 = vpop.f32.mrf.mxu0
    %v5075 = vadd.f32 %v5026, %v5074
    %5076 = vdwg.mxu0
    %v5077 = vmax.f32 %v4450, 0.0
    %v5078 = vmax.f32 %v4646, 0.0
    %v5079 = vmax.f32 %v4842, 0.0
    %v5080 = vmax.f32 %v5038, 0.0
    %v5081 = vmax.f32 %v4452, 0.0
    %v5082 = vmax.f32 %v4648, 0.0
    %v5083 = vmax.f32 %v4844, 0.0
    %v5084 = vmax.f32 %v5040, 0.0
    %v5085 = vmax.f32 %v4455, 0.0
    %v5086 = vmax.f32 %v4651, 0.0
    %v5087 = vmax.f32 %v4847, 0.0
    %v5088 = vmax.f32 %v5043, 0.0
    %v5089 = vmax.f32 %v4457, 0.0
    %v5090 = vmax.f32 %v4653, 0.0
    %v5091 = vmax.f32 %v4849, 0.0
    %v5092 = vmax.f32 %v5045, 0.0
    %v5093 = vmax.f32 %v4460, 0.0
    %v5094 = vmax.f32 %v4656, 0.0
    %v5095 = vmax.f32 %v4852, 0.0
    %v5096 = vmax.f32 %v5048, 0.0
    %v5097 = vmax.f32 %v4462, 0.0
    %v5098 = vmax.f32 %v4658, 0.0
    %v5099 = vmax.f32 %v4854, 0.0
    %v5100 = vmax.f32 %v5050, 0.0
    %v5101 = vmax.f32 %v4465, 0.0
    %v5102 = vmax.f32 %v4661, 0.0
    %v5103 = vmax.f32 %v4857, 0.0
    %v5104 = vmax.f32 %v5053, 0.0
    %v5105 = vmax.f32 %v4467, 0.0
    %v5106 = vmax.f32 %v4663, 0.0
    %v5107 = vmax.f32 %v4859, 0.0
    %v5108 = vmax.f32 %v5055, 0.0
    %v5109 = vmax.f32 %v4470, 0.0
    %v5110 = vmax.f32 %v4666, 0.0
    %v5111 = vmax.f32 %v4862, 0.0
    %v5112 = vmax.f32 %v5058, 0.0
    %v5113 = vmax.f32 %v4472, 0.0
    %v5114 = vmax.f32 %v4668, 0.0
    %v5115 = vmax.f32 %v4864, 0.0
    %v5116 = vmax.f32 %v5060, 0.0
    %v5117 = vmax.f32 %v4475, 0.0
    %v5118 = vmax.f32 %v4671, 0.0
    %v5119 = vmax.f32 %v4867, 0.0
    %v5120 = vmax.f32 %v5063, 0.0
    %v5121 = vmax.f32 %v4477, 0.0
    %v5122 = vmax.f32 %v4673, 0.0
    %v5123 = vmax.f32 %v4869, 0.0
    %v5124 = vmax.f32 %v5065, 0.0
    %v5125 = vmax.f32 %v4480, 0.0
    %v5126 = vmax.f32 %v4676, 0.0
    %v5127 = vmax.f32 %v4872, 0.0
    %v5128 = vmax.f32 %v5068, 0.0
    %v5129 = vmax.f32 %v4482, 0.0
    %v5130 = vmax.f32 %v4678, 0.0
    %v5131 = vmax.f32 %v4874, 0.0
    %v5132 = vmax.f32 %v5070, 0.0
    %v5133 = vmax.f32 %v4485, 0.0
    %v5134 = vmax.f32 %v4681, 0.0
    %v5135 = vmax.f32 %v4877, 0.0
    %v5136 = vmax.f32 %v5073, 0.0
    %v5137 = vmax.f32 %v4487, 0.0
    %v5138 = vmax.f32 %v4683, 0.0
    %v5139 = vmax.f32 %v4879, 0.0
    %v5140 = vmax.f32 %v5075, 0.0
    %v5141 = vpack.c.bf16 %v5078, %v5077
    %v5142 = vpack.c.bf16 %v5080, %v5079
    %v5143 = vpack.c.bf16 %v5082, %v5081
    %v5144 = vpack.c.bf16 %v5084, %v5083
    %v5145 = vpack.c.bf16 %v5086, %v5085
    %v5146 = vpack.c.bf16 %v5088, %v5087
    %v5147 = vpack.c.bf16 %v5090, %v5089
    %v5148 = vpack.c.bf16 %v5092, %v5091
    %v5149 = vpack.c.bf16 %v5094, %v5093
    %v5150 = vpack.c.bf16 %v5096, %v5095
    %v5151 = vpack.c.bf16 %v5098, %v5097
    %v5152 = vpack.c.bf16 %v5100, %v5099
    %v5153 = vpack.c.bf16 %v5102, %v5101
    %v5154 = vpack.c.bf16 %v5104, %v5103
    %v5155 = vpack.c.bf16 %v5106, %v5105
    %v5156 = vpack.c.bf16 %v5108, %v5107
    %v5157 = vpack.c.bf16 %v5110, %v5109
    %v5158 = vpack.c.bf16 %v5112, %v5111
    %v5159 = vpack.c.bf16 %v5114, %v5113
    %v5160 = vpack.c.bf16 %v5116, %v5115
    %v5161 = vpack.c.bf16 %v5118, %v5117
    %v5162 = vpack.c.bf16 %v5120, %v5119
    %v5163 = vpack.c.bf16 %v5122, %v5121
    %v5164 = vpack.c.bf16 %v5124, %v5123
    %v5165 = vpack.c.bf16 %v5126, %v5125
    %v5166 = vpack.c.bf16 %v5128, %v5127
    %v5167 = vpack.c.bf16 %v5130, %v5129
    %v5168 = vpack.c.bf16 %v5132, %v5131
    %v5169 = vpack.c.bf16 %v5134, %v5133
    %v5170 = vpack.c.bf16 %v5136, %v5135
    %v5171 = vpack.c.bf16 %v5138, %v5137
    %v5172 = vpack.c.bf16 %v5140, %v5139
    %5173 = vst [vmem:[#allocation3] sm:$0xff] %v5141
    %5174 = vst [vmem:[#allocation3 + $0x8] sm:$0xff] %v5142
    %5175 = vst [vmem:[#allocation3 + $0x10] sm:$0xff] %v5143
    %5176 = vst [vmem:[#allocation3 + $0x18] sm:$0xff] %v5144
    %5177 = vst [vmem:[#allocation3 + $0x20] sm:$0xff] %v5145
    %5178 = vst [vmem:[#allocation3 + $0x28] sm:$0xff] %v5146
    %5179 = vst [vmem:[#allocation3 + $0x30] sm:$0xff] %v5147
    %5180 = vst [vmem:[#allocation3 + $0x38] sm:$0xff] %v5148
    %5181 = vst [vmem:[#allocation3 + $0x40] sm:$0xff] %v5149
    %5182 = vst [vmem:[#allocation3 + $0x48] sm:$0xff] %v5150
    %5183 = vst [vmem:[#allocation3 + $0x50] sm:$0xff] %v5151
    %5184 = vst [vmem:[#allocation3 + $0x58] sm:$0xff] %v5152
    %5185 = vst [vmem:[#allocation3 + $0x60] sm:$0xff] %v5153
    %5186 = vst [vmem:[#allocation3 + $0x68] sm:$0xff] %v5154
    %5187 = vst [vmem:[#allocation3 + $0x70] sm:$0xff] %v5155
    %5188 = vst [vmem:[#allocation3 + $0x78] sm:$0xff] %v5156
    %5189 = vst [vmem:[#allocation3 + $0x80] sm:$0xff] %v5157
    %5190 = vst [vmem:[#allocation3 + $0x88] sm:$0xff] %v5158
    %5191 = vst [vmem:[#allocation3 + $0x90] sm:$0xff] %v5159
    %5192 = vst [vmem:[#allocation3 + $0x98] sm:$0xff] %v5160
    %5193 = vst [vmem:[#allocation3 + $0xa0] sm:$0xff] %v5161
    %5194 = vst [vmem:[#allocation3 + $0xa8] sm:$0xff] %v5162
    %5195 = vst [vmem:[#allocation3 + $0xb0] sm:$0xff] %v5163
    %5196 = vst [vmem:[#allocation3 + $0xb8] sm:$0xff] %v5164
    %5197 = vst [vmem:[#allocation3 + $0xc0] sm:$0xff] %v5165
    %5198 = vst [vmem:[#allocation3 + $0xc8] sm:$0xff] %v5166
    %5199 = vst [vmem:[#allocation3 + $0xd0] sm:$0xff] %v5167
    %5200 = vst [vmem:[#allocation3 + $0xd8] sm:$0xff] %v5168
    %5201 = vst [vmem:[#allocation3 + $0xe0] sm:$0xff] %v5169
    %5202 = vst [vmem:[#allocation3 + $0xe8] sm:$0xff] %v5170
    %5203 = vst [vmem:[#allocation3 + $0xf0] sm:$0xff] %v5171
    %5204 = vst [vmem:[#allocation3 + $0xf8] sm:$0xff] %v5172
    %v5205 = vld [vmem:[#allocation3] sm:$0xff]
    %v5206 = vld [vmem:[#allocation3 + $0x8] sm:$0xff]
    %v5207 = vld [vmem:[#allocation3 + $0x10] sm:$0xff]
    %v5208 = vld [vmem:[#allocation3 + $0x18] sm:$0xff]
    %v5209 = vld [vmem:[#allocation3 + $0x20] sm:$0xff]
    %v5210 = vld [vmem:[#allocation3 + $0x28] sm:$0xff]
    %v5211 = vld [vmem:[#allocation3 + $0x30] sm:$0xff]
    %v5212 = vld [vmem:[#allocation3 + $0x38] sm:$0xff]
    %v5213 = vld [vmem:[#allocation3 + $0x40] sm:$0xff]
    %v5214 = vld [vmem:[#allocation3 + $0x48] sm:$0xff]
    %v5215 = vld [vmem:[#allocation3 + $0x50] sm:$0xff]
    %v5216 = vld [vmem:[#allocation3 + $0x58] sm:$0xff]
    %v5217 = vld [vmem:[#allocation3 + $0x60] sm:$0xff]
    %v5218 = vld [vmem:[#allocation3 + $0x68] sm:$0xff]
    %v5219 = vld [vmem:[#allocation3 + $0x70] sm:$0xff]
    %v5220 = vld [vmem:[#allocation3 + $0x78] sm:$0xff]
    %v5221 = vld [vmem:[#allocation3 + $0x80] sm:$0xff]
    %v5222 = vld [vmem:[#allocation3 + $0x88] sm:$0xff]
    %v5223 = vld [vmem:[#allocation3 + $0x90] sm:$0xff]
    %v5224 = vld [vmem:[#allocation3 + $0x98] sm:$0xff]
    %v5225 = vld [vmem:[#allocation3 + $0xa0] sm:$0xff]
    %v5226 = vld [vmem:[#allocation3 + $0xa8] sm:$0xff]
    %v5227 = vld [vmem:[#allocation3 + $0xb0] sm:$0xff]
    %v5228 = vld [vmem:[#allocation3 + $0xb8] sm:$0xff]
    %v5229 = vld [vmem:[#allocation3 + $0xc0] sm:$0xff]
    %v5230 = vld [vmem:[#allocation3 + $0xc8] sm:$0xff]
    %v5231 = vld [vmem:[#allocation3 + $0xd0] sm:$0xff]
    %v5232 = vld [vmem:[#allocation3 + $0xd8] sm:$0xff]
    %v5233 = vld [vmem:[#allocation3 + $0xe0] sm:$0xff]
    %v5234 = vld [vmem:[#allocation3 + $0xe8] sm:$0xff]
    %v5235 = vld [vmem:[#allocation3 + $0xf0] sm:$0xff]
    %v5236 = vld [vmem:[#allocation3 + $0xf8] sm:$0xff]
    %v5237 = vld [vmem:[#allocation13] sm:$0xf]
    %v5238 = vld [vmem:[#allocation13 + $0x4] sm:$0xf]
    %v5239 = vld [vmem:[#allocation13 + $0x8] sm:$0xf]
    %v5240 = vld [vmem:[#allocation13 + $0xc] sm:$0xf]
    %v5241 = vld [vmem:[#allocation13 + $0x10] sm:$0xf]
    %v5242 = vld [vmem:[#allocation13 + $0x14] sm:$0xf]
    %v5243 = vld [vmem:[#allocation13 + $0x18] sm:$0xf]
    %v5244 = vld [vmem:[#allocation13 + $0x1c] sm:$0xf]
    %v5245 = vld [vmem:[#allocation13 + $0x20] sm:$0xf]
    %v5246 = vld [vmem:[#allocation13 + $0x24] sm:$0xf]
    %v5247 = vld [vmem:[#allocation13 + $0x28] sm:$0xf]
    %v5248 = vld [vmem:[#allocation13 + $0x2c] sm:$0xf]
    %v5249 = vld [vmem:[#allocation13 + $0x30] sm:$0xf]
    %v5250 = vld [vmem:[#allocation13 + $0x34] sm:$0xf]
    %v5251 = vld [vmem:[#allocation13 + $0x38] sm:$0xf]
    %v5252 = vld [vmem:[#allocation13 + $0x3c] sm:$0xf]
    %v5253 = vld [vmem:[#allocation13 + $0x40] sm:$0xf]
    %v5254 = vld [vmem:[#allocation13 + $0x44] sm:$0xf]
    %v5255 = vld [vmem:[#allocation13 + $0x48] sm:$0xf]
    %v5256 = vld [vmem:[#allocation13 + $0x4c] sm:$0xf]
    %v5257 = vld [vmem:[#allocation13 + $0x50] sm:$0xf]
    %v5258 = vld [vmem:[#allocation13 + $0x54] sm:$0xf]
    %v5259 = vld [vmem:[#allocation13 + $0x58] sm:$0xf]
    %v5260 = vld [vmem:[#allocation13 + $0x5c] sm:$0xf]
    %v5261 = vld [vmem:[#allocation13 + $0x60] sm:$0xf]
    %v5262 = vld [vmem:[#allocation13 + $0x64] sm:$0xf]
    %v5263 = vld [vmem:[#allocation13 + $0x68] sm:$0xf]
    %v5264 = vld [vmem:[#allocation13 + $0x6c] sm:$0xf]
    %v5265 = vld [vmem:[#allocation13 + $0x70] sm:$0xf]
    %v5266 = vld [vmem:[#allocation13 + $0x74] sm:$0xf]
    %v5267 = vld [vmem:[#allocation13 + $0x78] sm:$0xf]
    %v5268 = vld [vmem:[#allocation13 + $0x7c] sm:$0xf]
    %v5269 = vld [vmem:[#allocation13 + $0x80] sm:$0xf]
    %v5270 = vld [vmem:[#allocation13 + $0x84] sm:$0xf]
    %v5271 = vld [vmem:[#allocation13 + $0x88] sm:$0xf]
    %v5272 = vld [vmem:[#allocation13 + $0x8c] sm:$0xf]
    %v5273 = vld [vmem:[#allocation13 + $0x90] sm:$0xf]
    %v5274 = vld [vmem:[#allocation13 + $0x94] sm:$0xf]
    %v5275 = vld [vmem:[#allocation13 + $0x98] sm:$0xf]
    %v5276 = vld [vmem:[#allocation13 + $0x9c] sm:$0xf]
    %v5277 = vld [vmem:[#allocation13 + $0xa0] sm:$0xf]
    %v5278 = vld [vmem:[#allocation13 + $0xa4] sm:$0xf]
    %v5279 = vld [vmem:[#allocation13 + $0xa8] sm:$0xf]
    %v5280 = vld [vmem:[#allocation13 + $0xac] sm:$0xf]
    %v5281 = vld [vmem:[#allocation13 + $0xb0] sm:$0xf]
    %v5282 = vld [vmem:[#allocation13 + $0xb4] sm:$0xf]
    %v5283 = vld [vmem:[#allocation13 + $0xb8] sm:$0xf]
    %v5284 = vld [vmem:[#allocation13 + $0xbc] sm:$0xf]
    %v5285 = vld [vmem:[#allocation13 + $0xc0] sm:$0xf]
    %v5286 = vld [vmem:[#allocation13 + $0xc4] sm:$0xf]
    %v5287 = vld [vmem:[#allocation13 + $0xc8] sm:$0xf]
    %v5288 = vld [vmem:[#allocation13 + $0xcc] sm:$0xf]
    %v5289 = vld [vmem:[#allocation13 + $0xd0] sm:$0xf]
    %v5290 = vld [vmem:[#allocation13 + $0xd4] sm:$0xf]
    %v5291 = vld [vmem:[#allocation13 + $0xd8] sm:$0xf]
    %v5292 = vld [vmem:[#allocation13 + $0xdc] sm:$0xf]
    %v5293 = vld [vmem:[#allocation13 + $0xe0] sm:$0xf]
    %v5294 = vld [vmem:[#allocation13 + $0xe4] sm:$0xf]
    %v5295 = vld [vmem:[#allocation13 + $0xe8] sm:$0xf]
    %v5296 = vld [vmem:[#allocation13 + $0xec] sm:$0xf]
    %v5297 = vld [vmem:[#allocation13 + $0xf0] sm:$0xf]
    %v5298 = vld [vmem:[#allocation13 + $0xf4] sm:$0xf]
    %v5299 = vld [vmem:[#allocation13 + $0xf8] sm:$0xf]
    %v5300 = vld [vmem:[#allocation13 + $0xfc] sm:$0xf]
    %v5301 = vld [vmem:[%s6] sm:$0x1]
    %v5303 = vperm.slane %v5301, 0
    %v5337 = vunpack.c.l.b16 %v5205
    %v5338 = vunpack.c.h.b16 %v5205
    %v5339 = vunpack.c.l.b16 %v5206
    %v5340 = vunpack.c.h.b16 %v5206
    %v5341 = vunpack.c.l.b16 %v5207
    %v5342 = vunpack.c.h.b16 %v5207
    %v5343 = vunpack.c.l.b16 %v5208
    %v5344 = vunpack.c.h.b16 %v5208
    %v5345 = vunpack.c.l.b16 %v5209
    %v5346 = vunpack.c.h.b16 %v5209
    %v5347 = vunpack.c.l.b16 %v5210
    %v5348 = vunpack.c.h.b16 %v5210
    %v5349 = vunpack.c.l.b16 %v5211
    %v5350 = vunpack.c.h.b16 %v5211
    %v5351 = vunpack.c.l.b16 %v5212
    %v5352 = vunpack.c.h.b16 %v5212
    %v5353 = vunpack.c.l.b16 %v5213
    %v5354 = vunpack.c.h.b16 %v5213
    %v5355 = vunpack.c.l.b16 %v5214
    %v5356 = vunpack.c.h.b16 %v5214
    %v5357 = vunpack.c.l.b16 %v5215
    %v5358 = vunpack.c.h.b16 %v5215
    %v5359 = vunpack.c.l.b16 %v5216
    %v5360 = vunpack.c.h.b16 %v5216
    %v5361 = vunpack.c.l.b16 %v5217
    %v5362 = vunpack.c.h.b16 %v5217
    %v5363 = vunpack.c.l.b16 %v5218
    %v5364 = vunpack.c.h.b16 %v5218
    %v5365 = vunpack.c.l.b16 %v5219
    %v5366 = vunpack.c.h.b16 %v5219
    %v5367 = vunpack.c.l.b16 %v5220
    %v5368 = vunpack.c.h.b16 %v5220
    %v5369 = vunpack.c.l.b16 %v5221
    %v5370 = vunpack.c.h.b16 %v5221
    %v5371 = vunpack.c.l.b16 %v5222
    %v5372 = vunpack.c.h.b16 %v5222
    %v5373 = vunpack.c.l.b16 %v5223
    %v5374 = vunpack.c.h.b16 %v5223
    %v5375 = vunpack.c.l.b16 %v5224
    %v5376 = vunpack.c.h.b16 %v5224
    %v5377 = vunpack.c.l.b16 %v5225
    %v5378 = vunpack.c.h.b16 %v5225
    %v5379 = vunpack.c.l.b16 %v5226
    %v5380 = vunpack.c.h.b16 %v5226
    %v5381 = vunpack.c.l.b16 %v5227
    %v5382 = vunpack.c.h.b16 %v5227
    %v5383 = vunpack.c.l.b16 %v5228
    %v5384 = vunpack.c.h.b16 %v5228
    %v5385 = vunpack.c.l.b16 %v5229
    %v5386 = vunpack.c.h.b16 %v5229
    %v5387 = vunpack.c.l.b16 %v5230
    %v5388 = vunpack.c.h.b16 %v5230
    %v5389 = vunpack.c.l.b16 %v5231
    %v5390 = vunpack.c.h.b16 %v5231
    %v5391 = vunpack.c.l.b16 %v5232
    %v5392 = vunpack.c.h.b16 %v5232
    %v5393 = vunpack.c.l.b16 %v5233
    %v5394 = vunpack.c.h.b16 %v5233
    %v5395 = vunpack.c.l.b16 %v5234
    %v5396 = vunpack.c.h.b16 %v5234
    %v5397 = vunpack.c.l.b16 %v5235
    %v5398 = vunpack.c.h.b16 %v5235
    %v5399 = vunpack.c.l.b16 %v5236
    %v5400 = vunpack.c.h.b16 %v5236
    %v5401 = vpack.c.b16 %v5341, %v5337
    %v5402 = vpack.c.b16 %v5342, %v5338
    %v5403 = vpack.c.b16 %v5343, %v5339
    %v5404 = vpack.c.b16 %v5344, %v5340
    %v5405 = vpack.c.b16 %v5349, %v5345
    %v5406 = vpack.c.b16 %v5350, %v5346
    %v5407 = vpack.c.b16 %v5351, %v5347
    %v5408 = vpack.c.b16 %v5352, %v5348
    %v5409 = vpack.c.b16 %v5357, %v5353
    %v5410 = vpack.c.b16 %v5358, %v5354
    %v5411 = vpack.c.b16 %v5359, %v5355
    %v5412 = vpack.c.b16 %v5360, %v5356
    %v5413 = vpack.c.b16 %v5365, %v5361
    %v5414 = vpack.c.b16 %v5366, %v5362
    %v5415 = vpack.c.b16 %v5367, %v5363
    %v5416 = vpack.c.b16 %v5368, %v5364
    %v5417 = vpack.c.b16 %v5373, %v5369
    %v5418 = vpack.c.b16 %v5374, %v5370
    %v5419 = vpack.c.b16 %v5375, %v5371
    %v5420 = vpack.c.b16 %v5376, %v5372
    %v5421 = vpack.c.b16 %v5381, %v5377
    %v5422 = vpack.c.b16 %v5382, %v5378
    %v5423 = vpack.c.b16 %v5383, %v5379
    %v5424 = vpack.c.b16 %v5384, %v5380
    %v5425 = vpack.c.b16 %v5389, %v5385
    %v5426 = vpack.c.b16 %v5390, %v5386
    %v5427 = vpack.c.b16 %v5391, %v5387
    %v5428 = vpack.c.b16 %v5392, %v5388
    %v5429 = vpack.c.b16 %v5397, %v5393
    %v5430 = vpack.c.b16 %v5398, %v5394
    %v5431 = vpack.c.b16 %v5399, %v5395
    %v5432 = vpack.c.b16 %v5400, %v5396
    %v5529 = vunpack.c.l.b16 %v5237
    %v5530 = vunpack.c.l.b16 %v5238
    %v5531 = vunpack.c.l.b16 %v5239
    %v5532 = vunpack.c.l.b16 %v5240
    %v5533 = vunpack.c.l.b16 %v5241
    %v5534 = vunpack.c.l.b16 %v5242
    %v5535 = vunpack.c.l.b16 %v5243
    %v5536 = vunpack.c.l.b16 %v5244
    %v5537 = vunpack.c.l.b16 %v5245
    %v5538 = vunpack.c.l.b16 %v5246
    %v5539 = vunpack.c.l.b16 %v5247
    %v5540 = vunpack.c.l.b16 %v5248
    %v5541 = vunpack.c.l.b16 %v5249
    %v5542 = vunpack.c.l.b16 %v5250
    %v5543 = vunpack.c.l.b16 %v5251
    %v5544 = vunpack.c.l.b16 %v5252
    %v5545 = vunpack.c.l.b16 %v5253
    %v5546 = vunpack.c.l.b16 %v5254
    %v5547 = vunpack.c.l.b16 %v5255
    %v5548 = vunpack.c.l.b16 %v5256
    %v5549 = vunpack.c.l.b16 %v5257
    %v5550 = vunpack.c.l.b16 %v5258
    %v5551 = vunpack.c.l.b16 %v5259
    %v5552 = vunpack.c.l.b16 %v5260
    %v5553 = vunpack.c.l.b16 %v5261
    %v5554 = vunpack.c.l.b16 %v5262
    %v5555 = vunpack.c.l.b16 %v5263
    %v5556 = vunpack.c.l.b16 %v5264
    %v5557 = vunpack.c.l.b16 %v5265
    %v5558 = vunpack.c.l.b16 %v5266
    %v5559 = vunpack.c.l.b16 %v5267
    %v5560 = vunpack.c.l.b16 %v5268
    %v5561 = vunpack.c.l.b16 %v5269
    %v5562 = vunpack.c.l.b16 %v5270
    %v5563 = vunpack.c.l.b16 %v5271
    %v5564 = vunpack.c.l.b16 %v5272
    %v5565 = vunpack.c.l.b16 %v5273
    %v5566 = vunpack.c.l.b16 %v5274
    %v5567 = vunpack.c.l.b16 %v5275
    %v5568 = vunpack.c.l.b16 %v5276
    %v5569 = vunpack.c.l.b16 %v5277
    %v5570 = vunpack.c.l.b16 %v5278
    %v5571 = vunpack.c.l.b16 %v5279
    %v5572 = vunpack.c.l.b16 %v5280
    %v5573 = vunpack.c.l.b16 %v5281
    %v5574 = vunpack.c.l.b16 %v5282
    %v5575 = vunpack.c.l.b16 %v5283
    %v5576 = vunpack.c.l.b16 %v5284
    %v5577 = vunpack.c.l.b16 %v5285
    %v5578 = vunpack.c.l.b16 %v5286
    %v5579 = vunpack.c.l.b16 %v5287
    %v5580 = vunpack.c.l.b16 %v5288
    %v5581 = vunpack.c.l.b16 %v5289
    %v5582 = vunpack.c.l.b16 %v5290
    %v5583 = vunpack.c.l.b16 %v5291
    %v5584 = vunpack.c.l.b16 %v5292
    %v5585 = vunpack.c.l.b16 %v5293
    %v5586 = vunpack.c.l.b16 %v5294
    %v5587 = vunpack.c.l.b16 %v5295
    %v5588 = vunpack.c.l.b16 %v5296
    %v5589 = vunpack.c.l.b16 %v5297
    %v5590 = vunpack.c.l.b16 %v5298
    %v5591 = vunpack.c.l.b16 %v5299
    %v5592 = vunpack.c.l.b16 %v5300
    %v5593 = vpack.c.b16 %v5530, %v5529
    %v5594 = vpack.c.b16 %v5532, %v5531
    %v5595 = vpack.c.b16 %v5534, %v5533
    %v5596 = vpack.c.b16 %v5536, %v5535
    %v5597 = vpack.c.b16 %v5538, %v5537
    %v5598 = vpack.c.b16 %v5540, %v5539
    %v5599 = vpack.c.b16 %v5542, %v5541
    %v5600 = vpack.c.b16 %v5544, %v5543
    %v5601 = vpack.c.b16 %v5546, %v5545
    %v5602 = vpack.c.b16 %v5548, %v5547
    %v5603 = vpack.c.b16 %v5550, %v5549
    %v5604 = vpack.c.b16 %v5552, %v5551
    %v5605 = vpack.c.b16 %v5554, %v5553
    %v5606 = vpack.c.b16 %v5556, %v5555
    %v5607 = vpack.c.b16 %v5558, %v5557
    %v5608 = vpack.c.b16 %v5560, %v5559
    %v5609 = vpack.c.b16 %v5562, %v5561
    %v5610 = vpack.c.b16 %v5564, %v5563
    %v5611 = vpack.c.b16 %v5566, %v5565
    %v5612 = vpack.c.b16 %v5568, %v5567
    %v5613 = vpack.c.b16 %v5570, %v5569
    %v5614 = vpack.c.b16 %v5572, %v5571
    %v5615 = vpack.c.b16 %v5574, %v5573
    %v5616 = vpack.c.b16 %v5576, %v5575
    %v5617 = vpack.c.b16 %v5578, %v5577
    %v5618 = vpack.c.b16 %v5580, %v5579
    %v5619 = vpack.c.b16 %v5582, %v5581
    %v5620 = vpack.c.b16 %v5584, %v5583
    %v5621 = vpack.c.b16 %v5586, %v5585
    %v5622 = vpack.c.b16 %v5588, %v5587
    %v5623 = vpack.c.b16 %v5590, %v5589
    %v5624 = vpack.c.b16 %v5592, %v5591
    %5657 = vmatpush.bf16.msra.mxu0 %v5600
    %5658 = vmatpush.bf16.msra.mxu0 %v5599
    %5659 = vmatpush.bf16.msra.mxu0 %v5598
    %5660 = vmatpush.bf16.msra.mxu0 %v5597
    %5661 = vmatpush.bf16.msra.mxu0 %v5596
    %5662 = vmatpush.bf16.msra.mxu0 %v5595
    %5663 = vmatpush.bf16.msra.mxu0 %v5594
    %5664 = vmatpush.bf16.msra.mxu0 %v5593
    %5665 = vmatmul.bf16.gmra.mxu0 %v5401
    %v5666 = vpop.f32.mrf.mxu0
    %v5667 = vadd.f32 %v5303, %v5666
    %v5668 = vpop.f32.mrf.mxu0
    %v5669 = vadd.f32 %v5303, %v5668
    %5670 = vmatmul.bf16.gmra.mxu0 %v5405
    %v5671 = vpop.f32.mrf.mxu0
    %v5672 = vadd.f32 %v5303, %v5671
    %v5673 = vpop.f32.mrf.mxu0
    %v5674 = vadd.f32 %v5303, %v5673
    %5675 = vmatmul.bf16.gmra.mxu0 %v5409
    %v5676 = vpop.f32.mrf.mxu0
    %v5677 = vadd.f32 %v5303, %v5676
    %v5678 = vpop.f32.mrf.mxu0
    %v5679 = vadd.f32 %v5303, %v5678
    %5680 = vmatmul.bf16.gmra.mxu0 %v5413
    %v5681 = vpop.f32.mrf.mxu0
    %v5682 = vadd.f32 %v5303, %v5681
    %v5683 = vpop.f32.mrf.mxu0
    %v5684 = vadd.f32 %v5303, %v5683
    %5685 = vmatmul.bf16.gmra.mxu0 %v5417
    %v5686 = vpop.f32.mrf.mxu0
    %v5687 = vadd.f32 %v5303, %v5686
    %v5688 = vpop.f32.mrf.mxu0
    %v5689 = vadd.f32 %v5303, %v5688
    %5690 = vmatmul.bf16.gmra.mxu0 %v5421
    %v5691 = vpop.f32.mrf.mxu0
    %v5692 = vadd.f32 %v5303, %v5691
    %v5693 = vpop.f32.mrf.mxu0
    %v5694 = vadd.f32 %v5303, %v5693
    %5695 = vmatmul.bf16.gmra.mxu0 %v5425
    %v5696 = vpop.f32.mrf.mxu0
    %v5697 = vadd.f32 %v5303, %v5696
    %v5698 = vpop.f32.mrf.mxu0
    %v5699 = vadd.f32 %v5303, %v5698
    %5700 = vmatmul.bf16.gmra.mxu0 %v5429
    %v5701 = vpop.f32.mrf.mxu0
    %v5702 = vadd.f32 %v5303, %v5701
    %v5703 = vpop.f32.mrf.mxu0
    %v5704 = vadd.f32 %v5303, %v5703
    %5705 = vdwg.mxu0
    %5706 = vmatpush.bf16.msra.mxu0 %v5608
    %5707 = vmatpush.bf16.msra.mxu0 %v5607
    %5708 = vmatpush.bf16.msra.mxu0 %v5606
    %5709 = vmatpush.bf16.msra.mxu0 %v5605
    %5710 = vmatpush.bf16.msra.mxu0 %v5604
    %5711 = vmatpush.bf16.msra.mxu0 %v5603
    %5712 = vmatpush.bf16.msra.mxu0 %v5602
    %5713 = vmatpush.bf16.msra.mxu0 %v5601
    %5714 = vmatmul.bf16.gmra.mxu0 %v5402
    %v5715 = vpop.f32.mrf.mxu0
    %v5716 = vadd.f32 %v5667, %v5715
    %v5717 = vpop.f32.mrf.mxu0
    %v5718 = vadd.f32 %v5669, %v5717
    %5719 = vmatmul.bf16.gmra.mxu0 %v5406
    %v5720 = vpop.f32.mrf.mxu0
    %v5721 = vadd.f32 %v5672, %v5720
    %v5722 = vpop.f32.mrf.mxu0
    %v5723 = vadd.f32 %v5674, %v5722
    %5724 = vmatmul.bf16.gmra.mxu0 %v5410
    %v5725 = vpop.f32.mrf.mxu0
    %v5726 = vadd.f32 %v5677, %v5725
    %v5727 = vpop.f32.mrf.mxu0
    %v5728 = vadd.f32 %v5679, %v5727
    %5729 = vmatmul.bf16.gmra.mxu0 %v5414
    %v5730 = vpop.f32.mrf.mxu0
    %v5731 = vadd.f32 %v5682, %v5730
    %v5732 = vpop.f32.mrf.mxu0
    %v5733 = vadd.f32 %v5684, %v5732
    %5734 = vmatmul.bf16.gmra.mxu0 %v5418
    %v5735 = vpop.f32.mrf.mxu0
    %v5736 = vadd.f32 %v5687, %v5735
    %v5737 = vpop.f32.mrf.mxu0
    %v5738 = vadd.f32 %v5689, %v5737
    %5739 = vmatmul.bf16.gmra.mxu0 %v5422
    %v5740 = vpop.f32.mrf.mxu0
    %v5741 = vadd.f32 %v5692, %v5740
    %v5742 = vpop.f32.mrf.mxu0
    %v5743 = vadd.f32 %v5694, %v5742
    %5744 = vmatmul.bf16.gmra.mxu0 %v5426
    %v5745 = vpop.f32.mrf.mxu0
    %v5746 = vadd.f32 %v5697, %v5745
    %v5747 = vpop.f32.mrf.mxu0
    %v5748 = vadd.f32 %v5699, %v5747
    %5749 = vmatmul.bf16.gmra.mxu0 %v5430
    %v5750 = vpop.f32.mrf.mxu0
    %v5751 = vadd.f32 %v5702, %v5750
    %v5752 = vpop.f32.mrf.mxu0
    %v5753 = vadd.f32 %v5704, %v5752
    %5754 = vdwg.mxu0
    %5755 = vmatpush.bf16.msra.mxu0 %v5616
    %5756 = vmatpush.bf16.msra.mxu0 %v5615
    %5757 = vmatpush.bf16.msra.mxu0 %v5614
    %5758 = vmatpush.bf16.msra.mxu0 %v5613
    %5759 = vmatpush.bf16.msra.mxu0 %v5612
    %5760 = vmatpush.bf16.msra.mxu0 %v5611
    %5761 = vmatpush.bf16.msra.mxu0 %v5610
    %5762 = vmatpush.bf16.msra.mxu0 %v5609
    %5763 = vmatmul.bf16.gmra.mxu0 %v5403
    %v5764 = vpop.f32.mrf.mxu0
    %v5765 = vadd.f32 %v5716, %v5764
    %v5766 = vpop.f32.mrf.mxu0
    %v5767 = vadd.f32 %v5718, %v5766
    %5768 = vmatmul.bf16.gmra.mxu0 %v5407
    %v5769 = vpop.f32.mrf.mxu0
    %v5770 = vadd.f32 %v5721, %v5769
    %v5771 = vpop.f32.mrf.mxu0
    %v5772 = vadd.f32 %v5723, %v5771
    %5773 = vmatmul.bf16.gmra.mxu0 %v5411
    %v5774 = vpop.f32.mrf.mxu0
    %v5775 = vadd.f32 %v5726, %v5774
    %v5776 = vpop.f32.mrf.mxu0
    %v5777 = vadd.f32 %v5728, %v5776
    %5778 = vmatmul.bf16.gmra.mxu0 %v5415
    %v5779 = vpop.f32.mrf.mxu0
    %v5780 = vadd.f32 %v5731, %v5779
    %v5781 = vpop.f32.mrf.mxu0
    %v5782 = vadd.f32 %v5733, %v5781
    %5783 = vmatmul.bf16.gmra.mxu0 %v5419
    %v5784 = vpop.f32.mrf.mxu0
    %v5785 = vadd.f32 %v5736, %v5784
    %v5786 = vpop.f32.mrf.mxu0
    %v5787 = vadd.f32 %v5738, %v5786
    %5788 = vmatmul.bf16.gmra.mxu0 %v5423
    %v5789 = vpop.f32.mrf.mxu0
    %v5790 = vadd.f32 %v5741, %v5789
    %v5791 = vpop.f32.mrf.mxu0
    %v5792 = vadd.f32 %v5743, %v5791
    %5793 = vmatmul.bf16.gmra.mxu0 %v5427
    %v5794 = vpop.f32.mrf.mxu0
    %v5795 = vadd.f32 %v5746, %v5794
    %v5796 = vpop.f32.mrf.mxu0
    %v5797 = vadd.f32 %v5748, %v5796
    %5798 = vmatmul.bf16.gmra.mxu0 %v5431
    %v5799 = vpop.f32.mrf.mxu0
    %v5800 = vadd.f32 %v5751, %v5799
    %v5801 = vpop.f32.mrf.mxu0
    %v5802 = vadd.f32 %v5753, %v5801
    %5803 = vdwg.mxu0
    %5804 = vmatpush.bf16.msra.mxu0 %v5624
    %5805 = vmatpush.bf16.msra.mxu0 %v5623
    %5806 = vmatpush.bf16.msra.mxu0 %v5622
    %5807 = vmatpush.bf16.msra.mxu0 %v5621
    %5808 = vmatpush.bf16.msra.mxu0 %v5620
    %5809 = vmatpush.bf16.msra.mxu0 %v5619
    %5810 = vmatpush.bf16.msra.mxu0 %v5618
    %5811 = vmatpush.bf16.msra.mxu0 %v5617
    %5812 = vmatmul.bf16.gmra.mxu0 %v5404
    %v5813 = vpop.f32.mrf.mxu0
    %v5814 = vadd.f32 %v5765, %v5813
    %v5815 = vpop.f32.mrf.mxu0
    %v5816 = vadd.f32 %v5767, %v5815
    %5817 = vmatmul.bf16.gmra.mxu0 %v5408
    %v5818 = vpop.f32.mrf.mxu0
    %v5819 = vadd.f32 %v5770, %v5818
    %v5820 = vpop.f32.mrf.mxu0
    %v5821 = vadd.f32 %v5772, %v5820
    %5822 = vmatmul.bf16.gmra.mxu0 %v5412
    %v5823 = vpop.f32.mrf.mxu0
    %v5824 = vadd.f32 %v5775, %v5823
    %v5825 = vpop.f32.mrf.mxu0
    %v5826 = vadd.f32 %v5777, %v5825
    %5827 = vmatmul.bf16.gmra.mxu0 %v5416
    %v5828 = vpop.f32.mrf.mxu0
    %v5829 = vadd.f32 %v5780, %v5828
    %v5830 = vpop.f32.mrf.mxu0
    %v5831 = vadd.f32 %v5782, %v5830
    %5832 = vmatmul.bf16.gmra.mxu0 %v5420
    %v5833 = vpop.f32.mrf.mxu0
    %v5834 = vadd.f32 %v5785, %v5833
    %v5835 = vpop.f32.mrf.mxu0
    %v5836 = vadd.f32 %v5787, %v5835
    %5837 = vmatmul.bf16.gmra.mxu0 %v5424
    %v5838 = vpop.f32.mrf.mxu0
    %v5839 = vadd.f32 %v5790, %v5838
    %v5840 = vpop.f32.mrf.mxu0
    %v5841 = vadd.f32 %v5792, %v5840
    %5842 = vmatmul.bf16.gmra.mxu0 %v5428
    %v5843 = vpop.f32.mrf.mxu0
    %v5844 = vadd.f32 %v5795, %v5843
    %v5845 = vpop.f32.mrf.mxu0
    %v5846 = vadd.f32 %v5797, %v5845
    %5847 = vmatmul.bf16.gmra.mxu0 %v5432
    %v5848 = vpop.f32.mrf.mxu0
    %v5849 = vadd.f32 %v5800, %v5848
    %v5850 = vpop.f32.mrf.mxu0
    %v5851 = vadd.f32 %v5802, %v5850
    %5852 = vdwg.mxu0
    %v5853 = vmax.f32 %v5814, 0.0
    %v5854 = vmax.f32 %v5816, 0.0
    %v5855 = vmax.f32 %v5819, 0.0
    %v5856 = vmax.f32 %v5821, 0.0
    %v5857 = vmax.f32 %v5824, 0.0
    %v5858 = vmax.f32 %v5826, 0.0
    %v5859 = vmax.f32 %v5829, 0.0
    %v5860 = vmax.f32 %v5831, 0.0
    %v5861 = vmax.f32 %v5834, 0.0
    %v5862 = vmax.f32 %v5836, 0.0
    %v5863 = vmax.f32 %v5839, 0.0
    %v5864 = vmax.f32 %v5841, 0.0
    %v5865 = vmax.f32 %v5844, 0.0
    %v5866 = vmax.f32 %v5846, 0.0
    %v5867 = vmax.f32 %v5849, 0.0
    %v5868 = vmax.f32 %v5851, 0.0
    %5869 = vst [vmem:[#allocation15] sm:$0xff] %v5853
    %5870 = vst [vmem:[#allocation15 + $0x8] sm:$0xff] %v5854
    %5871 = vst [vmem:[#allocation15 + $0x10] sm:$0xff] %v5855
    %5872 = vst [vmem:[#allocation15 + $0x18] sm:$0xff] %v5856
    %5873 = vst [vmem:[#allocation15 + $0x20] sm:$0xff] %v5857
    %5874 = vst [vmem:[#allocation15 + $0x28] sm:$0xff] %v5858
    %5875 = vst [vmem:[#allocation15 + $0x30] sm:$0xff] %v5859
    %5876 = vst [vmem:[#allocation15 + $0x38] sm:$0xff] %v5860
    %5877 = vst [vmem:[#allocation15 + $0x40] sm:$0xff] %v5861
    %5878 = vst [vmem:[#allocation15 + $0x48] sm:$0xff] %v5862
    %5879 = vst [vmem:[#allocation15 + $0x50] sm:$0xff] %v5863
    %5880 = vst [vmem:[#allocation15 + $0x58] sm:$0xff] %v5864
    %5881 = vst [vmem:[#allocation15 + $0x60] sm:$0xff] %v5865
    %5882 = vst [vmem:[#allocation15 + $0x68] sm:$0xff] %v5866
    %5883 = vst [vmem:[#allocation15 + $0x70] sm:$0xff] %v5867
    %5884 = vst [vmem:[#allocation15 + $0x78] sm:$0xff] %v5868
    // Predicated region
    $region54: #{tpu_custom_call.1} parent=1 // pred_check
      _
    $region55: #{tpu_custom_call.1} parent=1 // pred_check_branch
      %5886 = sbr.rel (0) target = $region57
    $region56: #{tpu_custom_call.1} parent=1 // pred_region
      %5888 = vsyncadd [#allocation6], 0
      %s5889 = sshll.u32 [#allocation15], 4
      %s5890 = int_to_ptr.vmem [resolvable:$true] %s5889
      %s5891 = sshll.u32 %s7, 4
      %s5892 = int_to_ptr.hbm [resolvable:$true] %s5891
      %5897 = dma.vmem_to_hbm [thread:$0]  %s5890, 2048, %s5892, [#allocation6], 128, 128, 8
    $region57: #{tpu_custom_call.1} parent=1 // pred_fallthru
      _
    // Predicated region
    $region58: #{tpu_custom_call.1} parent=1 // pred_check
      _
    $region59: #{tpu_custom_call.1} parent=1 // pred_check_branch
      %5899 = sbr.rel (0) target = $region61
    $region60: #{tpu_custom_call.1} parent=1 // pred_region
      %5901 = dma.done [#allocation6], 2048
    $region61: #{tpu_custom_call.1} parent=1 // pred_fallthru
      _
    %5902 = vsyncpa [#allocation5], 1
    %5903 = vsyncpa [#allocation8], 1
    %5904 = vsyncpa [#allocation11], 1
    %5905 = vsyncpa [#allocation14], 1
    %5906 = vsyncpa [#allocation6], 1

</llo_original>
